<compile_context>
chip_gen: v7x
topology: tpu7x:2x2x1
jax: 0.10.0
libtpu: 0.0.40
codegen_flags: <defaults>
</compile_context>

<pallas_src>
import functools

import jax
import jax.numpy as jnp
from jax.experimental import pallas as pl
from jax.experimental.pallas import tpu as pltpu

NUM_SENSOR = 14
NUM_OPER = 4
NODES_PER_GRAPH = NUM_SENSOR + NUM_OPER            # 18
GRAPHS_PER_STEP = 14                               # 14 * 18 = 252 node rows per grid step
NODE_ROWS = GRAPHS_PER_STEP * NODES_PER_GRAPH      # 252
N_PAD = 256                                        # 252 rounded up to a full lane/MXU tile
K_PAD = 128                                        # 50-wide input features zero-padded to 128
F1 = 128                                           # conv1 width
F2 = 64                                            # conv2 width


# ---------------------------------------------------------------------------
# Fused Pallas kernel: conv1 + ReLU + sensor-mask + conv2 + ReLU + 14 heads
# (one grid step == GRAPHS_PER_STEP graphs packed block-diagonally)
# ---------------------------------------------------------------------------
def fused_gnn_kernel(a_ref, x_ref, eye_ref, w1_ref, b1_ref, w2_ref, b2_ref,
                     srow_ref, scol_ref, whe_ref, bh_ref, selm_ref, selg_ref,
                     o_ref):
    a = a_ref[...]        # (N_PAD, N_PAD) block-diagonal raw weighted adjacency
    eye = eye_ref[...]    # (N_PAD, N_PAD) identity (diagonal mask)

    def gcn(a_raw, x, w, b):
        # add_remaining_self_loops(fill=1.0): keep existing self-loop weight, add 1.0
        # only where missing.  (An explicit 0.0-weight self-loop is indistinguishable
        # from "no self-loop" in dense form and gets the fill — matches the reference.)
        a_sl = jnp.where(jnp.logical_and(eye > 0.0, a_raw == 0.0), 1.0, a_raw)  # VPU
        deg = jnp.sum(a_sl, axis=1, keepdims=True)          # (N,1) weighted in-degree  XLU
        dinv = jnp.where(deg > 0.0, jax.lax.rsqrt(deg), 0.0)  # (N,1)                   EUP
        h = jnp.dot(x, w, preferred_element_type=jnp.float32)  # fused node-dim matmul  MXU
        # D^-1/2 A D^-1/2 (XW) == (D^-1/2 A) @ (D^-1/2 (XW)) : row scalings only.
        h = h * dinv          # overwrite h (keeps vreg/VMEM pressure down)
        a_n = a_sl * dinv
        agg = jnp.dot(a_n, h, preferred_element_type=jnp.float32)  # block-diag agg     MXU
        return jnp.maximum(agg + b, 0.0)                           # bias + fused ReLU  VPU

    # conv1 over all 18-node graphs of this step, as one pair of 256-wide matmuls.
    h1 = gcn(a, x_ref[...], w1_ref[...], b1_ref[...])               # (N_PAD, 128)
    # TODO(synk): Dropout(p=0.2) implemented as inference-mode identity (no RNG mask).

    # conv2 on the relabeled sensor subgraph == same packed layout with non-sensor
    # rows/cols of A zeroed (their h1 contributions are nulled by the column mask,
    # their own output rows are never read).
    a2 = a * srow_ref[...] * scol_ref[...]
    h2 = gcn(a2, h1, w2_ref[...], b2_ref[...])                      # (N_PAD, 64)

    # 14 per-sensor Linear(64,1) heads, batched over graphs:
    #   per-row product with the row-expanded head weights (VPU) + lane reduce (XLU),
    #   then a tiny 0/1 selection matmul (MXU) packs rows {g*18+s : s<14} into (BT,14).
    rowsum = jnp.sum(h2 * whe_ref[...], axis=-1, keepdims=True)     # (N_PAD, 1)
    out = jnp.dot(selg_ref[...], selm_ref[...] * rowsum,
                  preferred_element_type=jnp.float32) + bh_ref[...]  # (BT, 14)
    o_ref[...] = out


# ---------------------------------------------------------------------------
# Wrapper: block-diagonal adjacency build + single fused pallas_call
# ---------------------------------------------------------------------------
@functools.partial(jax.jit, static_argnames=("batch_size",))
def gnn_sensors_and_conditions(params, x, edge_index, edge_weight, batch_size):
    ng = NODES_PER_GRAPH
    bt = GRAPHS_PER_STEP
    n = N_PAD
    in_feat = x.shape[1]
    steps = pl.cdiv(batch_size, bt)
    graphs_pad = steps * bt

    # Block-diagonal dense adjacency, one (256, 256) tile per grid step:
    #   A[step, gl*18 + dst_local, gl*18 + src_local] = edge weight.
    # PyG batching guarantees intra-graph edges (graph id derived from dst // 18).
    # TODO(synk): this flat scatter-add is the remaining XLA glue; replace with a
    # sorted-edge segment_sum or an in-kernel SMEM edge-list build if it becomes the
    # end-to-end bottleneck.
    src, dst = edge_index[0], edge_index[1]
    g = dst // ng
    step_id = g // bt
    row = (g % bt) * ng + dst % ng
    col = (g % bt) * ng + src % ng
    flat = (step_id * n + row) * n + col
    a = jnp.zeros((steps * n * n,), jnp.float32).at[flat].add(edge_weight)
    a = a.reshape(steps, n, n)

    # Node features: (B*18, 50) -> (steps, 256, 128), zero padded (feature + batch + rows).
    x3 = x.reshape(batch_size, ng, in_feat)
    x3 = jnp.pad(x3, ((0, graphs_pad - batch_size), (0, 0), (0, K_PAD - in_feat)))
    x3 = x3.reshape(steps, bt * ng, K_PAD)
    x3 = jnp.pad(x3, ((0, 0), (0, n - bt * ng), (0, 0)))

    # Grid-invariant constants (constant index_maps -> DMA'd once, VMEM-resident).
    w1p = jnp.pad(params["w1"], ((0, K_PAD - in_feat), (0, 0)))  # zero rows: result unchanged
    b1 = params["b1"].reshape(1, -1)
    b2 = params["b2"].reshape(1, -1)
    bh = params["b_heads"].reshape(1, -1)

    node_local = jnp.arange(n) % ng
    valid = jnp.arange(n) < bt * ng
    sensor = ((node_local < NUM_SENSOR) & valid).astype(jnp.float32)
    srow = sensor.reshape(n, 1)
    scol = sensor.reshape(1, n)
    eye_n = jnp.eye(n, dtype=jnp.float32)
    # Row-expanded head weights: row g*18+s -> w_heads[s]; zero for operational/pad rows.
    wh_exp = jnp.where(sensor[:, None] > 0.0,
                       params["w_heads"][jnp.clip(node_local, 0, NUM_SENSOR - 1)],
                       0.0)
    # Selection matrices packing rows {g*18+s : s<14} into a (BT, 14) output tile.
    sel_m = ((node_local[:, None] == jnp.arange(NUM_SENSOR)[None, :])
             & valid[:, None]).astype(jnp.float32)                      # (256, 14)
    sel_g = ((jnp.arange(n)[None, :] // ng) == jnp.arange(bt)[:, None])
    sel_g = (sel_g & valid[None, :]).astype(jnp.float32)                # (14, 256)

    out = pl.pallas_call(
        fused_gnn_kernel,
        out_shape=jax.ShapeDtypeStruct((steps, bt, NUM_SENSOR), jnp.float32),
        grid=(steps,),
        in_specs=[
            pl.BlockSpec((None, n, n), lambda i: (i, 0, 0)),       # A (per step)
            pl.BlockSpec((None, n, K_PAD), lambda i: (i, 0, 0)),   # X (per step)
            pl.BlockSpec((n, n), lambda i: (0, 0)),                # eye / diag mask
            pl.BlockSpec((K_PAD, F1), lambda i: (0, 0)),           # W1 (padded)
            pl.BlockSpec((1, F1), lambda i: (0, 0)),               # b1
            pl.BlockSpec((F1, F2), lambda i: (0, 0)),              # W2
            pl.BlockSpec((1, F2), lambda i: (0, 0)),               # b2
            pl.BlockSpec((n, 1), lambda i: (0, 0)),                # sensor row mask
            pl.BlockSpec((1, n), lambda i: (0, 0)),                # sensor col mask
            pl.BlockSpec((n, F2), lambda i: (0, 0)),               # row-expanded head W
            pl.BlockSpec((1, NUM_SENSOR), lambda i: (0, 0)),       # head biases
            pl.BlockSpec((n, NUM_SENSOR), lambda i: (0, 0)),       # sel_m
            pl.BlockSpec((bt, n), lambda i: (0, 0)),               # sel_g
        ],
        out_specs=pl.BlockSpec((None, bt, NUM_SENSOR), lambda i: (i, 0, 0)),
        compiler_params=pltpu.CompilerParams(
            dimension_semantics=("parallel",),  # v7x: steps split across both TensorCores
        ),
    )(a, x3, eye_n, w1p, b1, params["w2"], b2, srow, scol, wh_exp, bh, sel_m, sel_g)

    # graph-major, sensor-minor flatten == torch output.view(-1)
    return out.reshape(steps * bt, NUM_SENSOR)[:batch_size].reshape(-1)


# ---------------------------------------------------------------------------
# Pure-JAX reference (for correctness check only)
# ---------------------------------------------------------------------------
def reference_forward(params, x, edge_index, edge_weight, batch_size):
    n = x.shape[0]
    src, dst = edge_index[0], edge_index[1]
    a_raw = jnp.zeros((n, n), jnp.float32).at[dst, src].add(edge_weight)

    def norm(a):
        m = a.shape[0]
        eye = jnp.eye(m, dtype=bool)
        a_sl = jnp.where(eye & (a == 0.0), 1.0, a)
        deg = a_sl.sum(axis=1)
        dinv = jnp.where(deg > 0, 1.0 / jnp.sqrt(deg), 0.0)
        return a_sl * dinv[:, None] * dinv[None, :]

    h = jnp.maximum(norm(a_raw) @ (x @ params["w1"]) + params["b1"][None, :], 0.0)
    sensor_idx = jnp.array(
        [g * NODES_PER_GRAPH + s for g in range(batch_size) for s in range(NUM_SENSOR)],
        dtype=jnp.int32,
    )
    h_s = h[sensor_idx]
    a_s = a_raw[sensor_idx][:, sensor_idx]
    h2 = jnp.maximum(norm(a_s) @ (h_s @ params["w2"]) + params["b2"][None, :], 0.0)
    h2 = h2.reshape(batch_size, NUM_SENSOR, -1)
    out = jnp.sum(h2 * params["w_heads"][None], axis=-1) + params["b_heads"][None, :]
    return out.reshape(-1)


if __name__ == "__main__":
    key = jax.random.PRNGKey(0)
    keys = iter(jax.random.split(key, 10))

    batch_size = 2
    n_nodes = batch_size * NODES_PER_GRAPH  # 36 nodes total
    in_feat = 50

    # node features
    x = jax.random.normal(next(keys), (n_nodes, in_feat), jnp.float32)

    # fully-connected intra-graph edges (no self-loops), with positive weights
    src, dst = [], []
    for gph in range(batch_size):
        base = gph * NODES_PER_GRAPH
        for i in range(NODES_PER_GRAPH):
            for j in range(NODES_PER_GRAPH):
                if i != j:
                    src.append(base + i)
                    dst.append(base + j)
    edge_index = jnp.array([src, dst], dtype=jnp.int32)
    edge_weight = jax.random.uniform(
        next(keys), (edge_index.shape[1],), jnp.float32, 0.1, 1.0
    )

    # deterministic parameters (shapes per module __init__)
    params = {
        "w1": jax.random.normal(next(keys), (50, 128), jnp.float32) * 0.1,      # GCNConv(50,128).lin.weight^T
        "b1": jax.random.normal(next(keys), (128,), jnp.float32) * 0.1,         # GCNConv(50,128).bias
        "w2": jax.random.normal(next(keys), (128, 64), jnp.float32) * 0.1,      # GCNConv(128,64).lin.weight^T
        "b2": jax.random.normal(next(keys), (64,), jnp.float32) * 0.1,          # GCNConv(128,64).bias
        "w_heads": jax.random.normal(next(keys), (14, 64), jnp.float32) * 0.1,  # 14 x Linear(64,1).weight
        "b_heads": jax.random.normal(next(keys), (14,), jnp.float32) * 0.1,     # 14 x Linear(64,1).bias
    }

    out = gnn_sensors_and_conditions(params, x, edge_index, edge_weight, batch_size=batch_size)
    out = jax.block_until_ready(out)

    ref = reference_forward(params, x, edge_index, edge_weight, batch_size)
    assert out.shape == (batch_size * NUM_SENSOR,)
    assert jnp.allclose(out, ref, atol=1e-4, rtol=1e-4), "mismatch vs JAX reference"

    print("KERNEL_OK")
</pallas_src>

<mosaic_0001>
module attributes {stable_mosaic.version = 11 : i64} {
  func.func @fused_gnn_kernel(%arg0: i32, %arg1: memref<1x256x256xf32, #tpu.memory_space<vmem>>, %arg2: memref<1x256x128xf32, #tpu.memory_space<vmem>>, %arg3: memref<256x256xf32, #tpu.memory_space<vmem>>, %arg4: memref<128x128xf32, #tpu.memory_space<vmem>>, %arg5: memref<1x128xf32, #tpu.memory_space<vmem>>, %arg6: memref<128x64xf32, #tpu.memory_space<vmem>>, %arg7: memref<1x64xf32, #tpu.memory_space<vmem>>, %arg8: memref<256x1xf32, #tpu.memory_space<vmem>>, %arg9: memref<1x256xf32, #tpu.memory_space<vmem>>, %arg10: memref<256x64xf32, #tpu.memory_space<vmem>>, %arg11: memref<1x14xf32, #tpu.memory_space<vmem>>, %arg12: memref<256x14xf32, #tpu.memory_space<vmem>>, %arg13: memref<14x256xf32, #tpu.memory_space<vmem>>, %arg14: memref<1x14x14xf32, #tpu.memory_space<vmem>>) attributes {dimension_semantics = [#tpu.dimension_semantics<parallel>], iteration_bounds = array<i64: 1>, scalar_prefetch = 0 : i64, scratch_operands = 0 : i64, tpu.core_type = #tpu.core_type<tc>, window_params = [{transform_indices = @transform_0, window_bounds = array<i64: 1, 256, 256>}, {transform_indices = @transform_1, window_bounds = array<i64: 1, 256, 128>}, {pipeline_mode = #tpu.pipeline_mode<synchronous>, transform_indices = @transform_2, window_bounds = array<i64: 256, 256>}, {pipeline_mode = #tpu.pipeline_mode<synchronous>, transform_indices = @transform_3, window_bounds = array<i64: 128, 128>}, {pipeline_mode = #tpu.pipeline_mode<synchronous>, transform_indices = @transform_4, window_bounds = array<i64: 1, 128>}, {pipeline_mode = #tpu.pipeline_mode<synchronous>, transform_indices = @transform_5, window_bounds = array<i64: 128, 64>}, {pipeline_mode = #tpu.pipeline_mode<synchronous>, transform_indices = @transform_6, window_bounds = array<i64: 1, 64>}, {pipeline_mode = #tpu.pipeline_mode<synchronous>, transform_indices = @transform_7, window_bounds = array<i64: 256, 1>}, {pipeline_mode = #tpu.pipeline_mode<synchronous>, transform_indices = @transform_8, window_bounds = array<i64: 1, 256>}, {pipeline_mode = #tpu.pipeline_mode<synchronous>, transform_indices = @transform_9, window_bounds = array<i64: 256, 64>}, {pipeline_mode = #tpu.pipeline_mode<synchronous>, transform_indices = @transform_10, window_bounds = array<i64: 1, 14>}, {pipeline_mode = #tpu.pipeline_mode<synchronous>, transform_indices = @transform_11, window_bounds = array<i64: 256, 14>}, {pipeline_mode = #tpu.pipeline_mode<synchronous>, transform_indices = @transform_12, window_bounds = array<i64: 14, 256>}, {transform_indices = @transform_13, window_bounds = array<i64: 1, 14, 14>}]} {
    %c0 = arith.constant 0 : index
    %c0_0 = arith.constant 0 : index
    %c0_1 = arith.constant 0 : index
    %0 = vector.load %arg1[%c0, %c0_0, %c0_1] : memref<1x256x256xf32, #tpu.memory_space<vmem>>, vector<1x256x256xf32>
    %1 = vector.shape_cast %0 : vector<1x256x256xf32> to vector<256x256xf32>
    %c0_2 = arith.constant 0 : index
    %c0_3 = arith.constant 0 : index
    %2 = vector.load %arg3[%c0_2, %c0_3] : memref<256x256xf32, #tpu.memory_space<vmem>>, vector<256x256xf32>
    %c0_4 = arith.constant 0 : index
    %c0_5 = arith.constant 0 : index
    %c0_6 = arith.constant 0 : index
    %3 = vector.load %arg2[%c0_4, %c0_5, %c0_6] : memref<1x256x128xf32, #tpu.memory_space<vmem>>, vector<1x256x128xf32>
    %4 = vector.shape_cast %3 : vector<1x256x128xf32> to vector<256x128xf32>
    %c0_7 = arith.constant 0 : index
    %c0_8 = arith.constant 0 : index
    %5 = vector.load %arg4[%c0_7, %c0_8] : memref<128x128xf32, #tpu.memory_space<vmem>>, vector<128x128xf32>
    %c0_9 = arith.constant 0 : index
    %c0_10 = arith.constant 0 : index
    %6 = vector.load %arg5[%c0_9, %c0_10] : memref<1x128xf32, #tpu.memory_space<vmem>>, vector<1x128xf32>
    %cst = arith.constant 0.000000e+00 : f32
    %7 = vector.broadcast %cst : f32 to vector<256x256xf32>
    %8 = arith.cmpf ogt, %2, %7 : vector<256x256xf32>
    %cst_11 = arith.constant 0.000000e+00 : f32
    %9 = vector.broadcast %cst_11 : f32 to vector<256x256xf32>
    %10 = arith.cmpf oeq, %1, %9 : vector<256x256xf32>
    %11 = arith.andi %8, %10 : vector<256x256xi1>
    %cst_12 = arith.constant 1.000000e+00 : f32
    %12 = vector.broadcast %cst_12 : f32 to vector<256x256xf32>
    %13 = arith.select %11, %12, %1 : vector<256x256xi1>, vector<256x256xf32>
    %cst_13 = arith.constant dense<0.000000e+00> : vector<256xf32>
    %14 = vector.multi_reduction <add>, %13, %cst_13 [1] : vector<256x256xf32> to vector<256xf32>
    %15 = vector.shape_cast %14 : vector<256xf32> to vector<256x1xf32>
    %cst_14 = arith.constant 0.000000e+00 : f32
    %16 = vector.broadcast %cst_14 : f32 to vector<256x1xf32>
    %17 = arith.cmpf ogt, %15, %16 : vector<256x1xf32>
    %18 = math.rsqrt %15 : vector<256x1xf32>
    %cst_15 = arith.constant 0.000000e+00 : f32
    %19 = vector.broadcast %cst_15 : f32 to vector<256x1xf32>
    %20 = arith.select %17, %18, %19 : vector<256x1xi1>, vector<256x1xf32>
    %cst_16 = arith.constant dense<0.000000e+00> : vector<256x128xf32>
    %21 = tpu.matmul %4, %5, %cst_16 {dimension_numbers = #tpu.dot_dimension_numbers<[1], [0], [0], [1], [0, 0, 1, 1], [], []>} : vector<256x128xf32>, vector<128x128xf32>, vector<256x128xf32> -> vector<256x128xf32>
    %22 = vector.broadcast %20 : vector<256x1xf32> to vector<256x128xf32>
    %23 = arith.mulf %21, %22 : vector<256x128xf32>
    %24 = vector.broadcast %20 : vector<256x1xf32> to vector<256x256xf32>
    %25 = arith.mulf %13, %24 : vector<256x256xf32>
    %cst_17 = arith.constant dense<0.000000e+00> : vector<256x128xf32>
    %26 = tpu.matmul %25, %23, %cst_17 {dimension_numbers = #tpu.dot_dimension_numbers<[1], [0], [0], [1], [0, 0, 1, 1], [], []>} : vector<256x256xf32>, vector<256x128xf32>, vector<256x128xf32> -> vector<256x128xf32>
    %27 = vector.broadcast %6 : vector<1x128xf32> to vector<256x128xf32>
    %28 = arith.addf %26, %27 : vector<256x128xf32>
    %cst_18 = arith.constant 0.000000e+00 : f32
    %29 = vector.broadcast %cst_18 : f32 to vector<256x128xf32>
    %30 = arith.maximumf %28, %29 : vector<256x128xf32>
    %c0_19 = arith.constant 0 : index
    %c0_20 = arith.constant 0 : index
    %31 = vector.load %arg8[%c0_19, %c0_20] : memref<256x1xf32, #tpu.memory_space<vmem>>, vector<256x1xf32>
    %32 = vector.broadcast %31 : vector<256x1xf32> to vector<256x256xf32>
    %33 = arith.mulf %1, %32 : vector<256x256xf32>
    %c0_21 = arith.constant 0 : index
    %c0_22 = arith.constant 0 : index
    %34 = vector.load %arg9[%c0_21, %c0_22] : memref<1x256xf32, #tpu.memory_space<vmem>>, vector<1x256xf32>
    %35 = vector.broadcast %34 : vector<1x256xf32> to vector<256x256xf32>
    %36 = arith.mulf %33, %35 : vector<256x256xf32>
    %c0_23 = arith.constant 0 : index
    %c0_24 = arith.constant 0 : index
    %37 = vector.load %arg6[%c0_23, %c0_24] : memref<128x64xf32, #tpu.memory_space<vmem>>, vector<128x64xf32>
    %c0_25 = arith.constant 0 : index
    %c0_26 = arith.constant 0 : index
    %38 = vector.load %arg7[%c0_25, %c0_26] : memref<1x64xf32, #tpu.memory_space<vmem>>, vector<1x64xf32>
    %cst_27 = arith.constant 0.000000e+00 : f32
    %39 = vector.broadcast %cst_27 : f32 to vector<256x256xf32>
    %40 = arith.cmpf ogt, %2, %39 : vector<256x256xf32>
    %cst_28 = arith.constant 0.000000e+00 : f32
    %41 = vector.broadcast %cst_28 : f32 to vector<256x256xf32>
    %42 = arith.cmpf oeq, %36, %41 : vector<256x256xf32>
    %43 = arith.andi %40, %42 : vector<256x256xi1>
    %cst_29 = arith.constant 1.000000e+00 : f32
    %44 = vector.broadcast %cst_29 : f32 to vector<256x256xf32>
    %45 = arith.select %43, %44, %36 : vector<256x256xi1>, vector<256x256xf32>
    %cst_30 = arith.constant dense<0.000000e+00> : vector<256xf32>
    %46 = vector.multi_reduction <add>, %45, %cst_30 [1] : vector<256x256xf32> to vector<256xf32>
    %47 = vector.shape_cast %46 : vector<256xf32> to vector<256x1xf32>
    %cst_31 = arith.constant 0.000000e+00 : f32
    %48 = vector.broadcast %cst_31 : f32 to vector<256x1xf32>
    %49 = arith.cmpf ogt, %47, %48 : vector<256x1xf32>
    %50 = math.rsqrt %47 : vector<256x1xf32>
    %cst_32 = arith.constant 0.000000e+00 : f32
    %51 = vector.broadcast %cst_32 : f32 to vector<256x1xf32>
    %52 = arith.select %49, %50, %51 : vector<256x1xi1>, vector<256x1xf32>
    %cst_33 = arith.constant dense<0.000000e+00> : vector<256x64xf32>
    %53 = tpu.matmul %30, %37, %cst_33 {dimension_numbers = #tpu.dot_dimension_numbers<[1], [0], [0], [1], [0, 0, 1, 1], [], []>} : vector<256x128xf32>, vector<128x64xf32>, vector<256x64xf32> -> vector<256x64xf32>
    %54 = vector.broadcast %52 : vector<256x1xf32> to vector<256x64xf32>
    %55 = arith.mulf %53, %54 : vector<256x64xf32>
    %56 = vector.broadcast %52 : vector<256x1xf32> to vector<256x256xf32>
    %57 = arith.mulf %45, %56 : vector<256x256xf32>
    %cst_34 = arith.constant dense<0.000000e+00> : vector<256x64xf32>
    %58 = tpu.matmul %57, %55, %cst_34 {dimension_numbers = #tpu.dot_dimension_numbers<[1], [0], [0], [1], [0, 0, 1, 1], [], []>} : vector<256x256xf32>, vector<256x64xf32>, vector<256x64xf32> -> vector<256x64xf32>
    %59 = vector.broadcast %38 : vector<1x64xf32> to vector<256x64xf32>
    %60 = arith.addf %58, %59 : vector<256x64xf32>
    %cst_35 = arith.constant 0.000000e+00 : f32
    %61 = vector.broadcast %cst_35 : f32 to vector<256x64xf32>
    %62 = arith.maximumf %60, %61 : vector<256x64xf32>
    %c0_36 = arith.constant 0 : index
    %c0_37 = arith.constant 0 : index
    %63 = vector.load %arg10[%c0_36, %c0_37] : memref<256x64xf32, #tpu.memory_space<vmem>>, vector<256x64xf32>
    %64 = arith.mulf %62, %63 : vector<256x64xf32>
    %cst_38 = arith.constant dense<0.000000e+00> : vector<256xf32>
    %65 = vector.multi_reduction <add>, %64, %cst_38 [1] : vector<256x64xf32> to vector<256xf32>
    %66 = vector.shape_cast %65 : vector<256xf32> to vector<256x1xf32>
    %c0_39 = arith.constant 0 : index
    %c0_40 = arith.constant 0 : index
    %67 = vector.load %arg13[%c0_39, %c0_40] : memref<14x256xf32, #tpu.memory_space<vmem>>, vector<14x256xf32>
    %c0_41 = arith.constant 0 : index
    %c0_42 = arith.constant 0 : index
    %68 = vector.load %arg12[%c0_41, %c0_42] : memref<256x14xf32, #tpu.memory_space<vmem>>, vector<256x14xf32>
    %69 = vector.broadcast %66 : vector<256x1xf32> to vector<256x14xf32>
    %70 = arith.mulf %68, %69 : vector<256x14xf32>
    %cst_43 = arith.constant dense<0.000000e+00> : vector<14x14xf32>
    %71 = tpu.matmul %67, %70, %cst_43 {dimension_numbers = #tpu.dot_dimension_numbers<[1], [0], [0], [1], [0, 0, 1, 1], [], []>} : vector<14x256xf32>, vector<256x14xf32>, vector<14x14xf32> -> vector<14x14xf32>
    %c0_44 = arith.constant 0 : index
    %c0_45 = arith.constant 0 : index
    %72 = vector.load %arg11[%c0_44, %c0_45] : memref<1x14xf32, #tpu.memory_space<vmem>>, vector<1x14xf32>
    %73 = vector.broadcast %72 : vector<1x14xf32> to vector<14x14xf32>
    %74 = arith.addf %71, %73 : vector<14x14xf32>
    %c0_46 = arith.constant 0 : index
    %c0_47 = arith.constant 0 : index
    %c0_48 = arith.constant 0 : index
    %75 = vector.load %arg14[%c0_46, %c0_47, %c0_48] : memref<1x14x14xf32, #tpu.memory_space<vmem>>, vector<1x14x14xf32>
    %76 = vector.shape_cast %75 : vector<1x14x14xf32> to vector<14x14xf32>
    %77 = vector.shape_cast %74 : vector<14x14xf32> to vector<1x14x14xf32>
    tpu.vector_store %arg14[%c0_46, %c0_47, %c0_48], %77 {strides = array<i32>} : memref<1x14x14xf32, #tpu.memory_space<vmem>>, vector<1x14x14xf32>,
    return
  }
  func.func @transform_0(%arg0: i32) -> (i32, i32, i32) {
    %c0_i32 = arith.constant 0 : i32
    %c0_i32_0 = arith.constant 0 : i32
    %c0_i32_1 = arith.constant 0 : i32
    return %arg0, %c0_i32, %c0_i32_0 : i32, i32, i32
  }
  func.func @transform_1(%arg0: i32) -> (i32, i32, i32) {
    %c0_i32 = arith.constant 0 : i32
    %c0_i32_0 = arith.constant 0 : i32
    %c0_i32_1 = arith.constant 0 : i32
    return %arg0, %c0_i32, %c0_i32_0 : i32, i32, i32
  }
  func.func @transform_2(%arg0: i32) -> (i32, i32) {
    %c0_i32 = arith.constant 0 : i32
    %c0_i32_0 = arith.constant 0 : i32
    %c0_i32_1 = arith.constant 0 : i32
    return %c0_i32, %c0_i32_0 : i32, i32
  }
  func.func @transform_3(%arg0: i32) -> (i32, i32) {
    %c0_i32 = arith.constant 0 : i32
    %c0_i32_0 = arith.constant 0 : i32
    %c0_i32_1 = arith.constant 0 : i32
    return %c0_i32, %c0_i32_0 : i32, i32
  }
  func.func @transform_4(%arg0: i32) -> (i32, i32) {
    %c0_i32 = arith.constant 0 : i32
    %c0_i32_0 = arith.constant 0 : i32
    %c0_i32_1 = arith.constant 0 : i32
    return %c0_i32, %c0_i32_0 : i32, i32
  }
  func.func @transform_5(%arg0: i32) -> (i32, i32) {
    %c0_i32 = arith.constant 0 : i32
    %c0_i32_0 = arith.constant 0 : i32
    %c0_i32_1 = arith.constant 0 : i32
    return %c0_i32, %c0_i32_0 : i32, i32
  }
  func.func @transform_6(%arg0: i32) -> (i32, i32) {
    %c0_i32 = arith.constant 0 : i32
    %c0_i32_0 = arith.constant 0 : i32
    %c0_i32_1 = arith.constant 0 : i32
    return %c0_i32, %c0_i32_0 : i32, i32
  }
  func.func @transform_7(%arg0: i32) -> (i32, i32) {
    %c0_i32 = arith.constant 0 : i32
    %c0_i32_0 = arith.constant 0 : i32
    %c0_i32_1 = arith.constant 0 : i32
    return %c0_i32, %c0_i32_0 : i32, i32
  }
  func.func @transform_8(%arg0: i32) -> (i32, i32) {
    %c0_i32 = arith.constant 0 : i32
    %c0_i32_0 = arith.constant 0 : i32
    %c0_i32_1 = arith.constant 0 : i32
    return %c0_i32, %c0_i32_0 : i32, i32
  }
  func.func @transform_9(%arg0: i32) -> (i32, i32) {
    %c0_i32 = arith.constant 0 : i32
    %c0_i32_0 = arith.constant 0 : i32
    %c0_i32_1 = arith.constant 0 : i32
    return %c0_i32, %c0_i32_0 : i32, i32
  }
  func.func @transform_10(%arg0: i32) -> (i32, i32) {
    %c0_i32 = arith.constant 0 : i32
    %c0_i32_0 = arith.constant 0 : i32
    %c0_i32_1 = arith.constant 0 : i32
    return %c0_i32, %c0_i32_0 : i32, i32
  }
  func.func @transform_11(%arg0: i32) -> (i32, i32) {
    %c0_i32 = arith.constant 0 : i32
    %c0_i32_0 = arith.constant 0 : i32
    %c0_i32_1 = arith.constant 0 : i32
    return %c0_i32, %c0_i32_0 : i32, i32
  }
  func.func @transform_12(%arg0: i32) -> (i32, i32) {
    %c0_i32 = arith.constant 0 : i32
    %c0_i32_0 = arith.constant 0 : i32
    %c0_i32_1 = arith.constant 0 : i32
    return %c0_i32, %c0_i32_0 : i32, i32
  }
  func.func @transform_13(%arg0: i32) -> (i32, i32, i32) {
    %c0_i32 = arith.constant 0 : i32
    %c0_i32_0 = arith.constant 0 : i32
    %c0_i32_1 = arith.constant 0 : i32
    return %arg0, %c0_i32, %c0_i32_0 : i32, i32, i32
  }
}

</mosaic_0001>

<llo_original>
// kernel: gnn_sensors_and_conditions.1
$region0: #{gnn_sensors_and_conditions.1}
  #allocation0 [shape = 'u32[]', space=smem, size = 0x4, offset = 0x4, fixed_abs, tag = 'smem constant byte address 0x4 - core index']
  #allocation1 [shape = 'u32[144,128]{1,0:T(1,128)}', space=vmem, size = 0x12000, scoped, tag = 'internal scratch']
  %s0 = inlined_call_operand.vmem [shape: f32[1,256,256], index: 0, kind: input, shape index: {}]
  %s1 = inlined_call_operand.vmem [shape: f32[1,256,128], index: 1, kind: input, shape index: {}]
  %s2 = inlined_call_operand.vmem [shape: f32[256,256], index: 2, kind: input, shape index: {}]
  %s3 = inlined_call_operand.vmem [shape: f32[128,128], index: 3, kind: input, shape index: {}]
  %s4 = inlined_call_operand.vmem [shape: f32[1,128], index: 4, kind: input, shape index: {}]
  %s5 = inlined_call_operand.vmem [shape: f32[128,64], index: 5, kind: input, shape index: {}]
  %s6 = inlined_call_operand.vmem [shape: f32[1,64], index: 6, kind: input, shape index: {}]
  %s7 = inlined_call_operand.vmem [shape: f32[256,1], index: 7, kind: input, shape index: {}]
  %s8 = inlined_call_operand.vmem [shape: f32[1,256], index: 8, kind: input, shape index: {}]
  %s9 = inlined_call_operand.vmem [shape: f32[256,64], index: 9, kind: input, shape index: {}]
  %s10 = inlined_call_operand.vmem [shape: f32[1,14], index: 10, kind: input, shape index: {}]
  %s11 = inlined_call_operand.vmem [shape: f32[256,14], index: 11, kind: input, shape index: {}]
  %s12 = inlined_call_operand.vmem [shape: f32[14,256], index: 12, kind: input, shape index: {}]
  %s13 = inlined_call_operand.vmem [shape: f32[1,14,14], index: 13, kind: output, shape index: {}]
  %s14 = sld [smem:[#allocation0]]
  $region62: #{gnn_sensors_and_conditions.1} parent=0
    _
  %s16 = ssub.s32 1, %s14
  %s17 = scalar_select 0, %s16, %s14
  // Predicated region
  $region2: #{gnn_sensors_and_conditions.1} parent=0 // pred_check
    _
  $region3: #{gnn_sensors_and_conditions.1} parent=0 // pred_check_branch
    %19 = sbr.rel (0) target = $region5
  $region4: #{gnn_sensors_and_conditions.1} parent=0 // pred_region
    _
  $region5: #{gnn_sensors_and_conditions.1} parent=0 // pred_fallthru
    _
  // Predicated region
  $region6: #{gnn_sensors_and_conditions.1} parent=0 // pred_check
    _
  $region7: #{gnn_sensors_and_conditions.1} parent=0 // pred_check_branch
    %21 = sbr.rel (0) target = $region9
  $region8: #{gnn_sensors_and_conditions.1} parent=0 // pred_region
    _
  $region9: #{gnn_sensors_and_conditions.1} parent=0 // pred_fallthru
    _
  // Predicated region
  $region10: #{gnn_sensors_and_conditions.1} parent=0 // pred_check
    _
  $region11: #{gnn_sensors_and_conditions.1} parent=0 // pred_check_branch
    %23 = sbr.rel (0) target = $region13
  $region12: #{gnn_sensors_and_conditions.1} parent=0 // pred_region
    _
  $region13: #{gnn_sensors_and_conditions.1} parent=0 // pred_fallthru
    _
  // Predicated region
  $region14: #{gnn_sensors_and_conditions.1} parent=0 // pred_check
    _
  $region15: #{gnn_sensors_and_conditions.1} parent=0 // pred_check_branch
    %25 = sbr.rel (0) target = $region17
  $region16: #{gnn_sensors_and_conditions.1} parent=0 // pred_region
    _
  $region17: #{gnn_sensors_and_conditions.1} parent=0 // pred_fallthru
    _
  // Predicated region
  $region18: #{gnn_sensors_and_conditions.1} parent=0 // pred_check
    _
  $region19: #{gnn_sensors_and_conditions.1} parent=0 // pred_check_branch
    %27 = sbr.rel (0) target = $region21
  $region20: #{gnn_sensors_and_conditions.1} parent=0 // pred_region
    _
  $region21: #{gnn_sensors_and_conditions.1} parent=0 // pred_fallthru
    _
  // Predicated region
  $region22: #{gnn_sensors_and_conditions.1} parent=0 // pred_check
    _
  $region23: #{gnn_sensors_and_conditions.1} parent=0 // pred_check_branch
    %29 = sbr.rel (0) target = $region25
  $region24: #{gnn_sensors_and_conditions.1} parent=0 // pred_region
    _
  $region25: #{gnn_sensors_and_conditions.1} parent=0 // pred_fallthru
    _
  // Predicated region
  $region26: #{gnn_sensors_and_conditions.1} parent=0 // pred_check
    _
  $region27: #{gnn_sensors_and_conditions.1} parent=0 // pred_check_branch
    %31 = sbr.rel (0) target = $region29
  $region28: #{gnn_sensors_and_conditions.1} parent=0 // pred_region
    _
  $region29: #{gnn_sensors_and_conditions.1} parent=0 // pred_fallthru
    _
  // Predicated region
  $region30: #{gnn_sensors_and_conditions.1} parent=0 // pred_check
    _
  $region31: #{gnn_sensors_and_conditions.1} parent=0 // pred_check_branch
    %33 = sbr.rel (0) target = $region33
  $region32: #{gnn_sensors_and_conditions.1} parent=0 // pred_region
    _
  $region33: #{gnn_sensors_and_conditions.1} parent=0 // pred_fallthru
    _
  // Predicated region
  $region34: #{gnn_sensors_and_conditions.1} parent=0 // pred_check
    _
  $region35: #{gnn_sensors_and_conditions.1} parent=0 // pred_check_branch
    %35 = sbr.rel (0) target = $region37
  $region36: #{gnn_sensors_and_conditions.1} parent=0 // pred_region
    _
  $region37: #{gnn_sensors_and_conditions.1} parent=0 // pred_fallthru
    _
  // Predicated region
  $region38: #{gnn_sensors_and_conditions.1} parent=0 // pred_check
    _
  $region39: #{gnn_sensors_and_conditions.1} parent=0 // pred_check_branch
    %37 = sbr.rel (0) target = $region41
  $region40: #{gnn_sensors_and_conditions.1} parent=0 // pred_region
    _
  $region41: #{gnn_sensors_and_conditions.1} parent=0 // pred_fallthru
    _
  // Predicated region
  $region42: #{gnn_sensors_and_conditions.1} parent=0 // pred_check
    _
  $region43: #{gnn_sensors_and_conditions.1} parent=0 // pred_check_branch
    %39 = sbr.rel (0) target = $region45
  $region44: #{gnn_sensors_and_conditions.1} parent=0 // pred_region
    _
  $region45: #{gnn_sensors_and_conditions.1} parent=0 // pred_fallthru
    _
  // Predicated region
  $region46: #{gnn_sensors_and_conditions.1} parent=0 // pred_check
    _
  $region47: #{gnn_sensors_and_conditions.1} parent=0 // pred_check_branch
    %41 = sbr.rel (0) target = $region49
  $region48: #{gnn_sensors_and_conditions.1} parent=0 // pred_region
    _
  $region49: #{gnn_sensors_and_conditions.1} parent=0 // pred_fallthru
    _
  // Predicated region
  $region50: #{gnn_sensors_and_conditions.1} parent=0 // pred_check
    _
  $region51: #{gnn_sensors_and_conditions.1} parent=0 // pred_check_branch
    %43 = sbr.rel (0) target = $region53
  $region52: #{gnn_sensors_and_conditions.1} parent=0 // pred_region
    _
  $region53: #{gnn_sensors_and_conditions.1} parent=0 // pred_fallthru
    _
  %v44 = vld [vmem:[%s0] sm:$0xff]
  %v45 = vld [vmem:[%s0 + $0x8] sm:$0xff]
  %v46 = vld [vmem:[%s0 + $0x10] sm:$0xff]
  %v47 = vld [vmem:[%s0 + $0x18] sm:$0xff]
  %v48 = vld [vmem:[%s0 + $0x20] sm:$0xff]
  %v49 = vld [vmem:[%s0 + $0x28] sm:$0xff]
  %v50 = vld [vmem:[%s0 + $0x30] sm:$0xff]
  %v51 = vld [vmem:[%s0 + $0x38] sm:$0xff]
  %v52 = vld [vmem:[%s0 + $0x40] sm:$0xff]
  %v53 = vld [vmem:[%s0 + $0x48] sm:$0xff]
  %v54 = vld [vmem:[%s0 + $0x50] sm:$0xff]
  %v55 = vld [vmem:[%s0 + $0x58] sm:$0xff]
  %v56 = vld [vmem:[%s0 + $0x60] sm:$0xff]
  %v57 = vld [vmem:[%s0 + $0x68] sm:$0xff]
  %v58 = vld [vmem:[%s0 + $0x70] sm:$0xff]
  %v59 = vld [vmem:[%s0 + $0x78] sm:$0xff]
  %v60 = vld [vmem:[%s0 + $0x80] sm:$0xff]
  %v61 = vld [vmem:[%s0 + $0x88] sm:$0xff]
  %v62 = vld [vmem:[%s0 + $0x90] sm:$0xff]
  %v63 = vld [vmem:[%s0 + $0x98] sm:$0xff]
  %v64 = vld [vmem:[%s0 + $0xa0] sm:$0xff]
  %v65 = vld [vmem:[%s0 + $0xa8] sm:$0xff]
  %v66 = vld [vmem:[%s0 + $0xb0] sm:$0xff]
  %v67 = vld [vmem:[%s0 + $0xb8] sm:$0xff]
  %v68 = vld [vmem:[%s0 + $0xc0] sm:$0xff]
  %v69 = vld [vmem:[%s0 + $0xc8] sm:$0xff]
  %v70 = vld [vmem:[%s0 + $0xd0] sm:$0xff]
  %v71 = vld [vmem:[%s0 + $0xd8] sm:$0xff]
  %v72 = vld [vmem:[%s0 + $0xe0] sm:$0xff]
  %v73 = vld [vmem:[%s0 + $0xe8] sm:$0xff]
  %v74 = vld [vmem:[%s0 + $0xf0] sm:$0xff]
  %v75 = vld [vmem:[%s0 + $0xf8] sm:$0xff]
  %v76 = vld [vmem:[%s0 + $0x100] sm:$0xff]
  %v77 = vld [vmem:[%s0 + $0x108] sm:$0xff]
  %v78 = vld [vmem:[%s0 + $0x110] sm:$0xff]
  %v79 = vld [vmem:[%s0 + $0x118] sm:$0xff]
  %v80 = vld [vmem:[%s0 + $0x120] sm:$0xff]
  %v81 = vld [vmem:[%s0 + $0x128] sm:$0xff]
  %v82 = vld [vmem:[%s0 + $0x130] sm:$0xff]
  %v83 = vld [vmem:[%s0 + $0x138] sm:$0xff]
  %v84 = vld [vmem:[%s0 + $0x140] sm:$0xff]
  %v85 = vld [vmem:[%s0 + $0x148] sm:$0xff]
  %v86 = vld [vmem:[%s0 + $0x150] sm:$0xff]
  %v87 = vld [vmem:[%s0 + $0x158] sm:$0xff]
  %v88 = vld [vmem:[%s0 + $0x160] sm:$0xff]
  %v89 = vld [vmem:[%s0 + $0x168] sm:$0xff]
  %v90 = vld [vmem:[%s0 + $0x170] sm:$0xff]
  %v91 = vld [vmem:[%s0 + $0x178] sm:$0xff]
  %v92 = vld [vmem:[%s0 + $0x180] sm:$0xff]
  %v93 = vld [vmem:[%s0 + $0x188] sm:$0xff]
  %v94 = vld [vmem:[%s0 + $0x190] sm:$0xff]
  %v95 = vld [vmem:[%s0 + $0x198] sm:$0xff]
  %v96 = vld [vmem:[%s0 + $0x1a0] sm:$0xff]
  %v97 = vld [vmem:[%s0 + $0x1a8] sm:$0xff]
  %v98 = vld [vmem:[%s0 + $0x1b0] sm:$0xff]
  %v99 = vld [vmem:[%s0 + $0x1b8] sm:$0xff]
  %v100 = vld [vmem:[%s0 + $0x1c0] sm:$0xff]
  %v101 = vld [vmem:[%s0 + $0x1c8] sm:$0xff]
  %v102 = vld [vmem:[%s0 + $0x1d0] sm:$0xff]
  %v103 = vld [vmem:[%s0 + $0x1d8] sm:$0xff]
  %v104 = vld [vmem:[%s0 + $0x1e0] sm:$0xff]
  %v105 = vld [vmem:[%s0 + $0x1e8] sm:$0xff]
  %v106 = vld [vmem:[%s0 + $0x1f0] sm:$0xff]
  %v107 = vld [vmem:[%s0 + $0x1f8] sm:$0xff]
  %v108 = vld [vmem:[%s2] sm:$0xff]
  %v109 = vld [vmem:[%s2 + $0x8] sm:$0xff]
  %v110 = vld [vmem:[%s2 + $0x10] sm:$0xff]
  %v111 = vld [vmem:[%s2 + $0x18] sm:$0xff]
  %v112 = vld [vmem:[%s2 + $0x20] sm:$0xff]
  %v113 = vld [vmem:[%s2 + $0x28] sm:$0xff]
  %v114 = vld [vmem:[%s2 + $0x30] sm:$0xff]
  %v115 = vld [vmem:[%s2 + $0x38] sm:$0xff]
  %v116 = vld [vmem:[%s2 + $0x40] sm:$0xff]
  %v117 = vld [vmem:[%s2 + $0x48] sm:$0xff]
  %v118 = vld [vmem:[%s2 + $0x50] sm:$0xff]
  %v119 = vld [vmem:[%s2 + $0x58] sm:$0xff]
  %v120 = vld [vmem:[%s2 + $0x60] sm:$0xff]
  %v121 = vld [vmem:[%s2 + $0x68] sm:$0xff]
  %v122 = vld [vmem:[%s2 + $0x70] sm:$0xff]
  %v123 = vld [vmem:[%s2 + $0x78] sm:$0xff]
  %v124 = vld [vmem:[%s2 + $0x80] sm:$0xff]
  %v125 = vld [vmem:[%s2 + $0x88] sm:$0xff]
  %v126 = vld [vmem:[%s2 + $0x90] sm:$0xff]
  %v127 = vld [vmem:[%s2 + $0x98] sm:$0xff]
  %v128 = vld [vmem:[%s2 + $0xa0] sm:$0xff]
  %v129 = vld [vmem:[%s2 + $0xa8] sm:$0xff]
  %v130 = vld [vmem:[%s2 + $0xb0] sm:$0xff]
  %v131 = vld [vmem:[%s2 + $0xb8] sm:$0xff]
  %v132 = vld [vmem:[%s2 + $0xc0] sm:$0xff]
  %v133 = vld [vmem:[%s2 + $0xc8] sm:$0xff]
  %v134 = vld [vmem:[%s2 + $0xd0] sm:$0xff]
  %v135 = vld [vmem:[%s2 + $0xd8] sm:$0xff]
  %v136 = vld [vmem:[%s2 + $0xe0] sm:$0xff]
  %v137 = vld [vmem:[%s2 + $0xe8] sm:$0xff]
  %v138 = vld [vmem:[%s2 + $0xf0] sm:$0xff]
  %v139 = vld [vmem:[%s2 + $0xf8] sm:$0xff]
  %v140 = vld [vmem:[%s2 + $0x100] sm:$0xff]
  %v141 = vld [vmem:[%s2 + $0x108] sm:$0xff]
  %v142 = vld [vmem:[%s2 + $0x110] sm:$0xff]
  %v143 = vld [vmem:[%s2 + $0x118] sm:$0xff]
  %v144 = vld [vmem:[%s2 + $0x120] sm:$0xff]
  %v145 = vld [vmem:[%s2 + $0x128] sm:$0xff]
  %v146 = vld [vmem:[%s2 + $0x130] sm:$0xff]
  %v147 = vld [vmem:[%s2 + $0x138] sm:$0xff]
  %v148 = vld [vmem:[%s2 + $0x140] sm:$0xff]
  %v149 = vld [vmem:[%s2 + $0x148] sm:$0xff]
  %v150 = vld [vmem:[%s2 + $0x150] sm:$0xff]
  %v151 = vld [vmem:[%s2 + $0x158] sm:$0xff]
  %v152 = vld [vmem:[%s2 + $0x160] sm:$0xff]
  %v153 = vld [vmem:[%s2 + $0x168] sm:$0xff]
  %v154 = vld [vmem:[%s2 + $0x170] sm:$0xff]
  %v155 = vld [vmem:[%s2 + $0x178] sm:$0xff]
  %v156 = vld [vmem:[%s2 + $0x180] sm:$0xff]
  %v157 = vld [vmem:[%s2 + $0x188] sm:$0xff]
  %v158 = vld [vmem:[%s2 + $0x190] sm:$0xff]
  %v159 = vld [vmem:[%s2 + $0x198] sm:$0xff]
  %v160 = vld [vmem:[%s2 + $0x1a0] sm:$0xff]
  %v161 = vld [vmem:[%s2 + $0x1a8] sm:$0xff]
  %v162 = vld [vmem:[%s2 + $0x1b0] sm:$0xff]
  %v163 = vld [vmem:[%s2 + $0x1b8] sm:$0xff]
  %v164 = vld [vmem:[%s2 + $0x1c0] sm:$0xff]
  %v165 = vld [vmem:[%s2 + $0x1c8] sm:$0xff]
  %v166 = vld [vmem:[%s2 + $0x1d0] sm:$0xff]
  %v167 = vld [vmem:[%s2 + $0x1d8] sm:$0xff]
  %v168 = vld [vmem:[%s2 + $0x1e0] sm:$0xff]
  %v169 = vld [vmem:[%s2 + $0x1e8] sm:$0xff]
  %v170 = vld [vmem:[%s2 + $0x1f0] sm:$0xff]
  %v171 = vld [vmem:[%s2 + $0x1f8] sm:$0xff]
  %v172 = vld [vmem:[%s1] sm:$0xff]
  %v173 = vld [vmem:[%s1 + $0x8] sm:$0xff]
  %v174 = vld [vmem:[%s1 + $0x10] sm:$0xff]
  %v175 = vld [vmem:[%s1 + $0x18] sm:$0xff]
  %v176 = vld [vmem:[%s1 + $0x20] sm:$0xff]
  %v177 = vld [vmem:[%s1 + $0x28] sm:$0xff]
  %v178 = vld [vmem:[%s1 + $0x30] sm:$0xff]
  %v179 = vld [vmem:[%s1 + $0x38] sm:$0xff]
  %v180 = vld [vmem:[%s1 + $0x40] sm:$0xff]
  %v181 = vld [vmem:[%s1 + $0x48] sm:$0xff]
  %v182 = vld [vmem:[%s1 + $0x50] sm:$0xff]
  %v183 = vld [vmem:[%s1 + $0x58] sm:$0xff]
  %v184 = vld [vmem:[%s1 + $0x60] sm:$0xff]
  %v185 = vld [vmem:[%s1 + $0x68] sm:$0xff]
  %v186 = vld [vmem:[%s1 + $0x70] sm:$0xff]
  %v187 = vld [vmem:[%s1 + $0x78] sm:$0xff]
  %v188 = vld [vmem:[%s1 + $0x80] sm:$0xff]
  %v189 = vld [vmem:[%s1 + $0x88] sm:$0xff]
  %v190 = vld [vmem:[%s1 + $0x90] sm:$0xff]
  %v191 = vld [vmem:[%s1 + $0x98] sm:$0xff]
  %v192 = vld [vmem:[%s1 + $0xa0] sm:$0xff]
  %v193 = vld [vmem:[%s1 + $0xa8] sm:$0xff]
  %v194 = vld [vmem:[%s1 + $0xb0] sm:$0xff]
  %v195 = vld [vmem:[%s1 + $0xb8] sm:$0xff]
  %v196 = vld [vmem:[%s1 + $0xc0] sm:$0xff]
  %v197 = vld [vmem:[%s1 + $0xc8] sm:$0xff]
  %v198 = vld [vmem:[%s1 + $0xd0] sm:$0xff]
  %v199 = vld [vmem:[%s1 + $0xd8] sm:$0xff]
  %v200 = vld [vmem:[%s1 + $0xe0] sm:$0xff]
  %v201 = vld [vmem:[%s1 + $0xe8] sm:$0xff]
  %v202 = vld [vmem:[%s1 + $0xf0] sm:$0xff]
  %v203 = vld [vmem:[%s1 + $0xf8] sm:$0xff]
  %v204 = vld [vmem:[%s3] sm:$0xff]
  %v205 = vld [vmem:[%s3 + $0x8] sm:$0xff]
  %v206 = vld [vmem:[%s3 + $0x10] sm:$0xff]
  %v207 = vld [vmem:[%s3 + $0x18] sm:$0xff]
  %v208 = vld [vmem:[%s3 + $0x20] sm:$0xff]
  %v209 = vld [vmem:[%s3 + $0x28] sm:$0xff]
  %v210 = vld [vmem:[%s3 + $0x30] sm:$0xff]
  %v211 = vld [vmem:[%s3 + $0x38] sm:$0xff]
  %v212 = vld [vmem:[%s3 + $0x40] sm:$0xff]
  %v213 = vld [vmem:[%s3 + $0x48] sm:$0xff]
  %v214 = vld [vmem:[%s3 + $0x50] sm:$0xff]
  %v215 = vld [vmem:[%s3 + $0x58] sm:$0xff]
  %v216 = vld [vmem:[%s3 + $0x60] sm:$0xff]
  %v217 = vld [vmem:[%s3 + $0x68] sm:$0xff]
  %v218 = vld [vmem:[%s3 + $0x70] sm:$0xff]
  %v219 = vld [vmem:[%s3 + $0x78] sm:$0xff]
  %v220 = vld [vmem:[%s4] sm:$0x1]
  %vm221 = vcmp.gt.f32.partialorder %v108, 0.0
  %vm222 = vcmp.gt.f32.partialorder %v109, 0.0
  %vm223 = vcmp.gt.f32.partialorder %v110, 0.0
  %vm224 = vcmp.gt.f32.partialorder %v111, 0.0
  %vm225 = vcmp.gt.f32.partialorder %v112, 0.0
  %vm226 = vcmp.gt.f32.partialorder %v113, 0.0
  %vm227 = vcmp.gt.f32.partialorder %v114, 0.0
  %vm228 = vcmp.gt.f32.partialorder %v115, 0.0
  %vm229 = vcmp.gt.f32.partialorder %v116, 0.0
  %vm230 = vcmp.gt.f32.partialorder %v117, 0.0
  %vm231 = vcmp.gt.f32.partialorder %v118, 0.0
  %vm232 = vcmp.gt.f32.partialorder %v119, 0.0
  %vm233 = vcmp.gt.f32.partialorder %v120, 0.0
  %vm234 = vcmp.gt.f32.partialorder %v121, 0.0
  %vm235 = vcmp.gt.f32.partialorder %v122, 0.0
  %vm236 = vcmp.gt.f32.partialorder %v123, 0.0
  %vm237 = vcmp.gt.f32.partialorder %v124, 0.0
  %vm238 = vcmp.gt.f32.partialorder %v125, 0.0
  %vm239 = vcmp.gt.f32.partialorder %v126, 0.0
  %vm240 = vcmp.gt.f32.partialorder %v127, 0.0
  %vm241 = vcmp.gt.f32.partialorder %v128, 0.0
  %vm242 = vcmp.gt.f32.partialorder %v129, 0.0
  %vm243 = vcmp.gt.f32.partialorder %v130, 0.0
  %vm244 = vcmp.gt.f32.partialorder %v131, 0.0
  %vm245 = vcmp.gt.f32.partialorder %v132, 0.0
  %vm246 = vcmp.gt.f32.partialorder %v133, 0.0
  %vm247 = vcmp.gt.f32.partialorder %v134, 0.0
  %vm248 = vcmp.gt.f32.partialorder %v135, 0.0
  %vm249 = vcmp.gt.f32.partialorder %v136, 0.0
  %vm250 = vcmp.gt.f32.partialorder %v137, 0.0
  %vm251 = vcmp.gt.f32.partialorder %v138, 0.0
  %vm252 = vcmp.gt.f32.partialorder %v139, 0.0
  %vm253 = vcmp.gt.f32.partialorder %v140, 0.0
  %vm254 = vcmp.gt.f32.partialorder %v141, 0.0
  %vm255 = vcmp.gt.f32.partialorder %v142, 0.0
  %vm256 = vcmp.gt.f32.partialorder %v143, 0.0
  %vm257 = vcmp.gt.f32.partialorder %v144, 0.0
  %vm258 = vcmp.gt.f32.partialorder %v145, 0.0
  %vm259 = vcmp.gt.f32.partialorder %v146, 0.0
  %vm260 = vcmp.gt.f32.partialorder %v147, 0.0
  %vm261 = vcmp.gt.f32.partialorder %v148, 0.0
  %vm262 = vcmp.gt.f32.partialorder %v149, 0.0
  %vm263 = vcmp.gt.f32.partialorder %v150, 0.0
  %vm264 = vcmp.gt.f32.partialorder %v151, 0.0
  %vm265 = vcmp.gt.f32.partialorder %v152, 0.0
  %vm266 = vcmp.gt.f32.partialorder %v153, 0.0
  %vm267 = vcmp.gt.f32.partialorder %v154, 0.0
  %vm268 = vcmp.gt.f32.partialorder %v155, 0.0
  %vm269 = vcmp.gt.f32.partialorder %v156, 0.0
  %vm270 = vcmp.gt.f32.partialorder %v157, 0.0
  %vm271 = vcmp.gt.f32.partialorder %v158, 0.0
  %vm272 = vcmp.gt.f32.partialorder %v159, 0.0
  %vm273 = vcmp.gt.f32.partialorder %v160, 0.0
  %vm274 = vcmp.gt.f32.partialorder %v161, 0.0
  %vm275 = vcmp.gt.f32.partialorder %v162, 0.0
  %vm276 = vcmp.gt.f32.partialorder %v163, 0.0
  %vm277 = vcmp.gt.f32.partialorder %v164, 0.0
  %vm278 = vcmp.gt.f32.partialorder %v165, 0.0
  %vm279 = vcmp.gt.f32.partialorder %v166, 0.0
  %vm280 = vcmp.gt.f32.partialorder %v167, 0.0
  %vm281 = vcmp.gt.f32.partialorder %v168, 0.0
  %vm282 = vcmp.gt.f32.partialorder %v169, 0.0
  %vm283 = vcmp.gt.f32.partialorder %v170, 0.0
  %vm284 = vcmp.gt.f32.partialorder %v171, 0.0
  %vm285 = vcmp.eq.f32.partialorder %v44, 0.0
  %vm286 = vcmp.eq.f32.partialorder %v45, 0.0
  %vm287 = vcmp.eq.f32.partialorder %v46, 0.0
  %vm288 = vcmp.eq.f32.partialorder %v47, 0.0
  %vm289 = vcmp.eq.f32.partialorder %v48, 0.0
  %vm290 = vcmp.eq.f32.partialorder %v49, 0.0
  %vm291 = vcmp.eq.f32.partialorder %v50, 0.0
  %vm292 = vcmp.eq.f32.partialorder %v51, 0.0
  %vm293 = vcmp.eq.f32.partialorder %v52, 0.0
  %vm294 = vcmp.eq.f32.partialorder %v53, 0.0
  %vm295 = vcmp.eq.f32.partialorder %v54, 0.0
  %vm296 = vcmp.eq.f32.partialorder %v55, 0.0
  %vm297 = vcmp.eq.f32.partialorder %v56, 0.0
  %vm298 = vcmp.eq.f32.partialorder %v57, 0.0
  %vm299 = vcmp.eq.f32.partialorder %v58, 0.0
  %vm300 = vcmp.eq.f32.partialorder %v59, 0.0
  %vm301 = vcmp.eq.f32.partialorder %v60, 0.0
  %vm302 = vcmp.eq.f32.partialorder %v61, 0.0
  %vm303 = vcmp.eq.f32.partialorder %v62, 0.0
  %vm304 = vcmp.eq.f32.partialorder %v63, 0.0
  %vm305 = vcmp.eq.f32.partialorder %v64, 0.0
  %vm306 = vcmp.eq.f32.partialorder %v65, 0.0
  %vm307 = vcmp.eq.f32.partialorder %v66, 0.0
  %vm308 = vcmp.eq.f32.partialorder %v67, 0.0
  %vm309 = vcmp.eq.f32.partialorder %v68, 0.0
  %vm310 = vcmp.eq.f32.partialorder %v69, 0.0
  %vm311 = vcmp.eq.f32.partialorder %v70, 0.0
  %vm312 = vcmp.eq.f32.partialorder %v71, 0.0
  %vm313 = vcmp.eq.f32.partialorder %v72, 0.0
  %vm314 = vcmp.eq.f32.partialorder %v73, 0.0
  %vm315 = vcmp.eq.f32.partialorder %v74, 0.0
  %vm316 = vcmp.eq.f32.partialorder %v75, 0.0
  %vm317 = vcmp.eq.f32.partialorder %v76, 0.0
  %vm318 = vcmp.eq.f32.partialorder %v77, 0.0
  %vm319 = vcmp.eq.f32.partialorder %v78, 0.0
  %vm320 = vcmp.eq.f32.partialorder %v79, 0.0
  %vm321 = vcmp.eq.f32.partialorder %v80, 0.0
  %vm322 = vcmp.eq.f32.partialorder %v81, 0.0
  %vm323 = vcmp.eq.f32.partialorder %v82, 0.0
  %vm324 = vcmp.eq.f32.partialorder %v83, 0.0
  %vm325 = vcmp.eq.f32.partialorder %v84, 0.0
  %vm326 = vcmp.eq.f32.partialorder %v85, 0.0
  %vm327 = vcmp.eq.f32.partialorder %v86, 0.0
  %vm328 = vcmp.eq.f32.partialorder %v87, 0.0
  %vm329 = vcmp.eq.f32.partialorder %v88, 0.0
  %vm330 = vcmp.eq.f32.partialorder %v89, 0.0
  %vm331 = vcmp.eq.f32.partialorder %v90, 0.0
  %vm332 = vcmp.eq.f32.partialorder %v91, 0.0
  %vm333 = vcmp.eq.f32.partialorder %v92, 0.0
  %vm334 = vcmp.eq.f32.partialorder %v93, 0.0
  %vm335 = vcmp.eq.f32.partialorder %v94, 0.0
  %vm336 = vcmp.eq.f32.partialorder %v95, 0.0
  %vm337 = vcmp.eq.f32.partialorder %v96, 0.0
  %vm338 = vcmp.eq.f32.partialorder %v97, 0.0
  %vm339 = vcmp.eq.f32.partialorder %v98, 0.0
  %vm340 = vcmp.eq.f32.partialorder %v99, 0.0
  %vm341 = vcmp.eq.f32.partialorder %v100, 0.0
  %vm342 = vcmp.eq.f32.partialorder %v101, 0.0
  %vm343 = vcmp.eq.f32.partialorder %v102, 0.0
  %vm344 = vcmp.eq.f32.partialorder %v103, 0.0
  %vm345 = vcmp.eq.f32.partialorder %v104, 0.0
  %vm346 = vcmp.eq.f32.partialorder %v105, 0.0
  %vm347 = vcmp.eq.f32.partialorder %v106, 0.0
  %vm348 = vcmp.eq.f32.partialorder %v107, 0.0
  %vm349 = vmand %vm221, %vm285
  %vm350 = vmand %vm222, %vm286
  %vm351 = vmand %vm223, %vm287
  %vm352 = vmand %vm224, %vm288
  %vm353 = vmand %vm225, %vm289
  %vm354 = vmand %vm226, %vm290
  %vm355 = vmand %vm227, %vm291
  %vm356 = vmand %vm228, %vm292
  %vm357 = vmand %vm229, %vm293
  %vm358 = vmand %vm230, %vm294
  %vm359 = vmand %vm231, %vm295
  %vm360 = vmand %vm232, %vm296
  %vm361 = vmand %vm233, %vm297
  %vm362 = vmand %vm234, %vm298
  %vm363 = vmand %vm235, %vm299
  %vm364 = vmand %vm236, %vm300
  %vm365 = vmand %vm237, %vm301
  %vm366 = vmand %vm238, %vm302
  %vm367 = vmand %vm239, %vm303
  %vm368 = vmand %vm240, %vm304
  %vm369 = vmand %vm241, %vm305
  %vm370 = vmand %vm242, %vm306
  %vm371 = vmand %vm243, %vm307
  %vm372 = vmand %vm244, %vm308
  %vm373 = vmand %vm245, %vm309
  %vm374 = vmand %vm246, %vm310
  %vm375 = vmand %vm247, %vm311
  %vm376 = vmand %vm248, %vm312
  %vm377 = vmand %vm249, %vm313
  %vm378 = vmand %vm250, %vm314
  %vm379 = vmand %vm251, %vm315
  %vm380 = vmand %vm252, %vm316
  %vm381 = vmand %vm253, %vm317
  %vm382 = vmand %vm254, %vm318
  %vm383 = vmand %vm255, %vm319
  %vm384 = vmand %vm256, %vm320
  %vm385 = vmand %vm257, %vm321
  %vm386 = vmand %vm258, %vm322
  %vm387 = vmand %vm259, %vm323
  %vm388 = vmand %vm260, %vm324
  %vm389 = vmand %vm261, %vm325
  %vm390 = vmand %vm262, %vm326
  %vm391 = vmand %vm263, %vm327
  %vm392 = vmand %vm264, %vm328
  %vm393 = vmand %vm265, %vm329
  %vm394 = vmand %vm266, %vm330
  %vm395 = vmand %vm267, %vm331
  %vm396 = vmand %vm268, %vm332
  %vm397 = vmand %vm269, %vm333
  %vm398 = vmand %vm270, %vm334
  %vm399 = vmand %vm271, %vm335
  %vm400 = vmand %vm272, %vm336
  %vm401 = vmand %vm273, %vm337
  %vm402 = vmand %vm274, %vm338
  %vm403 = vmand %vm275, %vm339
  %vm404 = vmand %vm276, %vm340
  %vm405 = vmand %vm277, %vm341
  %vm406 = vmand %vm278, %vm342
  %vm407 = vmand %vm279, %vm343
  %vm408 = vmand %vm280, %vm344
  %vm409 = vmand %vm281, %vm345
  %vm410 = vmand %vm282, %vm346
  %vm411 = vmand %vm283, %vm347
  %vm412 = vmand %vm284, %vm348
  %v413 = vsel %vm349, 1.0, %v44
  %v414 = vsel %vm350, 1.0, %v45
  %v415 = vsel %vm351, 1.0, %v46
  %v416 = vsel %vm352, 1.0, %v47
  %v417 = vsel %vm353, 1.0, %v48
  %v418 = vsel %vm354, 1.0, %v49
  %v419 = vsel %vm355, 1.0, %v50
  %v420 = vsel %vm356, 1.0, %v51
  %v421 = vsel %vm357, 1.0, %v52
  %v422 = vsel %vm358, 1.0, %v53
  %v423 = vsel %vm359, 1.0, %v54
  %v424 = vsel %vm360, 1.0, %v55
  %v425 = vsel %vm361, 1.0, %v56
  %v426 = vsel %vm362, 1.0, %v57
  %v427 = vsel %vm363, 1.0, %v58
  %v428 = vsel %vm364, 1.0, %v59
  %v429 = vsel %vm365, 1.0, %v60
  %v430 = vsel %vm366, 1.0, %v61
  %v431 = vsel %vm367, 1.0, %v62
  %v432 = vsel %vm368, 1.0, %v63
  %v433 = vsel %vm369, 1.0, %v64
  %v434 = vsel %vm370, 1.0, %v65
  %v435 = vsel %vm371, 1.0, %v66
  %v436 = vsel %vm372, 1.0, %v67
  %v437 = vsel %vm373, 1.0, %v68
  %v438 = vsel %vm374, 1.0, %v69
  %v439 = vsel %vm375, 1.0, %v70
  %v440 = vsel %vm376, 1.0, %v71
  %v441 = vsel %vm377, 1.0, %v72
  %v442 = vsel %vm378, 1.0, %v73
  %v443 = vsel %vm379, 1.0, %v74
  %v444 = vsel %vm380, 1.0, %v75
  %v445 = vsel %vm381, 1.0, %v76
  %v446 = vsel %vm382, 1.0, %v77
  %v447 = vsel %vm383, 1.0, %v78
  %v448 = vsel %vm384, 1.0, %v79
  %v449 = vsel %vm385, 1.0, %v80
  %v450 = vsel %vm386, 1.0, %v81
  %v451 = vsel %vm387, 1.0, %v82
  %v452 = vsel %vm388, 1.0, %v83
  %v453 = vsel %vm389, 1.0, %v84
  %v454 = vsel %vm390, 1.0, %v85
  %v455 = vsel %vm391, 1.0, %v86
  %v456 = vsel %vm392, 1.0, %v87
  %v457 = vsel %vm393, 1.0, %v88
  %v458 = vsel %vm394, 1.0, %v89
  %v459 = vsel %vm395, 1.0, %v90
  %v460 = vsel %vm396, 1.0, %v91
  %v461 = vsel %vm397, 1.0, %v92
  %v462 = vsel %vm398, 1.0, %v93
  %v463 = vsel %vm399, 1.0, %v94
  %v464 = vsel %vm400, 1.0, %v95
  %v465 = vsel %vm401, 1.0, %v96
  %v466 = vsel %vm402, 1.0, %v97
  %v467 = vsel %vm403, 1.0, %v98
  %v468 = vsel %vm404, 1.0, %v99
  %v469 = vsel %vm405, 1.0, %v100
  %v470 = vsel %vm406, 1.0, %v101
  %v471 = vsel %vm407, 1.0, %v102
  %v472 = vsel %vm408, 1.0, %v103
  %v473 = vsel %vm409, 1.0, %v104
  %v474 = vsel %vm410, 1.0, %v105
  %v475 = vsel %vm411, 1.0, %v106
  %v476 = vsel %vm412, 1.0, %v107
  %v477 = vadd.f32 %v413, %v414
  %478 = vadd.xlane.f32.xlu0 %v477
  %v479 = vpop.xlane.xlu0 %478
  %v480 = vadd.f32 %v415, %v416
  %481 = vadd.xlane.f32.xlu0 %v480
  %v482 = vpop.xlane.xlu0 %481
  %v483 = vadd.f32 %v417, %v418
  %484 = vadd.xlane.f32.xlu0 %v483
  %v485 = vpop.xlane.xlu0 %484
  %v486 = vadd.f32 %v419, %v420
  %487 = vadd.xlane.f32.xlu0 %v486
  %v488 = vpop.xlane.xlu0 %487
  %v489 = vadd.f32 %v421, %v422
  %490 = vadd.xlane.f32.xlu0 %v489
  %v491 = vpop.xlane.xlu0 %490
  %v492 = vadd.f32 %v423, %v424
  %493 = vadd.xlane.f32.xlu0 %v492
  %v494 = vpop.xlane.xlu0 %493
  %v495 = vadd.f32 %v425, %v426
  %496 = vadd.xlane.f32.xlu0 %v495
  %v497 = vpop.xlane.xlu0 %496
  %v498 = vadd.f32 %v427, %v428
  %499 = vadd.xlane.f32.xlu0 %v498
  %v500 = vpop.xlane.xlu0 %499
  %v501 = vadd.f32 %v429, %v430
  %502 = vadd.xlane.f32.xlu0 %v501
  %v503 = vpop.xlane.xlu0 %502
  %v504 = vadd.f32 %v431, %v432
  %505 = vadd.xlane.f32.xlu0 %v504
  %v506 = vpop.xlane.xlu0 %505
  %v507 = vadd.f32 %v433, %v434
  %508 = vadd.xlane.f32.xlu0 %v507
  %v509 = vpop.xlane.xlu0 %508
  %v510 = vadd.f32 %v435, %v436
  %511 = vadd.xlane.f32.xlu0 %v510
  %v512 = vpop.xlane.xlu0 %511
  %v513 = vadd.f32 %v437, %v438
  %514 = vadd.xlane.f32.xlu0 %v513
  %v515 = vpop.xlane.xlu0 %514
  %v516 = vadd.f32 %v439, %v440
  %517 = vadd.xlane.f32.xlu0 %v516
  %v518 = vpop.xlane.xlu0 %517
  %v519 = vadd.f32 %v441, %v442
  %520 = vadd.xlane.f32.xlu0 %v519
  %v521 = vpop.xlane.xlu0 %520
  %v522 = vadd.f32 %v443, %v444
  %523 = vadd.xlane.f32.xlu0 %v522
  %v524 = vpop.xlane.xlu0 %523
  %v525 = vadd.f32 %v445, %v446
  %526 = vadd.xlane.f32.xlu0 %v525
  %v527 = vpop.xlane.xlu0 %526
  %v528 = vadd.f32 %v447, %v448
  %529 = vadd.xlane.f32.xlu0 %v528
  %v530 = vpop.xlane.xlu0 %529
  %v531 = vadd.f32 %v449, %v450
  %532 = vadd.xlane.f32.xlu0 %v531
  %v533 = vpop.xlane.xlu0 %532
  %v534 = vadd.f32 %v451, %v452
  %535 = vadd.xlane.f32.xlu0 %v534
  %v536 = vpop.xlane.xlu0 %535
  %v537 = vadd.f32 %v453, %v454
  %538 = vadd.xlane.f32.xlu0 %v537
  %v539 = vpop.xlane.xlu0 %538
  %v540 = vadd.f32 %v455, %v456
  %541 = vadd.xlane.f32.xlu0 %v540
  %v542 = vpop.xlane.xlu0 %541
  %v543 = vadd.f32 %v457, %v458
  %544 = vadd.xlane.f32.xlu0 %v543
  %v545 = vpop.xlane.xlu0 %544
  %v546 = vadd.f32 %v459, %v460
  %547 = vadd.xlane.f32.xlu0 %v546
  %v548 = vpop.xlane.xlu0 %547
  %v549 = vadd.f32 %v461, %v462
  %550 = vadd.xlane.f32.xlu0 %v549
  %v551 = vpop.xlane.xlu0 %550
  %v552 = vadd.f32 %v463, %v464
  %553 = vadd.xlane.f32.xlu0 %v552
  %v554 = vpop.xlane.xlu0 %553
  %v555 = vadd.f32 %v465, %v466
  %556 = vadd.xlane.f32.xlu0 %v555
  %v557 = vpop.xlane.xlu0 %556
  %v558 = vadd.f32 %v467, %v468
  %559 = vadd.xlane.f32.xlu0 %v558
  %v560 = vpop.xlane.xlu0 %559
  %v561 = vadd.f32 %v469, %v470
  %562 = vadd.xlane.f32.xlu0 %v561
  %v563 = vpop.xlane.xlu0 %562
  %v564 = vadd.f32 %v471, %v472
  %565 = vadd.xlane.f32.xlu0 %v564
  %v566 = vpop.xlane.xlu0 %565
  %v567 = vadd.f32 %v473, %v474
  %568 = vadd.xlane.f32.xlu0 %v567
  %v569 = vpop.xlane.xlu0 %568
  %v570 = vadd.f32 %v475, %v476
  %571 = vadd.xlane.f32.xlu0 %v570
  %v572 = vpop.xlane.xlu0 %571
  %vm573 = vcmp.gt.f32.partialorder %v479, 0.0
  %vm574 = vcmp.gt.f32.partialorder %v482, 0.0
  %vm575 = vcmp.gt.f32.partialorder %v485, 0.0
  %vm576 = vcmp.gt.f32.partialorder %v488, 0.0
  %vm577 = vcmp.gt.f32.partialorder %v491, 0.0
  %vm578 = vcmp.gt.f32.partialorder %v494, 0.0
  %vm579 = vcmp.gt.f32.partialorder %v497, 0.0
  %vm580 = vcmp.gt.f32.partialorder %v500, 0.0
  %vm581 = vcmp.gt.f32.partialorder %v503, 0.0
  %vm582 = vcmp.gt.f32.partialorder %v506, 0.0
  %vm583 = vcmp.gt.f32.partialorder %v509, 0.0
  %vm584 = vcmp.gt.f32.partialorder %v512, 0.0
  %vm585 = vcmp.gt.f32.partialorder %v515, 0.0
  %vm586 = vcmp.gt.f32.partialorder %v518, 0.0
  %vm587 = vcmp.gt.f32.partialorder %v521, 0.0
  %vm588 = vcmp.gt.f32.partialorder %v524, 0.0
  %vm589 = vcmp.gt.f32.partialorder %v527, 0.0
  %vm590 = vcmp.gt.f32.partialorder %v530, 0.0
  %vm591 = vcmp.gt.f32.partialorder %v533, 0.0
  %vm592 = vcmp.gt.f32.partialorder %v536, 0.0
  %vm593 = vcmp.gt.f32.partialorder %v539, 0.0
  %vm594 = vcmp.gt.f32.partialorder %v542, 0.0
  %vm595 = vcmp.gt.f32.partialorder %v545, 0.0
  %vm596 = vcmp.gt.f32.partialorder %v548, 0.0
  %vm597 = vcmp.gt.f32.partialorder %v551, 0.0
  %vm598 = vcmp.gt.f32.partialorder %v554, 0.0
  %vm599 = vcmp.gt.f32.partialorder %v557, 0.0
  %vm600 = vcmp.gt.f32.partialorder %v560, 0.0
  %vm601 = vcmp.gt.f32.partialorder %v563, 0.0
  %vm602 = vcmp.gt.f32.partialorder %v566, 0.0
  %vm603 = vcmp.gt.f32.partialorder %v569, 0.0
  %vm604 = vcmp.gt.f32.partialorder %v572, 0.0
  %v605 = vrsqrt.pop %v479
  %v606 = vrsqrt.pop %v482
  %v607 = vrsqrt.pop %v485
  %v608 = vrsqrt.pop %v488
  %v609 = vrsqrt.pop %v491
  %v610 = vrsqrt.pop %v494
  %v611 = vrsqrt.pop %v497
  %v612 = vrsqrt.pop %v500
  %v613 = vrsqrt.pop %v503
  %v614 = vrsqrt.pop %v506
  %v615 = vrsqrt.pop %v509
  %v616 = vrsqrt.pop %v512
  %v617 = vrsqrt.pop %v515
  %v618 = vrsqrt.pop %v518
  %v619 = vrsqrt.pop %v521
  %v620 = vrsqrt.pop %v524
  %v621 = vrsqrt.pop %v527
  %v622 = vrsqrt.pop %v530
  %v623 = vrsqrt.pop %v533
  %v624 = vrsqrt.pop %v536
  %v625 = vrsqrt.pop %v539
  %v626 = vrsqrt.pop %v542
  %v627 = vrsqrt.pop %v545
  %v628 = vrsqrt.pop %v548
  %v629 = vrsqrt.pop %v551
  %v630 = vrsqrt.pop %v554
  %v631 = vrsqrt.pop %v557
  %v632 = vrsqrt.pop %v560
  %v633 = vrsqrt.pop %v563
  %v634 = vrsqrt.pop %v566
  %v635 = vrsqrt.pop %v569
  %v636 = vrsqrt.pop %v572
  %v637 = vsel %vm573, %v605, 0.0
  %v638 = vsel %vm574, %v606, 0.0
  %v639 = vsel %vm575, %v607, 0.0
  %v640 = vsel %vm576, %v608, 0.0
  %v641 = vsel %vm577, %v609, 0.0
  %v642 = vsel %vm578, %v610, 0.0
  %v643 = vsel %vm579, %v611, 0.0
  %v644 = vsel %vm580, %v612, 0.0
  %v645 = vsel %vm581, %v613, 0.0
  %v646 = vsel %vm582, %v614, 0.0
  %v647 = vsel %vm583, %v615, 0.0
  %v648 = vsel %vm584, %v616, 0.0
  %v649 = vsel %vm585, %v617, 0.0
  %v650 = vsel %vm586, %v618, 0.0
  %v651 = vsel %vm587, %v619, 0.0
  %v652 = vsel %vm588, %v620, 0.0
  %v653 = vsel %vm589, %v621, 0.0
  %v654 = vsel %vm590, %v622, 0.0
  %v655 = vsel %vm591, %v623, 0.0
  %v656 = vsel %vm592, %v624, 0.0
  %v657 = vsel %vm593, %v625, 0.0
  %v658 = vsel %vm594, %v626, 0.0
  %v659 = vsel %vm595, %v627, 0.0
  %v660 = vsel %vm596, %v628, 0.0
  %v661 = vsel %vm597, %v629, 0.0
  %v662 = vsel %vm598, %v630, 0.0
  %v663 = vsel %vm599, %v631, 0.0
  %v664 = vsel %vm600, %v632, 0.0
  %v665 = vsel %vm601, %v633, 0.0
  %v666 = vsel %vm602, %v634, 0.0
  %v667 = vsel %vm603, %v635, 0.0
  %v668 = vsel %vm604, %v636, 0.0
  %669 = vmatprep.subr.mxu0 0.0
  %670 = vmatpush1.msra.mxu0 %v204
  %671 = vmatprep.subr.mxu0 0.0
  %672 = vmatpush1.msra.mxu0 %v205
  %673 = vmatprep.subr.mxu0 0.0
  %674 = vmatpush1.msra.mxu0 %v206
  %675 = vmatprep.subr.mxu0 0.0
  %676 = vmatpush1.msra.mxu0 %v207
  %677 = vmatprep.subr.mxu0 0.0
  %678 = vmatpush1.msra.mxu0 %v208
  %679 = vmatprep.subr.mxu0 0.0
  %680 = vmatpush1.msra.mxu0 %v209
  %681 = vmatprep.subr.mxu0 0.0
  %682 = vmatpush1.msra.mxu0 %v210
  %683 = vmatprep.subr.mxu0 0.0
  %684 = vmatpush1.msra.mxu0 %v211
  %685 = vmatprep.subr.mxu0 0.0
  %686 = vmatpush1.msra.mxu0 %v212
  %687 = vmatprep.subr.mxu0 0.0
  %688 = vmatpush1.msra.mxu0 %v213
  %689 = vmatprep.subr.mxu0 0.0
  %690 = vmatpush1.msra.mxu0 %v214
  %691 = vmatprep.subr.mxu0 0.0
  %692 = vmatpush1.msra.mxu0 %v215
  %693 = vmatprep.subr.mxu0 0.0
  %694 = vmatpush1.msra.mxu0 %v216
  %695 = vmatprep.subr.mxu0 0.0
  %696 = vmatpush1.msra.mxu0 %v217
  %697 = vmatprep.subr.mxu0 0.0
  %698 = vmatpush1.msra.mxu0 %v218
  %699 = vmatprep.subr.mxu0 0.0
  %700 = vmatpush1.msra.mxu0 %v219
  %701 = vmatprep.subr.mxu0 0.0
  %702 = vmatpush1.msra.mxu0 0.0
  %703 = vmatprep.subr.mxu0 0.0
  %704 = vmatpush1.msra.mxu0 0.0
  %705 = vmatprep.subr.mxu0 0.0
  %706 = vmatpush1.msra.mxu0 0.0
  %707 = vmatprep.subr.mxu0 0.0
  %708 = vmatpush1.msra.mxu0 0.0
  %709 = vmatprep.subr.mxu0 0.0
  %710 = vmatpush1.msra.mxu0 0.0
  %711 = vmatprep.subr.mxu0 0.0
  %712 = vmatpush1.msra.mxu0 0.0
  %713 = vmatprep.subr.mxu0 0.0
  %714 = vmatpush1.msra.mxu0 0.0
  %715 = vmatprep.subr.mxu0 0.0
  %716 = vmatpush1.msra.mxu0 0.0
  %717 = vmatprep.subr.mxu0 0.0
  %718 = vmatpush1.msra.mxu0 0.0
  %719 = vmatprep.subr.mxu0 0.0
  %720 = vmatpush1.msra.mxu0 0.0
  %721 = vmatprep.subr.mxu0 0.0
  %722 = vmatpush1.msra.mxu0 0.0
  %723 = vmatprep.subr.mxu0 0.0
  %724 = vmatpush1.msra.mxu0 0.0
  %725 = vmatprep.subr.mxu0 0.0
  %726 = vmatpush1.msra.mxu0 0.0
  %727 = vmatprep.subr.mxu0 0.0
  %728 = vmatpush1.msra.mxu0 0.0
  %729 = vmatprep.subr.mxu0 0.0
  %730 = vmatpush1.msra.mxu0 0.0
  %731 = vmatprep.subr.mxu0 0.0
  %732 = vmatpush1.msra.mxu0 0.0
  %733 = vmatprep.mubr.f32.mxu0 0.0
  %734 = vmatmul.mubr.f32.gmra.mrb[0].mxu0 %v172
  %v735 = vpop.f32.mrb[0].mxu0
  %v736 = vadd.f32 0.0, %v735
  %v737 = vpop.f32.mrb[0].mxu0
  %738 = vmatprep.mubr.f32.mxu0 0.0
  %739 = vmatmul.mubr.f32.gmra.mrb[0].mxu0 %v173
  %v740 = vpop.f32.mrb[0].mxu0
  %v741 = vadd.f32 0.0, %v740
  %v742 = vpop.f32.mrb[0].mxu0
  %743 = vmatprep.mubr.f32.mxu0 0.0
  %744 = vmatmul.mubr.f32.gmra.mrb[0].mxu0 %v174
  %v745 = vpop.f32.mrb[0].mxu0
  %v746 = vadd.f32 0.0, %v745
  %v747 = vpop.f32.mrb[0].mxu0
  %748 = vmatprep.mubr.f32.mxu0 0.0
  %749 = vmatmul.mubr.f32.gmra.mrb[0].mxu0 %v175
  %v750 = vpop.f32.mrb[0].mxu0
  %v751 = vadd.f32 0.0, %v750
  %v752 = vpop.f32.mrb[0].mxu0
  %753 = vmatprep.mubr.f32.mxu0 0.0
  %754 = vmatmul.mubr.f32.gmra.mrb[0].mxu0 %v176
  %v755 = vpop.f32.mrb[0].mxu0
  %v756 = vadd.f32 0.0, %v755
  %v757 = vpop.f32.mrb[0].mxu0
  %758 = vmatprep.mubr.f32.mxu0 0.0
  %759 = vmatmul.mubr.f32.gmra.mrb[0].mxu0 %v177
  %v760 = vpop.f32.mrb[0].mxu0
  %v761 = vadd.f32 0.0, %v760
  %v762 = vpop.f32.mrb[0].mxu0
  %763 = vmatprep.mubr.f32.mxu0 0.0
  %764 = vmatmul.mubr.f32.gmra.mrb[0].mxu0 %v178
  %v765 = vpop.f32.mrb[0].mxu0
  %v766 = vadd.f32 0.0, %v765
  %v767 = vpop.f32.mrb[0].mxu0
  %768 = vmatprep.mubr.f32.mxu0 0.0
  %769 = vmatmul.mubr.f32.gmra.mrb[0].mxu0 %v179
  %v770 = vpop.f32.mrb[0].mxu0
  %v771 = vadd.f32 0.0, %v770
  %v772 = vpop.f32.mrb[0].mxu0
  %773 = vmatprep.mubr.f32.mxu0 0.0
  %774 = vmatmul.mubr.f32.gmra.mrb[0].mxu0 %v180
  %v775 = vpop.f32.mrb[0].mxu0
  %v776 = vadd.f32 0.0, %v775
  %v777 = vpop.f32.mrb[0].mxu0
  %778 = vmatprep.mubr.f32.mxu0 0.0
  %779 = vmatmul.mubr.f32.gmra.mrb[0].mxu0 %v181
  %v780 = vpop.f32.mrb[0].mxu0
  %v781 = vadd.f32 0.0, %v780
  %v782 = vpop.f32.mrb[0].mxu0
  %783 = vmatprep.mubr.f32.mxu0 0.0
  %784 = vmatmul.mubr.f32.gmra.mrb[0].mxu0 %v182
  %v785 = vpop.f32.mrb[0].mxu0
  %v786 = vadd.f32 0.0, %v785
  %v787 = vpop.f32.mrb[0].mxu0
  %788 = vmatprep.mubr.f32.mxu0 0.0
  %789 = vmatmul.mubr.f32.gmra.mrb[0].mxu0 %v183
  %v790 = vpop.f32.mrb[0].mxu0
  %v791 = vadd.f32 0.0, %v790
  %v792 = vpop.f32.mrb[0].mxu0
  %793 = vmatprep.mubr.f32.mxu0 0.0
  %794 = vmatmul.mubr.f32.gmra.mrb[0].mxu0 %v184
  %v795 = vpop.f32.mrb[0].mxu0
  %v796 = vadd.f32 0.0, %v795
  %v797 = vpop.f32.mrb[0].mxu0
  %798 = vmatprep.mubr.f32.mxu0 0.0
  %799 = vmatmul.mubr.f32.gmra.mrb[0].mxu0 %v185
  %v800 = vpop.f32.mrb[0].mxu0
  %v801 = vadd.f32 0.0, %v800
  %v802 = vpop.f32.mrb[0].mxu0
  %803 = vmatprep.mubr.f32.mxu0 0.0
  %804 = vmatmul.mubr.f32.gmra.mrb[0].mxu0 %v186
  %v805 = vpop.f32.mrb[0].mxu0
  %v806 = vadd.f32 0.0, %v805
  %v807 = vpop.f32.mrb[0].mxu0
  %808 = vmatprep.mubr.f32.mxu0 0.0
  %809 = vmatmul.mubr.f32.gmra.mrb[0].mxu0 %v187
  %v810 = vpop.f32.mrb[0].mxu0
  %v811 = vadd.f32 0.0, %v810
  %v812 = vpop.f32.mrb[0].mxu0
  %813 = vmatprep.mubr.f32.mxu0 0.0
  %814 = vmatmul.mubr.f32.gmra.mrb[0].mxu0 %v188
  %v815 = vpop.f32.mrb[0].mxu0
  %v816 = vadd.f32 0.0, %v815
  %v817 = vpop.f32.mrb[0].mxu0
  %818 = vmatprep.mubr.f32.mxu0 0.0
  %819 = vmatmul.mubr.f32.gmra.mrb[0].mxu0 %v189
  %v820 = vpop.f32.mrb[0].mxu0
  %v821 = vadd.f32 0.0, %v820
  %v822 = vpop.f32.mrb[0].mxu0
  %823 = vmatprep.mubr.f32.mxu0 0.0
  %824 = vmatmul.mubr.f32.gmra.mrb[0].mxu0 %v190
  %v825 = vpop.f32.mrb[0].mxu0
  %v826 = vadd.f32 0.0, %v825
  %v827 = vpop.f32.mrb[0].mxu0
  %828 = vmatprep.mubr.f32.mxu0 0.0
  %829 = vmatmul.mubr.f32.gmra.mrb[0].mxu0 %v191
  %v830 = vpop.f32.mrb[0].mxu0
  %v831 = vadd.f32 0.0, %v830
  %v832 = vpop.f32.mrb[0].mxu0
  %833 = vmatprep.mubr.f32.mxu0 0.0
  %834 = vmatmul.mubr.f32.gmra.mrb[0].mxu0 %v192
  %v835 = vpop.f32.mrb[0].mxu0
  %v836 = vadd.f32 0.0, %v835
  %v837 = vpop.f32.mrb[0].mxu0
  %838 = vmatprep.mubr.f32.mxu0 0.0
  %839 = vmatmul.mubr.f32.gmra.mrb[0].mxu0 %v193
  %v840 = vpop.f32.mrb[0].mxu0
  %v841 = vadd.f32 0.0, %v840
  %v842 = vpop.f32.mrb[0].mxu0
  %843 = vmatprep.mubr.f32.mxu0 0.0
  %844 = vmatmul.mubr.f32.gmra.mrb[0].mxu0 %v194
  %v845 = vpop.f32.mrb[0].mxu0
  %v846 = vadd.f32 0.0, %v845
  %v847 = vpop.f32.mrb[0].mxu0
  %848 = vmatprep.mubr.f32.mxu0 0.0
  %849 = vmatmul.mubr.f32.gmra.mrb[0].mxu0 %v195
  %v850 = vpop.f32.mrb[0].mxu0
  %v851 = vadd.f32 0.0, %v850
  %v852 = vpop.f32.mrb[0].mxu0
  %853 = vmatprep.mubr.f32.mxu0 0.0
  %854 = vmatmul.mubr.f32.gmra.mrb[0].mxu0 %v196
  %v855 = vpop.f32.mrb[0].mxu0
  %v856 = vadd.f32 0.0, %v855
  %v857 = vpop.f32.mrb[0].mxu0
  %858 = vmatprep.mubr.f32.mxu0 0.0
  %859 = vmatmul.mubr.f32.gmra.mrb[0].mxu0 %v197
  %v860 = vpop.f32.mrb[0].mxu0
  %v861 = vadd.f32 0.0, %v860
  %v862 = vpop.f32.mrb[0].mxu0
  %863 = vmatprep.mubr.f32.mxu0 0.0
  %864 = vmatmul.mubr.f32.gmra.mrb[0].mxu0 %v198
  %v865 = vpop.f32.mrb[0].mxu0
  %v866 = vadd.f32 0.0, %v865
  %v867 = vpop.f32.mrb[0].mxu0
  %868 = vmatprep.mubr.f32.mxu0 0.0
  %869 = vmatmul.mubr.f32.gmra.mrb[0].mxu0 %v199
  %v870 = vpop.f32.mrb[0].mxu0
  %v871 = vadd.f32 0.0, %v870
  %v872 = vpop.f32.mrb[0].mxu0
  %873 = vmatprep.mubr.f32.mxu0 0.0
  %874 = vmatmul.mubr.f32.gmra.mrb[0].mxu0 %v200
  %v875 = vpop.f32.mrb[0].mxu0
  %v876 = vadd.f32 0.0, %v875
  %v877 = vpop.f32.mrb[0].mxu0
  %878 = vmatprep.mubr.f32.mxu0 0.0
  %879 = vmatmul.mubr.f32.gmra.mrb[0].mxu0 %v201
  %v880 = vpop.f32.mrb[0].mxu0
  %v881 = vadd.f32 0.0, %v880
  %v882 = vpop.f32.mrb[0].mxu0
  %883 = vmatprep.mubr.f32.mxu0 0.0
  %884 = vmatmul.mubr.f32.gmra.mrb[0].mxu0 %v202
  %v885 = vpop.f32.mrb[0].mxu0
  %v886 = vadd.f32 0.0, %v885
  %v887 = vpop.f32.mrb[0].mxu0
  %888 = vmatprep.mubr.f32.mxu0 0.0
  %889 = vmatmul.mubr.f32.gmra.mrb[0].mxu0 %v203
  %v890 = vpop.f32.mrb[0].mxu0
  %v891 = vadd.f32 0.0, %v890
  %v892 = vpop.f32.mrb[0].mxu0
  %893 = vdwg.mxu0
  %v894 = vmul.f32 %v736, %v637
  %v895 = vmul.f32 %v741, %v638
  %v896 = vmul.f32 %v746, %v639
  %v897 = vmul.f32 %v751, %v640
  %v898 = vmul.f32 %v756, %v641
  %v899 = vmul.f32 %v761, %v642
  %v900 = vmul.f32 %v766, %v643
  %v901 = vmul.f32 %v771, %v644
  %v902 = vmul.f32 %v776, %v645
  %v903 = vmul.f32 %v781, %v646
  %v904 = vmul.f32 %v786, %v647
  %v905 = vmul.f32 %v791, %v648
  %v906 = vmul.f32 %v796, %v649
  %v907 = vmul.f32 %v801, %v650
  %v908 = vmul.f32 %v806, %v651
  %v909 = vmul.f32 %v811, %v652
  %v910 = vmul.f32 %v816, %v653
  %v911 = vmul.f32 %v821, %v654
  %v912 = vmul.f32 %v826, %v655
  %v913 = vmul.f32 %v831, %v656
  %v914 = vmul.f32 %v836, %v657
  %v915 = vmul.f32 %v841, %v658
  %v916 = vmul.f32 %v846, %v659
  %v917 = vmul.f32 %v851, %v660
  %v918 = vmul.f32 %v856, %v661
  %v919 = vmul.f32 %v861, %v662
  %v920 = vmul.f32 %v866, %v663
  %v921 = vmul.f32 %v871, %v664
  %v922 = vmul.f32 %v876, %v665
  %v923 = vmul.f32 %v881, %v666
  %v924 = vmul.f32 %v886, %v667
  %v925 = vmul.f32 %v891, %v668
  %v926 = vmul.f32 %v413, %v637
  %v927 = vmul.f32 %v414, %v637
  %v928 = vmul.f32 %v415, %v638
  %v929 = vmul.f32 %v416, %v638
  %v930 = vmul.f32 %v417, %v639
  %v931 = vmul.f32 %v418, %v639
  %v932 = vmul.f32 %v419, %v640
  %v933 = vmul.f32 %v420, %v640
  %v934 = vmul.f32 %v421, %v641
  %v935 = vmul.f32 %v422, %v641
  %v936 = vmul.f32 %v423, %v642
  %v937 = vmul.f32 %v424, %v642
  %v938 = vmul.f32 %v425, %v643
  %v939 = vmul.f32 %v426, %v643
  %v940 = vmul.f32 %v427, %v644
  %v941 = vmul.f32 %v428, %v644
  %v942 = vmul.f32 %v429, %v645
  %v943 = vmul.f32 %v430, %v645
  %v944 = vmul.f32 %v431, %v646
  %v945 = vmul.f32 %v432, %v646
  %v946 = vmul.f32 %v433, %v647
  %v947 = vmul.f32 %v434, %v647
  %v948 = vmul.f32 %v435, %v648
  %v949 = vmul.f32 %v436, %v648
  %v950 = vmul.f32 %v437, %v649
  %v951 = vmul.f32 %v438, %v649
  %v952 = vmul.f32 %v439, %v650
  %v953 = vmul.f32 %v440, %v650
  %v954 = vmul.f32 %v441, %v651
  %v955 = vmul.f32 %v442, %v651
  %v956 = vmul.f32 %v443, %v652
  %v957 = vmul.f32 %v444, %v652
  %v958 = vmul.f32 %v445, %v653
  %v959 = vmul.f32 %v446, %v653
  %v960 = vmul.f32 %v447, %v654
  %v961 = vmul.f32 %v448, %v654
  %v962 = vmul.f32 %v449, %v655
  %v963 = vmul.f32 %v450, %v655
  %v964 = vmul.f32 %v451, %v656
  %v965 = vmul.f32 %v452, %v656
  %v966 = vmul.f32 %v453, %v657
  %v967 = vmul.f32 %v454, %v657
  %v968 = vmul.f32 %v455, %v658
  %v969 = vmul.f32 %v456, %v658
  %v970 = vmul.f32 %v457, %v659
  %v971 = vmul.f32 %v458, %v659
  %v972 = vmul.f32 %v459, %v660
  %v973 = vmul.f32 %v460, %v660
  %v974 = vmul.f32 %v461, %v661
  %v975 = vmul.f32 %v462, %v661
  %v976 = vmul.f32 %v463, %v662
  %v977 = vmul.f32 %v464, %v662
  %v978 = vmul.f32 %v465, %v663
  %v979 = vmul.f32 %v466, %v663
  %v980 = vmul.f32 %v467, %v664
  %v981 = vmul.f32 %v468, %v664
  %v982 = vmul.f32 %v469, %v665
  %v983 = vmul.f32 %v470, %v665
  %v984 = vmul.f32 %v471, %v666
  %v985 = vmul.f32 %v472, %v666
  %v986 = vmul.f32 %v473, %v667
  %v987 = vmul.f32 %v474, %v667
  %v988 = vmul.f32 %v475, %v668
  %v989 = vmul.f32 %v476, %v668
  %v991 = vlaneseq
  %v992 = vshrl.u32 %v991, 7
  %v993 = vsub.s32 0, %v992
  %v994 = vrot.slane %v220, %v993
  %996 = vmatprep.subr.mxu0 0.0
  %997 = vmatpush1.msra.mxu0 %v894
  %998 = vmatprep.subr.mxu0 0.0
  %999 = vmatpush1.msra.mxu0 %v895
  %1000 = vmatprep.subr.mxu0 0.0
  %1001 = vmatpush1.msra.mxu0 %v896
  %1002 = vmatprep.subr.mxu0 0.0
  %1003 = vmatpush1.msra.mxu0 %v897
  %1004 = vmatprep.subr.mxu0 0.0
  %1005 = vmatpush1.msra.mxu0 %v898
  %1006 = vmatprep.subr.mxu0 0.0
  %1007 = vmatpush1.msra.mxu0 %v899
  %1008 = vmatprep.subr.mxu0 0.0
  %1009 = vmatpush1.msra.mxu0 %v900
  %1010 = vmatprep.subr.mxu0 0.0
  %1011 = vmatpush1.msra.mxu0 %v901
  %1012 = vmatprep.subr.mxu0 0.0
  %1013 = vmatpush1.msra.mxu0 %v902
  %1014 = vmatprep.subr.mxu0 0.0
  %1015 = vmatpush1.msra.mxu0 %v903
  %1016 = vmatprep.subr.mxu0 0.0
  %1017 = vmatpush1.msra.mxu0 %v904
  %1018 = vmatprep.subr.mxu0 0.0
  %1019 = vmatpush1.msra.mxu0 %v905
  %1020 = vmatprep.subr.mxu0 0.0
  %1021 = vmatpush1.msra.mxu0 %v906
  %1022 = vmatprep.subr.mxu0 0.0
  %1023 = vmatpush1.msra.mxu0 %v907
  %1024 = vmatprep.subr.mxu0 0.0
  %1025 = vmatpush1.msra.mxu0 %v908
  %1026 = vmatprep.subr.mxu0 0.0
  %1027 = vmatpush1.msra.mxu0 %v909
  %1028 = vmatprep.subr.mxu0 0.0
  %1029 = vmatpush1.msra.mxu0 %v910
  %1030 = vmatprep.subr.mxu0 0.0
  %1031 = vmatpush1.msra.mxu0 %v911
  %1032 = vmatprep.subr.mxu0 0.0
  %1033 = vmatpush1.msra.mxu0 %v912
  %1034 = vmatprep.subr.mxu0 0.0
  %1035 = vmatpush1.msra.mxu0 %v913
  %1036 = vmatprep.subr.mxu0 0.0
  %1037 = vmatpush1.msra.mxu0 %v914
  %1038 = vmatprep.subr.mxu0 0.0
  %1039 = vmatpush1.msra.mxu0 %v915
  %1040 = vmatprep.subr.mxu0 0.0
  %1041 = vmatpush1.msra.mxu0 %v916
  %1042 = vmatprep.subr.mxu0 0.0
  %1043 = vmatpush1.msra.mxu0 %v917
  %1044 = vmatprep.subr.mxu0 0.0
  %1045 = vmatpush1.msra.mxu0 %v918
  %1046 = vmatprep.subr.mxu0 0.0
  %1047 = vmatpush1.msra.mxu0 %v919
  %1048 = vmatprep.subr.mxu0 0.0
  %1049 = vmatpush1.msra.mxu0 %v920
  %1050 = vmatprep.subr.mxu0 0.0
  %1051 = vmatpush1.msra.mxu0 %v921
  %1052 = vmatprep.subr.mxu0 0.0
  %1053 = vmatpush1.msra.mxu0 %v922
  %1054 = vmatprep.subr.mxu0 0.0
  %1055 = vmatpush1.msra.mxu0 %v923
  %1056 = vmatprep.subr.mxu0 0.0
  %1057 = vmatpush1.msra.mxu0 %v924
  %1058 = vmatprep.subr.mxu0 0.0
  %1059 = vmatpush1.msra.mxu0 %v925
  %1060 = vmatprep.mubr.f32.mxu0 %v927
  %1061 = vmatmul.mubr.f32.gmra.mrb[0].mxu0 %v926
  %v1062 = vpop.f32.mrb[0].mxu0
  %v1063 = vadd.f32 %v994, %v1062
  %v1064 = vpop.f32.mrb[0].mxu0
  %1065 = vmatprep.mubr.f32.mxu0 %v929
  %1066 = vmatmul.mubr.f32.gmra.mrb[0].mxu0 %v928
  %v1067 = vpop.f32.mrb[0].mxu0
  %v1068 = vadd.f32 %v994, %v1067
  %v1069 = vpop.f32.mrb[0].mxu0
  %1070 = vmatprep.mubr.f32.mxu0 %v931
  %1071 = vmatmul.mubr.f32.gmra.mrb[0].mxu0 %v930
  %v1072 = vpop.f32.mrb[0].mxu0
  %v1073 = vadd.f32 %v994, %v1072
  %v1074 = vpop.f32.mrb[0].mxu0
  %1075 = vmatprep.mubr.f32.mxu0 %v933
  %1076 = vmatmul.mubr.f32.gmra.mrb[0].mxu0 %v932
  %v1077 = vpop.f32.mrb[0].mxu0
  %v1078 = vadd.f32 %v994, %v1077
  %v1079 = vpop.f32.mrb[0].mxu0
  %1080 = vmatprep.mubr.f32.mxu0 %v935
  %1081 = vmatmul.mubr.f32.gmra.mrb[0].mxu0 %v934
  %v1082 = vpop.f32.mrb[0].mxu0
  %v1083 = vadd.f32 %v994, %v1082
  %v1084 = vpop.f32.mrb[0].mxu0
  %1085 = vmatprep.mubr.f32.mxu0 %v937
  %1086 = vmatmul.mubr.f32.gmra.mrb[0].mxu0 %v936
  %v1087 = vpop.f32.mrb[0].mxu0
  %v1088 = vadd.f32 %v994, %v1087
  %v1089 = vpop.f32.mrb[0].mxu0
  %1090 = vmatprep.mubr.f32.mxu0 %v939
  %1091 = vmatmul.mubr.f32.gmra.mrb[0].mxu0 %v938
  %v1092 = vpop.f32.mrb[0].mxu0
  %v1093 = vadd.f32 %v994, %v1092
  %v1094 = vpop.f32.mrb[0].mxu0
  %1095 = vmatprep.mubr.f32.mxu0 %v941
  %1096 = vmatmul.mubr.f32.gmra.mrb[0].mxu0 %v940
  %v1097 = vpop.f32.mrb[0].mxu0
  %v1098 = vadd.f32 %v994, %v1097
  %v1099 = vpop.f32.mrb[0].mxu0
  %1100 = vmatprep.mubr.f32.mxu0 %v943
  %1101 = vmatmul.mubr.f32.gmra.mrb[0].mxu0 %v942
  %v1102 = vpop.f32.mrb[0].mxu0
  %v1103 = vadd.f32 %v994, %v1102
  %v1104 = vpop.f32.mrb[0].mxu0
  %1105 = vmatprep.mubr.f32.mxu0 %v945
  %1106 = vmatmul.mubr.f32.gmra.mrb[0].mxu0 %v944
  %v1107 = vpop.f32.mrb[0].mxu0
  %v1108 = vadd.f32 %v994, %v1107
  %v1109 = vpop.f32.mrb[0].mxu0
  %1110 = vmatprep.mubr.f32.mxu0 %v947
  %1111 = vmatmul.mubr.f32.gmra.mrb[0].mxu0 %v946
  %v1112 = vpop.f32.mrb[0].mxu0
  %v1113 = vadd.f32 %v994, %v1112
  %v1114 = vpop.f32.mrb[0].mxu0
  %1115 = vmatprep.mubr.f32.mxu0 %v949
  %1116 = vmatmul.mubr.f32.gmra.mrb[0].mxu0 %v948
  %v1117 = vpop.f32.mrb[0].mxu0
  %v1118 = vadd.f32 %v994, %v1117
  %v1119 = vpop.f32.mrb[0].mxu0
  %1120 = vmatprep.mubr.f32.mxu0 %v951
  %1121 = vmatmul.mubr.f32.gmra.mrb[0].mxu0 %v950
  %v1122 = vpop.f32.mrb[0].mxu0
  %v1123 = vadd.f32 %v994, %v1122
  %v1124 = vpop.f32.mrb[0].mxu0
  %1125 = vmatprep.mubr.f32.mxu0 %v953
  %1126 = vmatmul.mubr.f32.gmra.mrb[0].mxu0 %v952
  %v1127 = vpop.f32.mrb[0].mxu0
  %v1128 = vadd.f32 %v994, %v1127
  %v1129 = vpop.f32.mrb[0].mxu0
  %1130 = vmatprep.mubr.f32.mxu0 %v955
  %1131 = vmatmul.mubr.f32.gmra.mrb[0].mxu0 %v954
  %v1132 = vpop.f32.mrb[0].mxu0
  %v1133 = vadd.f32 %v994, %v1132
  %v1134 = vpop.f32.mrb[0].mxu0
  %1135 = vmatprep.mubr.f32.mxu0 %v957
  %1136 = vmatmul.mubr.f32.gmra.mrb[0].mxu0 %v956
  %v1137 = vpop.f32.mrb[0].mxu0
  %v1138 = vadd.f32 %v994, %v1137
  %v1139 = vpop.f32.mrb[0].mxu0
  %1140 = vmatprep.mubr.f32.mxu0 %v959
  %1141 = vmatmul.mubr.f32.gmra.mrb[0].mxu0 %v958
  %v1142 = vpop.f32.mrb[0].mxu0
  %v1143 = vadd.f32 %v994, %v1142
  %v1144 = vpop.f32.mrb[0].mxu0
  %1145 = vmatprep.mubr.f32.mxu0 %v961
  %1146 = vmatmul.mubr.f32.gmra.mrb[0].mxu0 %v960
  %v1147 = vpop.f32.mrb[0].mxu0
  %v1148 = vadd.f32 %v994, %v1147
  %v1149 = vpop.f32.mrb[0].mxu0
  %1150 = vmatprep.mubr.f32.mxu0 %v963
  %1151 = vmatmul.mubr.f32.gmra.mrb[0].mxu0 %v962
  %v1152 = vpop.f32.mrb[0].mxu0
  %v1153 = vadd.f32 %v994, %v1152
  %v1154 = vpop.f32.mrb[0].mxu0
  %1155 = vmatprep.mubr.f32.mxu0 %v965
  %1156 = vmatmul.mubr.f32.gmra.mrb[0].mxu0 %v964
  %v1157 = vpop.f32.mrb[0].mxu0
  %v1158 = vadd.f32 %v994, %v1157
  %v1159 = vpop.f32.mrb[0].mxu0
  %1160 = vmatprep.mubr.f32.mxu0 %v967
  %1161 = vmatmul.mubr.f32.gmra.mrb[0].mxu0 %v966
  %v1162 = vpop.f32.mrb[0].mxu0
  %v1163 = vadd.f32 %v994, %v1162
  %v1164 = vpop.f32.mrb[0].mxu0
  %1165 = vmatprep.mubr.f32.mxu0 %v969
  %1166 = vmatmul.mubr.f32.gmra.mrb[0].mxu0 %v968
  %v1167 = vpop.f32.mrb[0].mxu0
  %v1168 = vadd.f32 %v994, %v1167
  %v1169 = vpop.f32.mrb[0].mxu0
  %1170 = vmatprep.mubr.f32.mxu0 %v971
  %1171 = vmatmul.mubr.f32.gmra.mrb[0].mxu0 %v970
  %v1172 = vpop.f32.mrb[0].mxu0
  %v1173 = vadd.f32 %v994, %v1172
  %v1174 = vpop.f32.mrb[0].mxu0
  %1175 = vmatprep.mubr.f32.mxu0 %v973
  %1176 = vmatmul.mubr.f32.gmra.mrb[0].mxu0 %v972
  %v1177 = vpop.f32.mrb[0].mxu0
  %v1178 = vadd.f32 %v994, %v1177
  %v1179 = vpop.f32.mrb[0].mxu0
  %1180 = vmatprep.mubr.f32.mxu0 %v975
  %1181 = vmatmul.mubr.f32.gmra.mrb[0].mxu0 %v974
  %v1182 = vpop.f32.mrb[0].mxu0
  %v1183 = vadd.f32 %v994, %v1182
  %v1184 = vpop.f32.mrb[0].mxu0
  %1185 = vmatprep.mubr.f32.mxu0 %v977
  %1186 = vmatmul.mubr.f32.gmra.mrb[0].mxu0 %v976
  %v1187 = vpop.f32.mrb[0].mxu0
  %v1188 = vadd.f32 %v994, %v1187
  %v1189 = vpop.f32.mrb[0].mxu0
  %1190 = vmatprep.mubr.f32.mxu0 %v979
  %1191 = vmatmul.mubr.f32.gmra.mrb[0].mxu0 %v978
  %v1192 = vpop.f32.mrb[0].mxu0
  %v1193 = vadd.f32 %v994, %v1192
  %v1194 = vpop.f32.mrb[0].mxu0
  %1195 = vmatprep.mubr.f32.mxu0 %v981
  %1196 = vmatmul.mubr.f32.gmra.mrb[0].mxu0 %v980
  %v1197 = vpop.f32.mrb[0].mxu0
  %v1198 = vadd.f32 %v994, %v1197
  %v1199 = vpop.f32.mrb[0].mxu0
  %1200 = vmatprep.mubr.f32.mxu0 %v983
  %1201 = vmatmul.mubr.f32.gmra.mrb[0].mxu0 %v982
  %v1202 = vpop.f32.mrb[0].mxu0
  %v1203 = vadd.f32 %v994, %v1202
  %v1204 = vpop.f32.mrb[0].mxu0
  %1205 = vmatprep.mubr.f32.mxu0 %v985
  %1206 = vmatmul.mubr.f32.gmra.mrb[0].mxu0 %v984
  %v1207 = vpop.f32.mrb[0].mxu0
  %v1208 = vadd.f32 %v994, %v1207
  %v1209 = vpop.f32.mrb[0].mxu0
  %1210 = vmatprep.mubr.f32.mxu0 %v987
  %1211 = vmatmul.mubr.f32.gmra.mrb[0].mxu0 %v986
  %v1212 = vpop.f32.mrb[0].mxu0
  %v1213 = vadd.f32 %v994, %v1212
  %v1214 = vpop.f32.mrb[0].mxu0
  %1215 = vmatprep.mubr.f32.mxu0 %v989
  %1216 = vmatmul.mubr.f32.gmra.mrb[0].mxu0 %v988
  %v1217 = vpop.f32.mrb[0].mxu0
  %v1218 = vadd.f32 %v994, %v1217
  %v1219 = vpop.f32.mrb[0].mxu0
  %1220 = vdwg.mxu0
  %v1221 = vmax.f32 %v1063, 0.0
  %v1222 = vmax.f32 %v1068, 0.0
  %v1223 = vmax.f32 %v1073, 0.0
  %v1224 = vmax.f32 %v1078, 0.0
  %v1225 = vmax.f32 %v1083, 0.0
  %v1226 = vmax.f32 %v1088, 0.0
  %v1227 = vmax.f32 %v1093, 0.0
  %v1228 = vmax.f32 %v1098, 0.0
  %v1229 = vmax.f32 %v1103, 0.0
  %v1230 = vmax.f32 %v1108, 0.0
  %v1231 = vmax.f32 %v1113, 0.0
  %v1232 = vmax.f32 %v1118, 0.0
  %v1233 = vmax.f32 %v1123, 0.0
  %v1234 = vmax.f32 %v1128, 0.0
  %v1235 = vmax.f32 %v1133, 0.0
  %v1236 = vmax.f32 %v1138, 0.0
  %v1237 = vmax.f32 %v1143, 0.0
  %v1238 = vmax.f32 %v1148, 0.0
  %v1239 = vmax.f32 %v1153, 0.0
  %v1240 = vmax.f32 %v1158, 0.0
  %v1241 = vmax.f32 %v1163, 0.0
  %v1242 = vmax.f32 %v1168, 0.0
  %v1243 = vmax.f32 %v1173, 0.0
  %v1244 = vmax.f32 %v1178, 0.0
  %v1245 = vmax.f32 %v1183, 0.0
  %v1246 = vmax.f32 %v1188, 0.0
  %v1247 = vmax.f32 %v1193, 0.0
  %v1248 = vmax.f32 %v1198, 0.0
  %v1249 = vmax.f32 %v1203, 0.0
  %v1250 = vmax.f32 %v1208, 0.0
  %v1251 = vmax.f32 %v1213, 0.0
  %v1252 = vmax.f32 %v1218, 0.0
  %v1253 = vld [vmem:[%s7] sm:$0xff]
  %v1254 = vld [vmem:[%s7 + $0x8] sm:$0xff]
  %v1255 = vld [vmem:[%s7 + $0x10] sm:$0xff]
  %v1256 = vld [vmem:[%s7 + $0x18] sm:$0xff]
  %v1257 = vld [vmem:[%s7 + $0x20] sm:$0xff]
  %v1258 = vld [vmem:[%s7 + $0x28] sm:$0xff]
  %v1259 = vld [vmem:[%s7 + $0x30] sm:$0xff]
  %v1260 = vld [vmem:[%s7 + $0x38] sm:$0xff]
  %v1261 = vld [vmem:[%s7 + $0x40] sm:$0xff]
  %v1262 = vld [vmem:[%s7 + $0x48] sm:$0xff]
  %v1263 = vld [vmem:[%s7 + $0x50] sm:$0xff]
  %v1264 = vld [vmem:[%s7 + $0x58] sm:$0xff]
  %v1265 = vld [vmem:[%s7 + $0x60] sm:$0xff]
  %v1266 = vld [vmem:[%s7 + $0x68] sm:$0xff]
  %v1267 = vld [vmem:[%s7 + $0x70] sm:$0xff]
  %v1268 = vld [vmem:[%s7 + $0x78] sm:$0xff]
  %v1269 = vld [vmem:[%s7 + $0x80] sm:$0xff]
  %v1270 = vld [vmem:[%s7 + $0x88] sm:$0xff]
  %v1271 = vld [vmem:[%s7 + $0x90] sm:$0xff]
  %v1272 = vld [vmem:[%s7 + $0x98] sm:$0xff]
  %v1273 = vld [vmem:[%s7 + $0xa0] sm:$0xff]
  %v1274 = vld [vmem:[%s7 + $0xa8] sm:$0xff]
  %v1275 = vld [vmem:[%s7 + $0xb0] sm:$0xff]
  %v1276 = vld [vmem:[%s7 + $0xb8] sm:$0xff]
  %v1277 = vld [vmem:[%s7 + $0xc0] sm:$0xff]
  %v1278 = vld [vmem:[%s7 + $0xc8] sm:$0xff]
  %v1279 = vld [vmem:[%s7 + $0xd0] sm:$0xff]
  %v1280 = vld [vmem:[%s7 + $0xd8] sm:$0xff]
  %v1281 = vld [vmem:[%s7 + $0xe0] sm:$0xff]
  %v1282 = vld [vmem:[%s7 + $0xe8] sm:$0xff]
  %v1283 = vld [vmem:[%s7 + $0xf0] sm:$0xff]
  %v1284 = vld [vmem:[%s7 + $0xf8] sm:$0xff]
  %1286 = vset.pattern.permute.xlu0 0
  %1287 = vperm.xlu0 %1286, %v1253
  %v1288 = vpop.permute.xlu0 %1287
  %1291 = vset.pattern.permute.xlu0 0
  %1292 = vperm.xlu0 %1291, %v1254
  %v1293 = vpop.permute.xlu0 %1292
  %1296 = vset.pattern.permute.xlu0 0
  %1297 = vperm.xlu0 %1296, %v1255
  %v1298 = vpop.permute.xlu0 %1297
  %1301 = vset.pattern.permute.xlu0 0
  %1302 = vperm.xlu0 %1301, %v1256
  %v1303 = vpop.permute.xlu0 %1302
  %1306 = vset.pattern.permute.xlu0 0
  %1307 = vperm.xlu0 %1306, %v1257
  %v1308 = vpop.permute.xlu0 %1307
  %1311 = vset.pattern.permute.xlu0 0
  %1312 = vperm.xlu0 %1311, %v1258
  %v1313 = vpop.permute.xlu0 %1312
  %1316 = vset.pattern.permute.xlu0 0
  %1317 = vperm.xlu0 %1316, %v1259
  %v1318 = vpop.permute.xlu0 %1317
  %1321 = vset.pattern.permute.xlu0 0
  %1322 = vperm.xlu0 %1321, %v1260
  %v1323 = vpop.permute.xlu0 %1322
  %1326 = vset.pattern.permute.xlu0 0
  %1327 = vperm.xlu0 %1326, %v1261
  %v1328 = vpop.permute.xlu0 %1327
  %1331 = vset.pattern.permute.xlu0 0
  %1332 = vperm.xlu0 %1331, %v1262
  %v1333 = vpop.permute.xlu0 %1332
  %1336 = vset.pattern.permute.xlu0 0
  %1337 = vperm.xlu0 %1336, %v1263
  %v1338 = vpop.permute.xlu0 %1337
  %1341 = vset.pattern.permute.xlu0 0
  %1342 = vperm.xlu0 %1341, %v1264
  %v1343 = vpop.permute.xlu0 %1342
  %1346 = vset.pattern.permute.xlu0 0
  %1347 = vperm.xlu0 %1346, %v1265
  %v1348 = vpop.permute.xlu0 %1347
  %1351 = vset.pattern.permute.xlu0 0
  %1352 = vperm.xlu0 %1351, %v1266
  %v1353 = vpop.permute.xlu0 %1352
  %1356 = vset.pattern.permute.xlu0 0
  %1357 = vperm.xlu0 %1356, %v1267
  %v1358 = vpop.permute.xlu0 %1357
  %1361 = vset.pattern.permute.xlu0 0
  %1362 = vperm.xlu0 %1361, %v1268
  %v1363 = vpop.permute.xlu0 %1362
  %1366 = vset.pattern.permute.xlu0 0
  %1367 = vperm.xlu0 %1366, %v1269
  %v1368 = vpop.permute.xlu0 %1367
  %1371 = vset.pattern.permute.xlu0 0
  %1372 = vperm.xlu0 %1371, %v1270
  %v1373 = vpop.permute.xlu0 %1372
  %1376 = vset.pattern.permute.xlu0 0
  %1377 = vperm.xlu0 %1376, %v1271
  %v1378 = vpop.permute.xlu0 %1377
  %1381 = vset.pattern.permute.xlu0 0
  %1382 = vperm.xlu0 %1381, %v1272
  %v1383 = vpop.permute.xlu0 %1382
  %1386 = vset.pattern.permute.xlu0 0
  %1387 = vperm.xlu0 %1386, %v1273
  %v1388 = vpop.permute.xlu0 %1387
  %1391 = vset.pattern.permute.xlu0 0
  %1392 = vperm.xlu0 %1391, %v1274
  %v1393 = vpop.permute.xlu0 %1392
  %1396 = vset.pattern.permute.xlu0 0
  %1397 = vperm.xlu0 %1396, %v1275
  %v1398 = vpop.permute.xlu0 %1397
  %1401 = vset.pattern.permute.xlu0 0
  %1402 = vperm.xlu0 %1401, %v1276
  %v1403 = vpop.permute.xlu0 %1402
  %1406 = vset.pattern.permute.xlu0 0
  %1407 = vperm.xlu0 %1406, %v1277
  %v1408 = vpop.permute.xlu0 %1407
  %1411 = vset.pattern.permute.xlu0 0
  %1412 = vperm.xlu0 %1411, %v1278
  %v1413 = vpop.permute.xlu0 %1412
  %1416 = vset.pattern.permute.xlu0 0
  %1417 = vperm.xlu0 %1416, %v1279
  %v1418 = vpop.permute.xlu0 %1417
  %1421 = vset.pattern.permute.xlu0 0
  %1422 = vperm.xlu0 %1421, %v1280
  %v1423 = vpop.permute.xlu0 %1422
  %1426 = vset.pattern.permute.xlu0 0
  %1427 = vperm.xlu0 %1426, %v1281
  %v1428 = vpop.permute.xlu0 %1427
  %1431 = vset.pattern.permute.xlu0 0
  %1432 = vperm.xlu0 %1431, %v1282
  %v1433 = vpop.permute.xlu0 %1432
  %1436 = vset.pattern.permute.xlu0 0
  %1437 = vperm.xlu0 %1436, %v1283
  %v1438 = vpop.permute.xlu0 %1437
  %1441 = vset.pattern.permute.xlu0 0
  %1442 = vperm.xlu0 %1441, %v1284
  %v1443 = vpop.permute.xlu0 %1442
  %v1445 = vmul.f32 %v44, %v1288
  %v1446 = vmul.f32 %v45, %v1288
  %v1447 = vmul.f32 %v46, %v1293
  %v1448 = vmul.f32 %v47, %v1293
  %v1449 = vmul.f32 %v48, %v1298
  %v1450 = vmul.f32 %v49, %v1298
  %v1451 = vmul.f32 %v50, %v1303
  %v1452 = vmul.f32 %v51, %v1303
  %v1453 = vmul.f32 %v52, %v1308
  %v1454 = vmul.f32 %v53, %v1308
  %v1455 = vmul.f32 %v54, %v1313
  %v1456 = vmul.f32 %v55, %v1313
  %v1457 = vmul.f32 %v56, %v1318
  %v1458 = vmul.f32 %v57, %v1318
  %v1459 = vmul.f32 %v58, %v1323
  %v1460 = vmul.f32 %v59, %v1323
  %v1461 = vmul.f32 %v60, %v1328
  %v1462 = vmul.f32 %v61, %v1328
  %v1463 = vmul.f32 %v62, %v1333
  %v1464 = vmul.f32 %v63, %v1333
  %v1465 = vmul.f32 %v64, %v1338
  %v1466 = vmul.f32 %v65, %v1338
  %v1467 = vmul.f32 %v66, %v1343
  %v1468 = vmul.f32 %v67, %v1343
  %v1469 = vmul.f32 %v68, %v1348
  %v1470 = vmul.f32 %v69, %v1348
  %v1471 = vmul.f32 %v70, %v1353
  %v1472 = vmul.f32 %v71, %v1353
  %v1473 = vmul.f32 %v72, %v1358
  %v1474 = vmul.f32 %v73, %v1358
  %v1475 = vmul.f32 %v74, %v1363
  %v1476 = vmul.f32 %v75, %v1363
  %v1477 = vmul.f32 %v76, %v1368
  %v1478 = vmul.f32 %v77, %v1368
  %v1479 = vmul.f32 %v78, %v1373
  %v1480 = vmul.f32 %v79, %v1373
  %v1481 = vmul.f32 %v80, %v1378
  %v1482 = vmul.f32 %v81, %v1378
  %v1483 = vmul.f32 %v82, %v1383
  %v1484 = vmul.f32 %v83, %v1383
  %v1485 = vmul.f32 %v84, %v1388
  %v1486 = vmul.f32 %v85, %v1388
  %v1487 = vmul.f32 %v86, %v1393
  %v1488 = vmul.f32 %v87, %v1393
  %v1489 = vmul.f32 %v88, %v1398
  %v1490 = vmul.f32 %v89, %v1398
  %v1491 = vmul.f32 %v90, %v1403
  %v1492 = vmul.f32 %v91, %v1403
  %v1493 = vmul.f32 %v92, %v1408
  %v1494 = vmul.f32 %v93, %v1408
  %v1495 = vmul.f32 %v94, %v1413
  %v1496 = vmul.f32 %v95, %v1413
  %v1497 = vmul.f32 %v96, %v1418
  %v1498 = vmul.f32 %v97, %v1418
  %v1499 = vmul.f32 %v98, %v1423
  %v1500 = vmul.f32 %v99, %v1423
  %v1501 = vmul.f32 %v100, %v1428
  %v1502 = vmul.f32 %v101, %v1428
  %v1503 = vmul.f32 %v102, %v1433
  %v1504 = vmul.f32 %v103, %v1433
  %v1505 = vmul.f32 %v104, %v1438
  %v1506 = vmul.f32 %v105, %v1438
  %v1507 = vmul.f32 %v106, %v1443
  %v1508 = vmul.f32 %v107, %v1443
  %v1509 = vld [vmem:[%s8] sm:$0x3]
  %v1511 = vlaneseq
  %v1512 = vshrl.u32 %v1511, 7
  %v1513 = vsub.s32 0, %v1512
  %v1514 = vrot.slane %v1509, %v1513
  %v1515 = vlaneseq
  %v1516 = vshrl.u32 %v1515, 7
  %v1517 = vsub.s32 1, %v1516
  %v1518 = vrot.slane %v1509, %v1517
  %v1521 = vmul.f32 %v1445, %v1514
  %v1522 = vmul.f32 %v1446, %v1518
  %v1523 = vmul.f32 %v1447, %v1514
  %v1524 = vmul.f32 %v1448, %v1518
  %v1525 = vmul.f32 %v1449, %v1514
  %v1526 = vmul.f32 %v1450, %v1518
  %v1527 = vmul.f32 %v1451, %v1514
  %v1528 = vmul.f32 %v1452, %v1518
  %v1529 = vmul.f32 %v1453, %v1514
  %v1530 = vmul.f32 %v1454, %v1518
  %v1531 = vmul.f32 %v1455, %v1514
  %v1532 = vmul.f32 %v1456, %v1518
  %v1533 = vmul.f32 %v1457, %v1514
  %v1534 = vmul.f32 %v1458, %v1518
  %v1535 = vmul.f32 %v1459, %v1514
  %v1536 = vmul.f32 %v1460, %v1518
  %v1537 = vmul.f32 %v1461, %v1514
  %v1538 = vmul.f32 %v1462, %v1518
  %v1539 = vmul.f32 %v1463, %v1514
  %v1540 = vmul.f32 %v1464, %v1518
  %v1541 = vmul.f32 %v1465, %v1514
  %v1542 = vmul.f32 %v1466, %v1518
  %v1543 = vmul.f32 %v1467, %v1514
  %v1544 = vmul.f32 %v1468, %v1518
  %v1545 = vmul.f32 %v1469, %v1514
  %v1546 = vmul.f32 %v1470, %v1518
  %v1547 = vmul.f32 %v1471, %v1514
  %v1548 = vmul.f32 %v1472, %v1518
  %v1549 = vmul.f32 %v1473, %v1514
  %v1550 = vmul.f32 %v1474, %v1518
  %v1551 = vmul.f32 %v1475, %v1514
  %v1552 = vmul.f32 %v1476, %v1518
  %v1553 = vmul.f32 %v1477, %v1514
  %v1554 = vmul.f32 %v1478, %v1518
  %v1555 = vmul.f32 %v1479, %v1514
  %v1556 = vmul.f32 %v1480, %v1518
  %v1557 = vmul.f32 %v1481, %v1514
  %v1558 = vmul.f32 %v1482, %v1518
  %v1559 = vmul.f32 %v1483, %v1514
  %v1560 = vmul.f32 %v1484, %v1518
  %v1561 = vmul.f32 %v1485, %v1514
  %v1562 = vmul.f32 %v1486, %v1518
  %v1563 = vmul.f32 %v1487, %v1514
  %v1564 = vmul.f32 %v1488, %v1518
  %v1565 = vmul.f32 %v1489, %v1514
  %v1566 = vmul.f32 %v1490, %v1518
  %v1567 = vmul.f32 %v1491, %v1514
  %v1568 = vmul.f32 %v1492, %v1518
  %v1569 = vmul.f32 %v1493, %v1514
  %v1570 = vmul.f32 %v1494, %v1518
  %v1571 = vmul.f32 %v1495, %v1514
  %v1572 = vmul.f32 %v1496, %v1518
  %v1573 = vmul.f32 %v1497, %v1514
  %v1574 = vmul.f32 %v1498, %v1518
  %v1575 = vmul.f32 %v1499, %v1514
  %v1576 = vmul.f32 %v1500, %v1518
  %v1577 = vmul.f32 %v1501, %v1514
  %v1578 = vmul.f32 %v1502, %v1518
  %v1579 = vmul.f32 %v1503, %v1514
  %v1580 = vmul.f32 %v1504, %v1518
  %v1581 = vmul.f32 %v1505, %v1514
  %v1582 = vmul.f32 %v1506, %v1518
  %v1583 = vmul.f32 %v1507, %v1514
  %v1584 = vmul.f32 %v1508, %v1518
  %v1585 = vld [vmem:[%s5] sm:$0xff]
  %v1586 = vld [vmem:[%s5 + $0x8] sm:$0xff]
  %v1587 = vld [vmem:[%s5 + $0x10] sm:$0xff]
  %v1588 = vld [vmem:[%s5 + $0x18] sm:$0xff]
  %v1589 = vld [vmem:[%s5 + $0x20] sm:$0xff]
  %v1590 = vld [vmem:[%s5 + $0x28] sm:$0xff]
  %v1591 = vld [vmem:[%s5 + $0x30] sm:$0xff]
  %v1592 = vld [vmem:[%s5 + $0x38] sm:$0xff]
  %v1593 = vld [vmem:[%s5 + $0x40] sm:$0xff]
  %v1594 = vld [vmem:[%s5 + $0x48] sm:$0xff]
  %v1595 = vld [vmem:[%s5 + $0x50] sm:$0xff]
  %v1596 = vld [vmem:[%s5 + $0x58] sm:$0xff]
  %v1597 = vld [vmem:[%s5 + $0x60] sm:$0xff]
  %v1598 = vld [vmem:[%s5 + $0x68] sm:$0xff]
  %v1599 = vld [vmem:[%s5 + $0x70] sm:$0xff]
  %v1600 = vld [vmem:[%s5 + $0x78] sm:$0xff]
  %v1601 = vld [vmem:[%s6] sm:$0x1]
  %vm1602 = vcmp.eq.f32.partialorder %v1521, 0.0
  %vm1603 = vcmp.eq.f32.partialorder %v1522, 0.0
  %vm1604 = vcmp.eq.f32.partialorder %v1523, 0.0
  %vm1605 = vcmp.eq.f32.partialorder %v1524, 0.0
  %vm1606 = vcmp.eq.f32.partialorder %v1525, 0.0
  %vm1607 = vcmp.eq.f32.partialorder %v1526, 0.0
  %vm1608 = vcmp.eq.f32.partialorder %v1527, 0.0
  %vm1609 = vcmp.eq.f32.partialorder %v1528, 0.0
  %vm1610 = vcmp.eq.f32.partialorder %v1529, 0.0
  %vm1611 = vcmp.eq.f32.partialorder %v1530, 0.0
  %vm1612 = vcmp.eq.f32.partialorder %v1531, 0.0
  %vm1613 = vcmp.eq.f32.partialorder %v1532, 0.0
  %vm1614 = vcmp.eq.f32.partialorder %v1533, 0.0
  %vm1615 = vcmp.eq.f32.partialorder %v1534, 0.0
  %vm1616 = vcmp.eq.f32.partialorder %v1535, 0.0
  %vm1617 = vcmp.eq.f32.partialorder %v1536, 0.0
  %vm1618 = vcmp.eq.f32.partialorder %v1537, 0.0
  %vm1619 = vcmp.eq.f32.partialorder %v1538, 0.0
  %vm1620 = vcmp.eq.f32.partialorder %v1539, 0.0
  %vm1621 = vcmp.eq.f32.partialorder %v1540, 0.0
  %vm1622 = vcmp.eq.f32.partialorder %v1541, 0.0
  %vm1623 = vcmp.eq.f32.partialorder %v1542, 0.0
  %vm1624 = vcmp.eq.f32.partialorder %v1543, 0.0
  %vm1625 = vcmp.eq.f32.partialorder %v1544, 0.0
  %vm1626 = vcmp.eq.f32.partialorder %v1545, 0.0
  %vm1627 = vcmp.eq.f32.partialorder %v1546, 0.0
  %vm1628 = vcmp.eq.f32.partialorder %v1547, 0.0
  %vm1629 = vcmp.eq.f32.partialorder %v1548, 0.0
  %vm1630 = vcmp.eq.f32.partialorder %v1549, 0.0
  %vm1631 = vcmp.eq.f32.partialorder %v1550, 0.0
  %vm1632 = vcmp.eq.f32.partialorder %v1551, 0.0
  %vm1633 = vcmp.eq.f32.partialorder %v1552, 0.0
  %vm1634 = vcmp.eq.f32.partialorder %v1553, 0.0
  %vm1635 = vcmp.eq.f32.partialorder %v1554, 0.0
  %vm1636 = vcmp.eq.f32.partialorder %v1555, 0.0
  %vm1637 = vcmp.eq.f32.partialorder %v1556, 0.0
  %vm1638 = vcmp.eq.f32.partialorder %v1557, 0.0
  %vm1639 = vcmp.eq.f32.partialorder %v1558, 0.0
  %vm1640 = vcmp.eq.f32.partialorder %v1559, 0.0
  %vm1641 = vcmp.eq.f32.partialorder %v1560, 0.0
  %vm1642 = vcmp.eq.f32.partialorder %v1561, 0.0
  %vm1643 = vcmp.eq.f32.partialorder %v1562, 0.0
  %vm1644 = vcmp.eq.f32.partialorder %v1563, 0.0
  %vm1645 = vcmp.eq.f32.partialorder %v1564, 0.0
  %vm1646 = vcmp.eq.f32.partialorder %v1565, 0.0
  %vm1647 = vcmp.eq.f32.partialorder %v1566, 0.0
  %vm1648 = vcmp.eq.f32.partialorder %v1567, 0.0
  %vm1649 = vcmp.eq.f32.partialorder %v1568, 0.0
  %vm1650 = vcmp.eq.f32.partialorder %v1569, 0.0
  %vm1651 = vcmp.eq.f32.partialorder %v1570, 0.0
  %vm1652 = vcmp.eq.f32.partialorder %v1571, 0.0
  %vm1653 = vcmp.eq.f32.partialorder %v1572, 0.0
  %vm1654 = vcmp.eq.f32.partialorder %v1573, 0.0
  %vm1655 = vcmp.eq.f32.partialorder %v1574, 0.0
  %vm1656 = vcmp.eq.f32.partialorder %v1575, 0.0
  %vm1657 = vcmp.eq.f32.partialorder %v1576, 0.0
  %vm1658 = vcmp.eq.f32.partialorder %v1577, 0.0
  %vm1659 = vcmp.eq.f32.partialorder %v1578, 0.0
  %vm1660 = vcmp.eq.f32.partialorder %v1579, 0.0
  %vm1661 = vcmp.eq.f32.partialorder %v1580, 0.0
  %vm1662 = vcmp.eq.f32.partialorder %v1581, 0.0
  %vm1663 = vcmp.eq.f32.partialorder %v1582, 0.0
  %vm1664 = vcmp.eq.f32.partialorder %v1583, 0.0
  %vm1665 = vcmp.eq.f32.partialorder %v1584, 0.0
  %vm1666 = vmand %vm221, %vm1602
  %vm1667 = vmand %vm222, %vm1603
  %vm1668 = vmand %vm223, %vm1604
  %vm1669 = vmand %vm224, %vm1605
  %vm1670 = vmand %vm225, %vm1606
  %vm1671 = vmand %vm226, %vm1607
  %vm1672 = vmand %vm227, %vm1608
  %vm1673 = vmand %vm228, %vm1609
  %vm1674 = vmand %vm229, %vm1610
  %vm1675 = vmand %vm230, %vm1611
  %vm1676 = vmand %vm231, %vm1612
  %vm1677 = vmand %vm232, %vm1613
  %vm1678 = vmand %vm233, %vm1614
  %vm1679 = vmand %vm234, %vm1615
  %vm1680 = vmand %vm235, %vm1616
  %vm1681 = vmand %vm236, %vm1617
  %vm1682 = vmand %vm237, %vm1618
  %vm1683 = vmand %vm238, %vm1619
  %vm1684 = vmand %vm239, %vm1620
  %vm1685 = vmand %vm240, %vm1621
  %vm1686 = vmand %vm241, %vm1622
  %vm1687 = vmand %vm242, %vm1623
  %vm1688 = vmand %vm243, %vm1624
  %vm1689 = vmand %vm244, %vm1625
  %vm1690 = vmand %vm245, %vm1626
  %vm1691 = vmand %vm246, %vm1627
  %vm1692 = vmand %vm247, %vm1628
  %vm1693 = vmand %vm248, %vm1629
  %vm1694 = vmand %vm249, %vm1630
  %vm1695 = vmand %vm250, %vm1631
  %vm1696 = vmand %vm251, %vm1632
  %vm1697 = vmand %vm252, %vm1633
  %vm1698 = vmand %vm253, %vm1634
  %vm1699 = vmand %vm254, %vm1635
  %vm1700 = vmand %vm255, %vm1636
  %vm1701 = vmand %vm256, %vm1637
  %vm1702 = vmand %vm257, %vm1638
  %vm1703 = vmand %vm258, %vm1639
  %vm1704 = vmand %vm259, %vm1640
  %vm1705 = vmand %vm260, %vm1641
  %vm1706 = vmand %vm261, %vm1642
  %vm1707 = vmand %vm262, %vm1643
  %vm1708 = vmand %vm263, %vm1644
  %vm1709 = vmand %vm264, %vm1645
  %vm1710 = vmand %vm265, %vm1646
  %vm1711 = vmand %vm266, %vm1647
  %vm1712 = vmand %vm267, %vm1648
  %vm1713 = vmand %vm268, %vm1649
  %vm1714 = vmand %vm269, %vm1650
  %vm1715 = vmand %vm270, %vm1651
  %vm1716 = vmand %vm271, %vm1652
  %vm1717 = vmand %vm272, %vm1653
  %vm1718 = vmand %vm273, %vm1654
  %vm1719 = vmand %vm274, %vm1655
  %vm1720 = vmand %vm275, %vm1656
  %vm1721 = vmand %vm276, %vm1657
  %vm1722 = vmand %vm277, %vm1658
  %vm1723 = vmand %vm278, %vm1659
  %vm1724 = vmand %vm279, %vm1660
  %vm1725 = vmand %vm280, %vm1661
  %vm1726 = vmand %vm281, %vm1662
  %vm1727 = vmand %vm282, %vm1663
  %vm1728 = vmand %vm283, %vm1664
  %vm1729 = vmand %vm284, %vm1665
  %v1730 = vsel %vm1666, 1.0, %v1521
  %v1731 = vsel %vm1667, 1.0, %v1522
  %v1732 = vsel %vm1668, 1.0, %v1523
  %v1733 = vsel %vm1669, 1.0, %v1524
  %v1734 = vsel %vm1670, 1.0, %v1525
  %v1735 = vsel %vm1671, 1.0, %v1526
  %v1736 = vsel %vm1672, 1.0, %v1527
  %v1737 = vsel %vm1673, 1.0, %v1528
  %v1738 = vsel %vm1674, 1.0, %v1529
  %v1739 = vsel %vm1675, 1.0, %v1530
  %v1740 = vsel %vm1676, 1.0, %v1531
  %v1741 = vsel %vm1677, 1.0, %v1532
  %v1742 = vsel %vm1678, 1.0, %v1533
  %v1743 = vsel %vm1679, 1.0, %v1534
  %v1744 = vsel %vm1680, 1.0, %v1535
  %v1745 = vsel %vm1681, 1.0, %v1536
  %v1746 = vsel %vm1682, 1.0, %v1537
  %v1747 = vsel %vm1683, 1.0, %v1538
  %v1748 = vsel %vm1684, 1.0, %v1539
  %v1749 = vsel %vm1685, 1.0, %v1540
  %v1750 = vsel %vm1686, 1.0, %v1541
  %v1751 = vsel %vm1687, 1.0, %v1542
  %v1752 = vsel %vm1688, 1.0, %v1543
  %v1753 = vsel %vm1689, 1.0, %v1544
  %v1754 = vsel %vm1690, 1.0, %v1545
  %v1755 = vsel %vm1691, 1.0, %v1546
  %v1756 = vsel %vm1692, 1.0, %v1547
  %v1757 = vsel %vm1693, 1.0, %v1548
  %v1758 = vsel %vm1694, 1.0, %v1549
  %v1759 = vsel %vm1695, 1.0, %v1550
  %v1760 = vsel %vm1696, 1.0, %v1551
  %v1761 = vsel %vm1697, 1.0, %v1552
  %v1762 = vsel %vm1698, 1.0, %v1553
  %v1763 = vsel %vm1699, 1.0, %v1554
  %v1764 = vsel %vm1700, 1.0, %v1555
  %v1765 = vsel %vm1701, 1.0, %v1556
  %v1766 = vsel %vm1702, 1.0, %v1557
  %v1767 = vsel %vm1703, 1.0, %v1558
  %v1768 = vsel %vm1704, 1.0, %v1559
  %v1769 = vsel %vm1705, 1.0, %v1560
  %v1770 = vsel %vm1706, 1.0, %v1561
  %v1771 = vsel %vm1707, 1.0, %v1562
  %v1772 = vsel %vm1708, 1.0, %v1563
  %v1773 = vsel %vm1709, 1.0, %v1564
  %v1774 = vsel %vm1710, 1.0, %v1565
  %v1775 = vsel %vm1711, 1.0, %v1566
  %v1776 = vsel %vm1712, 1.0, %v1567
  %v1777 = vsel %vm1713, 1.0, %v1568
  %v1778 = vsel %vm1714, 1.0, %v1569
  %v1779 = vsel %vm1715, 1.0, %v1570
  %v1780 = vsel %vm1716, 1.0, %v1571
  %v1781 = vsel %vm1717, 1.0, %v1572
  %v1782 = vsel %vm1718, 1.0, %v1573
  %v1783 = vsel %vm1719, 1.0, %v1574
  %v1784 = vsel %vm1720, 1.0, %v1575
  %v1785 = vsel %vm1721, 1.0, %v1576
  %v1786 = vsel %vm1722, 1.0, %v1577
  %v1787 = vsel %vm1723, 1.0, %v1578
  %v1788 = vsel %vm1724, 1.0, %v1579
  %v1789 = vsel %vm1725, 1.0, %v1580
  %v1790 = vsel %vm1726, 1.0, %v1581
  %v1791 = vsel %vm1727, 1.0, %v1582
  %v1792 = vsel %vm1728, 1.0, %v1583
  %v1793 = vsel %vm1729, 1.0, %v1584
  %v1794 = vadd.f32 %v1730, %v1731
  %1795 = vadd.xlane.f32.xlu0 %v1794
  %v1796 = vpop.xlane.xlu0 %1795
  %v1797 = vadd.f32 %v1732, %v1733
  %1798 = vadd.xlane.f32.xlu0 %v1797
  %v1799 = vpop.xlane.xlu0 %1798
  %v1800 = vadd.f32 %v1734, %v1735
  %1801 = vadd.xlane.f32.xlu0 %v1800
  %v1802 = vpop.xlane.xlu0 %1801
  %v1803 = vadd.f32 %v1736, %v1737
  %1804 = vadd.xlane.f32.xlu0 %v1803
  %v1805 = vpop.xlane.xlu0 %1804
  %v1806 = vadd.f32 %v1738, %v1739
  %1807 = vadd.xlane.f32.xlu0 %v1806
  %v1808 = vpop.xlane.xlu0 %1807
  %v1809 = vadd.f32 %v1740, %v1741
  %1810 = vadd.xlane.f32.xlu0 %v1809
  %v1811 = vpop.xlane.xlu0 %1810
  %v1812 = vadd.f32 %v1742, %v1743
  %1813 = vadd.xlane.f32.xlu0 %v1812
  %v1814 = vpop.xlane.xlu0 %1813
  %v1815 = vadd.f32 %v1744, %v1745
  %1816 = vadd.xlane.f32.xlu0 %v1815
  %v1817 = vpop.xlane.xlu0 %1816
  %v1818 = vadd.f32 %v1746, %v1747
  %1819 = vadd.xlane.f32.xlu0 %v1818
  %v1820 = vpop.xlane.xlu0 %1819
  %v1821 = vadd.f32 %v1748, %v1749
  %1822 = vadd.xlane.f32.xlu0 %v1821
  %v1823 = vpop.xlane.xlu0 %1822
  %v1824 = vadd.f32 %v1750, %v1751
  %1825 = vadd.xlane.f32.xlu0 %v1824
  %v1826 = vpop.xlane.xlu0 %1825
  %v1827 = vadd.f32 %v1752, %v1753
  %1828 = vadd.xlane.f32.xlu0 %v1827
  %v1829 = vpop.xlane.xlu0 %1828
  %v1830 = vadd.f32 %v1754, %v1755
  %1831 = vadd.xlane.f32.xlu0 %v1830
  %v1832 = vpop.xlane.xlu0 %1831
  %v1833 = vadd.f32 %v1756, %v1757
  %1834 = vadd.xlane.f32.xlu0 %v1833
  %v1835 = vpop.xlane.xlu0 %1834
  %v1836 = vadd.f32 %v1758, %v1759
  %1837 = vadd.xlane.f32.xlu0 %v1836
  %v1838 = vpop.xlane.xlu0 %1837
  %v1839 = vadd.f32 %v1760, %v1761
  %1840 = vadd.xlane.f32.xlu0 %v1839
  %v1841 = vpop.xlane.xlu0 %1840
  %v1842 = vadd.f32 %v1762, %v1763
  %1843 = vadd.xlane.f32.xlu0 %v1842
  %v1844 = vpop.xlane.xlu0 %1843
  %v1845 = vadd.f32 %v1764, %v1765
  %1846 = vadd.xlane.f32.xlu0 %v1845
  %v1847 = vpop.xlane.xlu0 %1846
  %v1848 = vadd.f32 %v1766, %v1767
  %1849 = vadd.xlane.f32.xlu0 %v1848
  %v1850 = vpop.xlane.xlu0 %1849
  %v1851 = vadd.f32 %v1768, %v1769
  %1852 = vadd.xlane.f32.xlu0 %v1851
  %v1853 = vpop.xlane.xlu0 %1852
  %v1854 = vadd.f32 %v1770, %v1771
  %1855 = vadd.xlane.f32.xlu0 %v1854
  %v1856 = vpop.xlane.xlu0 %1855
  %v1857 = vadd.f32 %v1772, %v1773
  %1858 = vadd.xlane.f32.xlu0 %v1857
  %v1859 = vpop.xlane.xlu0 %1858
  %v1860 = vadd.f32 %v1774, %v1775
  %1861 = vadd.xlane.f32.xlu0 %v1860
  %v1862 = vpop.xlane.xlu0 %1861
  %v1863 = vadd.f32 %v1776, %v1777
  %1864 = vadd.xlane.f32.xlu0 %v1863
  %v1865 = vpop.xlane.xlu0 %1864
  %v1866 = vadd.f32 %v1778, %v1779
  %1867 = vadd.xlane.f32.xlu0 %v1866
  %v1868 = vpop.xlane.xlu0 %1867
  %v1869 = vadd.f32 %v1780, %v1781
  %1870 = vadd.xlane.f32.xlu0 %v1869
  %v1871 = vpop.xlane.xlu0 %1870
  %v1872 = vadd.f32 %v1782, %v1783
  %1873 = vadd.xlane.f32.xlu0 %v1872
  %v1874 = vpop.xlane.xlu0 %1873
  %v1875 = vadd.f32 %v1784, %v1785
  %1876 = vadd.xlane.f32.xlu0 %v1875
  %v1877 = vpop.xlane.xlu0 %1876
  %v1878 = vadd.f32 %v1786, %v1787
  %1879 = vadd.xlane.f32.xlu0 %v1878
  %v1880 = vpop.xlane.xlu0 %1879
  %v1881 = vadd.f32 %v1788, %v1789
  %1882 = vadd.xlane.f32.xlu0 %v1881
  %v1883 = vpop.xlane.xlu0 %1882
  %v1884 = vadd.f32 %v1790, %v1791
  %1885 = vadd.xlane.f32.xlu0 %v1884
  %v1886 = vpop.xlane.xlu0 %1885
  %v1887 = vadd.f32 %v1792, %v1793
  %1888 = vadd.xlane.f32.xlu0 %v1887
  %v1889 = vpop.xlane.xlu0 %1888
  %vm1890 = vcmp.gt.f32.partialorder %v1796, 0.0
  %vm1891 = vcmp.gt.f32.partialorder %v1799, 0.0
  %vm1892 = vcmp.gt.f32.partialorder %v1802, 0.0
  %vm1893 = vcmp.gt.f32.partialorder %v1805, 0.0
  %vm1894 = vcmp.gt.f32.partialorder %v1808, 0.0
  %vm1895 = vcmp.gt.f32.partialorder %v1811, 0.0
  %vm1896 = vcmp.gt.f32.partialorder %v1814, 0.0
  %vm1897 = vcmp.gt.f32.partialorder %v1817, 0.0
  %vm1898 = vcmp.gt.f32.partialorder %v1820, 0.0
  %vm1899 = vcmp.gt.f32.partialorder %v1823, 0.0
  %vm1900 = vcmp.gt.f32.partialorder %v1826, 0.0
  %vm1901 = vcmp.gt.f32.partialorder %v1829, 0.0
  %vm1902 = vcmp.gt.f32.partialorder %v1832, 0.0
  %vm1903 = vcmp.gt.f32.partialorder %v1835, 0.0
  %vm1904 = vcmp.gt.f32.partialorder %v1838, 0.0
  %vm1905 = vcmp.gt.f32.partialorder %v1841, 0.0
  %vm1906 = vcmp.gt.f32.partialorder %v1844, 0.0
  %vm1907 = vcmp.gt.f32.partialorder %v1847, 0.0
  %vm1908 = vcmp.gt.f32.partialorder %v1850, 0.0
  %vm1909 = vcmp.gt.f32.partialorder %v1853, 0.0
  %vm1910 = vcmp.gt.f32.partialorder %v1856, 0.0
  %vm1911 = vcmp.gt.f32.partialorder %v1859, 0.0
  %vm1912 = vcmp.gt.f32.partialorder %v1862, 0.0
  %vm1913 = vcmp.gt.f32.partialorder %v1865, 0.0
  %vm1914 = vcmp.gt.f32.partialorder %v1868, 0.0
  %vm1915 = vcmp.gt.f32.partialorder %v1871, 0.0
  %vm1916 = vcmp.gt.f32.partialorder %v1874, 0.0
  %vm1917 = vcmp.gt.f32.partialorder %v1877, 0.0
  %vm1918 = vcmp.gt.f32.partialorder %v1880, 0.0
  %vm1919 = vcmp.gt.f32.partialorder %v1883, 0.0
  %vm1920 = vcmp.gt.f32.partialorder %v1886, 0.0
  %vm1921 = vcmp.gt.f32.partialorder %v1889, 0.0
  %v1922 = vrsqrt.pop %v1796
  %v1923 = vrsqrt.pop %v1799
  %v1924 = vrsqrt.pop %v1802
  %v1925 = vrsqrt.pop %v1805
  %v1926 = vrsqrt.pop %v1808
  %v1927 = vrsqrt.pop %v1811
  %v1928 = vrsqrt.pop %v1814
  %v1929 = vrsqrt.pop %v1817
  %v1930 = vrsqrt.pop %v1820
  %v1931 = vrsqrt.pop %v1823
  %v1932 = vrsqrt.pop %v1826
  %v1933 = vrsqrt.pop %v1829
  %v1934 = vrsqrt.pop %v1832
  %v1935 = vrsqrt.pop %v1835
  %v1936 = vrsqrt.pop %v1838
  %v1937 = vrsqrt.pop %v1841
  %v1938 = vrsqrt.pop %v1844
  %v1939 = vrsqrt.pop %v1847
  %v1940 = vrsqrt.pop %v1850
  %v1941 = vrsqrt.pop %v1853
  %v1942 = vrsqrt.pop %v1856
  %v1943 = vrsqrt.pop %v1859
  %v1944 = vrsqrt.pop %v1862
  %v1945 = vrsqrt.pop %v1865
  %v1946 = vrsqrt.pop %v1868
  %v1947 = vrsqrt.pop %v1871
  %v1948 = vrsqrt.pop %v1874
  %v1949 = vrsqrt.pop %v1877
  %v1950 = vrsqrt.pop %v1880
  %v1951 = vrsqrt.pop %v1883
  %v1952 = vrsqrt.pop %v1886
  %v1953 = vrsqrt.pop %v1889
  %v1954 = vsel %vm1890, %v1922, 0.0
  %v1955 = vsel %vm1891, %v1923, 0.0
  %v1956 = vsel %vm1892, %v1924, 0.0
  %v1957 = vsel %vm1893, %v1925, 0.0
  %v1958 = vsel %vm1894, %v1926, 0.0
  %v1959 = vsel %vm1895, %v1927, 0.0
  %v1960 = vsel %vm1896, %v1928, 0.0
  %v1961 = vsel %vm1897, %v1929, 0.0
  %v1962 = vsel %vm1898, %v1930, 0.0
  %v1963 = vsel %vm1899, %v1931, 0.0
  %v1964 = vsel %vm1900, %v1932, 0.0
  %v1965 = vsel %vm1901, %v1933, 0.0
  %v1966 = vsel %vm1902, %v1934, 0.0
  %v1967 = vsel %vm1903, %v1935, 0.0
  %v1968 = vsel %vm1904, %v1936, 0.0
  %v1969 = vsel %vm1905, %v1937, 0.0
  %v1970 = vsel %vm1906, %v1938, 0.0
  %v1971 = vsel %vm1907, %v1939, 0.0
  %v1972 = vsel %vm1908, %v1940, 0.0
  %v1973 = vsel %vm1909, %v1941, 0.0
  %v1974 = vsel %vm1910, %v1942, 0.0
  %v1975 = vsel %vm1911, %v1943, 0.0
  %v1976 = vsel %vm1912, %v1944, 0.0
  %v1977 = vsel %vm1913, %v1945, 0.0
  %v1978 = vsel %vm1914, %v1946, 0.0
  %v1979 = vsel %vm1915, %v1947, 0.0
  %v1980 = vsel %vm1916, %v1948, 0.0
  %v1981 = vsel %vm1917, %v1949, 0.0
  %v1982 = vsel %vm1918, %v1950, 0.0
  %v1983 = vsel %vm1919, %v1951, 0.0
  %v1984 = vsel %vm1920, %v1952, 0.0
  %v1985 = vsel %vm1921, %v1953, 0.0
  %1986 = vmatprep.subr.mxu0 0.0
  %1987 = vmatpush1.msra.mxu0 %v1585
  %1988 = vmatprep.subr.mxu0 0.0
  %1989 = vmatpush1.msra.mxu0 %v1586
  %1990 = vmatprep.subr.mxu0 0.0
  %1991 = vmatpush1.msra.mxu0 %v1587
  %1992 = vmatprep.subr.mxu0 0.0
  %1993 = vmatpush1.msra.mxu0 %v1588
  %1994 = vmatprep.subr.mxu0 0.0
  %1995 = vmatpush1.msra.mxu0 %v1589
  %1996 = vmatprep.subr.mxu0 0.0
  %1997 = vmatpush1.msra.mxu0 %v1590
  %1998 = vmatprep.subr.mxu0 0.0
  %1999 = vmatpush1.msra.mxu0 %v1591
  %2000 = vmatprep.subr.mxu0 0.0
  %2001 = vmatpush1.msra.mxu0 %v1592
  %2002 = vmatprep.subr.mxu0 0.0
  %2003 = vmatpush1.msra.mxu0 %v1593
  %2004 = vmatprep.subr.mxu0 0.0
  %2005 = vmatpush1.msra.mxu0 %v1594
  %2006 = vmatprep.subr.mxu0 0.0
  %2007 = vmatpush1.msra.mxu0 %v1595
  %2008 = vmatprep.subr.mxu0 0.0
  %2009 = vmatpush1.msra.mxu0 %v1596
  %2010 = vmatprep.subr.mxu0 0.0
  %2011 = vmatpush1.msra.mxu0 %v1597
  %2012 = vmatprep.subr.mxu0 0.0
  %2013 = vmatpush1.msra.mxu0 %v1598
  %2014 = vmatprep.subr.mxu0 0.0
  %2015 = vmatpush1.msra.mxu0 %v1599
  %2016 = vmatprep.subr.mxu0 0.0
  %2017 = vmatpush1.msra.mxu0 %v1600
  %2018 = vmatprep.subr.mxu0 0.0
  %2019 = vmatpush1.msra.mxu0 0.0
  %2020 = vmatprep.subr.mxu0 0.0
  %2021 = vmatpush1.msra.mxu0 0.0
  %2022 = vmatprep.subr.mxu0 0.0
  %2023 = vmatpush1.msra.mxu0 0.0
  %2024 = vmatprep.subr.mxu0 0.0
  %2025 = vmatpush1.msra.mxu0 0.0
  %2026 = vmatprep.subr.mxu0 0.0
  %2027 = vmatpush1.msra.mxu0 0.0
  %2028 = vmatprep.subr.mxu0 0.0
  %2029 = vmatpush1.msra.mxu0 0.0
  %2030 = vmatprep.subr.mxu0 0.0
  %2031 = vmatpush1.msra.mxu0 0.0
  %2032 = vmatprep.subr.mxu0 0.0
  %2033 = vmatpush1.msra.mxu0 0.0
  %2034 = vmatprep.subr.mxu0 0.0
  %2035 = vmatpush1.msra.mxu0 0.0
  %2036 = vmatprep.subr.mxu0 0.0
  %2037 = vmatpush1.msra.mxu0 0.0
  %2038 = vmatprep.subr.mxu0 0.0
  %2039 = vmatpush1.msra.mxu0 0.0
  %2040 = vmatprep.subr.mxu0 0.0
  %2041 = vmatpush1.msra.mxu0 0.0
  %2042 = vmatprep.subr.mxu0 0.0
  %2043 = vmatpush1.msra.mxu0 0.0
  %2044 = vmatprep.subr.mxu0 0.0
  %2045 = vmatpush1.msra.mxu0 0.0
  %2046 = vmatprep.subr.mxu0 0.0
  %2047 = vmatpush1.msra.mxu0 0.0
  %2048 = vmatprep.subr.mxu0 0.0
  %2049 = vmatpush1.msra.mxu0 0.0
  %2050 = vmatprep.mubr.f32.mxu0 0.0
  %2051 = vmatmul.mubr.f32.gmra.mrb[0].mxu0 %v1221
  %v2052 = vpop.f32.mrb[0].mxu0
  %v2053 = vadd.f32 0.0, %v2052
  %v2054 = vpop.f32.mrb[0].mxu0
  %2055 = vmatprep.mubr.f32.mxu0 0.0
  %2056 = vmatmul.mubr.f32.gmra.mrb[0].mxu0 %v1222
  %v2057 = vpop.f32.mrb[0].mxu0
  %v2058 = vadd.f32 0.0, %v2057
  %v2059 = vpop.f32.mrb[0].mxu0
  %2060 = vmatprep.mubr.f32.mxu0 0.0
  %2061 = vmatmul.mubr.f32.gmra.mrb[0].mxu0 %v1223
  %v2062 = vpop.f32.mrb[0].mxu0
  %v2063 = vadd.f32 0.0, %v2062
  %v2064 = vpop.f32.mrb[0].mxu0
  %2065 = vmatprep.mubr.f32.mxu0 0.0
  %2066 = vmatmul.mubr.f32.gmra.mrb[0].mxu0 %v1224
  %v2067 = vpop.f32.mrb[0].mxu0
  %v2068 = vadd.f32 0.0, %v2067
  %v2069 = vpop.f32.mrb[0].mxu0
  %2070 = vmatprep.mubr.f32.mxu0 0.0
  %2071 = vmatmul.mubr.f32.gmra.mrb[0].mxu0 %v1225
  %v2072 = vpop.f32.mrb[0].mxu0
  %v2073 = vadd.f32 0.0, %v2072
  %v2074 = vpop.f32.mrb[0].mxu0
  %2075 = vmatprep.mubr.f32.mxu0 0.0
  %2076 = vmatmul.mubr.f32.gmra.mrb[0].mxu0 %v1226
  %v2077 = vpop.f32.mrb[0].mxu0
  %v2078 = vadd.f32 0.0, %v2077
  %v2079 = vpop.f32.mrb[0].mxu0
  %2080 = vmatprep.mubr.f32.mxu0 0.0
  %2081 = vmatmul.mubr.f32.gmra.mrb[0].mxu0 %v1227
  %v2082 = vpop.f32.mrb[0].mxu0
  %v2083 = vadd.f32 0.0, %v2082
  %v2084 = vpop.f32.mrb[0].mxu0
  %2085 = vmatprep.mubr.f32.mxu0 0.0
  %2086 = vmatmul.mubr.f32.gmra.mrb[0].mxu0 %v1228
  %v2087 = vpop.f32.mrb[0].mxu0
  %v2088 = vadd.f32 0.0, %v2087
  %v2089 = vpop.f32.mrb[0].mxu0
  %2090 = vmatprep.mubr.f32.mxu0 0.0
  %2091 = vmatmul.mubr.f32.gmra.mrb[0].mxu0 %v1229
  %v2092 = vpop.f32.mrb[0].mxu0
  %v2093 = vadd.f32 0.0, %v2092
  %v2094 = vpop.f32.mrb[0].mxu0
  %2095 = vmatprep.mubr.f32.mxu0 0.0
  %2096 = vmatmul.mubr.f32.gmra.mrb[0].mxu0 %v1230
  %v2097 = vpop.f32.mrb[0].mxu0
  %v2098 = vadd.f32 0.0, %v2097
  %v2099 = vpop.f32.mrb[0].mxu0
  %2100 = vmatprep.mubr.f32.mxu0 0.0
  %2101 = vmatmul.mubr.f32.gmra.mrb[0].mxu0 %v1231
  %v2102 = vpop.f32.mrb[0].mxu0
  %v2103 = vadd.f32 0.0, %v2102
  %v2104 = vpop.f32.mrb[0].mxu0
  %2105 = vmatprep.mubr.f32.mxu0 0.0
  %2106 = vmatmul.mubr.f32.gmra.mrb[0].mxu0 %v1232
  %v2107 = vpop.f32.mrb[0].mxu0
  %v2108 = vadd.f32 0.0, %v2107
  %v2109 = vpop.f32.mrb[0].mxu0
  %2110 = vmatprep.mubr.f32.mxu0 0.0
  %2111 = vmatmul.mubr.f32.gmra.mrb[0].mxu0 %v1233
  %v2112 = vpop.f32.mrb[0].mxu0
  %v2113 = vadd.f32 0.0, %v2112
  %v2114 = vpop.f32.mrb[0].mxu0
  %2115 = vmatprep.mubr.f32.mxu0 0.0
  %2116 = vmatmul.mubr.f32.gmra.mrb[0].mxu0 %v1234
  %v2117 = vpop.f32.mrb[0].mxu0
  %v2118 = vadd.f32 0.0, %v2117
  %v2119 = vpop.f32.mrb[0].mxu0
  %2120 = vmatprep.mubr.f32.mxu0 0.0
  %2121 = vmatmul.mubr.f32.gmra.mrb[0].mxu0 %v1235
  %v2122 = vpop.f32.mrb[0].mxu0
  %v2123 = vadd.f32 0.0, %v2122
  %v2124 = vpop.f32.mrb[0].mxu0
  %2125 = vmatprep.mubr.f32.mxu0 0.0
  %2126 = vmatmul.mubr.f32.gmra.mrb[0].mxu0 %v1236
  %v2127 = vpop.f32.mrb[0].mxu0
  %v2128 = vadd.f32 0.0, %v2127
  %v2129 = vpop.f32.mrb[0].mxu0
  %2130 = vmatprep.mubr.f32.mxu0 0.0
  %2131 = vmatmul.mubr.f32.gmra.mrb[0].mxu0 %v1237
  %v2132 = vpop.f32.mrb[0].mxu0
  %v2133 = vadd.f32 0.0, %v2132
  %v2134 = vpop.f32.mrb[0].mxu0
  %2135 = vmatprep.mubr.f32.mxu0 0.0
  %2136 = vmatmul.mubr.f32.gmra.mrb[0].mxu0 %v1238
  %v2137 = vpop.f32.mrb[0].mxu0
  %v2138 = vadd.f32 0.0, %v2137
  %v2139 = vpop.f32.mrb[0].mxu0
  %2140 = vmatprep.mubr.f32.mxu0 0.0
  %2141 = vmatmul.mubr.f32.gmra.mrb[0].mxu0 %v1239
  %v2142 = vpop.f32.mrb[0].mxu0
  %v2143 = vadd.f32 0.0, %v2142
  %v2144 = vpop.f32.mrb[0].mxu0
  %2145 = vmatprep.mubr.f32.mxu0 0.0
  %2146 = vmatmul.mubr.f32.gmra.mrb[0].mxu0 %v1240
  %v2147 = vpop.f32.mrb[0].mxu0
  %v2148 = vadd.f32 0.0, %v2147
  %v2149 = vpop.f32.mrb[0].mxu0
  %2150 = vmatprep.mubr.f32.mxu0 0.0
  %2151 = vmatmul.mubr.f32.gmra.mrb[0].mxu0 %v1241
  %v2152 = vpop.f32.mrb[0].mxu0
  %v2153 = vadd.f32 0.0, %v2152
  %v2154 = vpop.f32.mrb[0].mxu0
  %2155 = vmatprep.mubr.f32.mxu0 0.0
  %2156 = vmatmul.mubr.f32.gmra.mrb[0].mxu0 %v1242
  %v2157 = vpop.f32.mrb[0].mxu0
  %v2158 = vadd.f32 0.0, %v2157
  %v2159 = vpop.f32.mrb[0].mxu0
  %2160 = vmatprep.mubr.f32.mxu0 0.0
  %2161 = vmatmul.mubr.f32.gmra.mrb[0].mxu0 %v1243
  %v2162 = vpop.f32.mrb[0].mxu0
  %v2163 = vadd.f32 0.0, %v2162
  %v2164 = vpop.f32.mrb[0].mxu0
  %2165 = vmatprep.mubr.f32.mxu0 0.0
  %2166 = vmatmul.mubr.f32.gmra.mrb[0].mxu0 %v1244
  %v2167 = vpop.f32.mrb[0].mxu0
  %v2168 = vadd.f32 0.0, %v2167
  %v2169 = vpop.f32.mrb[0].mxu0
  %2170 = vmatprep.mubr.f32.mxu0 0.0
  %2171 = vmatmul.mubr.f32.gmra.mrb[0].mxu0 %v1245
  %v2172 = vpop.f32.mrb[0].mxu0
  %v2173 = vadd.f32 0.0, %v2172
  %v2174 = vpop.f32.mrb[0].mxu0
  %2175 = vmatprep.mubr.f32.mxu0 0.0
  %2176 = vmatmul.mubr.f32.gmra.mrb[0].mxu0 %v1246
  %v2177 = vpop.f32.mrb[0].mxu0
  %v2178 = vadd.f32 0.0, %v2177
  %v2179 = vpop.f32.mrb[0].mxu0
  %2180 = vmatprep.mubr.f32.mxu0 0.0
  %2181 = vmatmul.mubr.f32.gmra.mrb[0].mxu0 %v1247
  %v2182 = vpop.f32.mrb[0].mxu0
  %v2183 = vadd.f32 0.0, %v2182
  %v2184 = vpop.f32.mrb[0].mxu0
  %2185 = vmatprep.mubr.f32.mxu0 0.0
  %2186 = vmatmul.mubr.f32.gmra.mrb[0].mxu0 %v1248
  %v2187 = vpop.f32.mrb[0].mxu0
  %v2188 = vadd.f32 0.0, %v2187
  %v2189 = vpop.f32.mrb[0].mxu0
  %2190 = vmatprep.mubr.f32.mxu0 0.0
  %2191 = vmatmul.mubr.f32.gmra.mrb[0].mxu0 %v1249
  %v2192 = vpop.f32.mrb[0].mxu0
  %v2193 = vadd.f32 0.0, %v2192
  %v2194 = vpop.f32.mrb[0].mxu0
  %2195 = vmatprep.mubr.f32.mxu0 0.0
  %2196 = vmatmul.mubr.f32.gmra.mrb[0].mxu0 %v1250
  %v2197 = vpop.f32.mrb[0].mxu0
  %v2198 = vadd.f32 0.0, %v2197
  %v2199 = vpop.f32.mrb[0].mxu0
  %2200 = vmatprep.mubr.f32.mxu0 0.0
  %2201 = vmatmul.mubr.f32.gmra.mrb[0].mxu0 %v1251
  %v2202 = vpop.f32.mrb[0].mxu0
  %v2203 = vadd.f32 0.0, %v2202
  %v2204 = vpop.f32.mrb[0].mxu0
  %2205 = vmatprep.mubr.f32.mxu0 0.0
  %2206 = vmatmul.mubr.f32.gmra.mrb[0].mxu0 %v1252
  %v2207 = vpop.f32.mrb[0].mxu0
  %v2208 = vadd.f32 0.0, %v2207
  %v2209 = vpop.f32.mrb[0].mxu0
  %2210 = vdwg.mxu0
  %v2211 = vmul.f32 %v2053, %v1954
  %v2212 = vmul.f32 %v2058, %v1955
  %v2213 = vmul.f32 %v2063, %v1956
  %v2214 = vmul.f32 %v2068, %v1957
  %v2215 = vmul.f32 %v2073, %v1958
  %v2216 = vmul.f32 %v2078, %v1959
  %v2217 = vmul.f32 %v2083, %v1960
  %v2218 = vmul.f32 %v2088, %v1961
  %v2219 = vmul.f32 %v2093, %v1962
  %v2220 = vmul.f32 %v2098, %v1963
  %v2221 = vmul.f32 %v2103, %v1964
  %v2222 = vmul.f32 %v2108, %v1965
  %v2223 = vmul.f32 %v2113, %v1966
  %v2224 = vmul.f32 %v2118, %v1967
  %v2225 = vmul.f32 %v2123, %v1968
  %v2226 = vmul.f32 %v2128, %v1969
  %v2227 = vmul.f32 %v2133, %v1970
  %v2228 = vmul.f32 %v2138, %v1971
  %v2229 = vmul.f32 %v2143, %v1972
  %v2230 = vmul.f32 %v2148, %v1973
  %v2231 = vmul.f32 %v2153, %v1974
  %v2232 = vmul.f32 %v2158, %v1975
  %v2233 = vmul.f32 %v2163, %v1976
  %v2234 = vmul.f32 %v2168, %v1977
  %v2235 = vmul.f32 %v2173, %v1978
  %v2236 = vmul.f32 %v2178, %v1979
  %v2237 = vmul.f32 %v2183, %v1980
  %v2238 = vmul.f32 %v2188, %v1981
  %v2239 = vmul.f32 %v2193, %v1982
  %v2240 = vmul.f32 %v2198, %v1983
  %v2241 = vmul.f32 %v2203, %v1984
  %v2242 = vmul.f32 %v2208, %v1985
  %v2243 = vmul.f32 %v1730, %v1954
  %v2244 = vmul.f32 %v1731, %v1954
  %v2245 = vmul.f32 %v1732, %v1955
  %v2246 = vmul.f32 %v1733, %v1955
  %v2247 = vmul.f32 %v1734, %v1956
  %v2248 = vmul.f32 %v1735, %v1956
  %v2249 = vmul.f32 %v1736, %v1957
  %v2250 = vmul.f32 %v1737, %v1957
  %v2251 = vmul.f32 %v1738, %v1958
  %v2252 = vmul.f32 %v1739, %v1958
  %v2253 = vmul.f32 %v1740, %v1959
  %v2254 = vmul.f32 %v1741, %v1959
  %v2255 = vmul.f32 %v1742, %v1960
  %v2256 = vmul.f32 %v1743, %v1960
  %v2257 = vmul.f32 %v1744, %v1961
  %v2258 = vmul.f32 %v1745, %v1961
  %v2259 = vmul.f32 %v1746, %v1962
  %v2260 = vmul.f32 %v1747, %v1962
  %v2261 = vmul.f32 %v1748, %v1963
  %v2262 = vmul.f32 %v1749, %v1963
  %v2263 = vmul.f32 %v1750, %v1964
  %v2264 = vmul.f32 %v1751, %v1964
  %v2265 = vmul.f32 %v1752, %v1965
  %v2266 = vmul.f32 %v1753, %v1965
  %v2267 = vmul.f32 %v1754, %v1966
  %v2268 = vmul.f32 %v1755, %v1966
  %v2269 = vmul.f32 %v1756, %v1967
  %v2270 = vmul.f32 %v1757, %v1967
  %v2271 = vmul.f32 %v1758, %v1968
  %v2272 = vmul.f32 %v1759, %v1968
  %v2273 = vmul.f32 %v1760, %v1969
  %v2274 = vmul.f32 %v1761, %v1969
  %v2275 = vmul.f32 %v1762, %v1970
  %v2276 = vmul.f32 %v1763, %v1970
  %v2277 = vmul.f32 %v1764, %v1971
  %v2278 = vmul.f32 %v1765, %v1971
  %v2279 = vmul.f32 %v1766, %v1972
  %v2280 = vmul.f32 %v1767, %v1972
  %v2281 = vmul.f32 %v1768, %v1973
  %v2282 = vmul.f32 %v1769, %v1973
  %v2283 = vmul.f32 %v1770, %v1974
  %v2284 = vmul.f32 %v1771, %v1974
  %v2285 = vmul.f32 %v1772, %v1975
  %v2286 = vmul.f32 %v1773, %v1975
  %v2287 = vmul.f32 %v1774, %v1976
  %v2288 = vmul.f32 %v1775, %v1976
  %v2289 = vmul.f32 %v1776, %v1977
  %v2290 = vmul.f32 %v1777, %v1977
  %v2291 = vmul.f32 %v1778, %v1978
  %v2292 = vmul.f32 %v1779, %v1978
  %v2293 = vmul.f32 %v1780, %v1979
  %v2294 = vmul.f32 %v1781, %v1979
  %v2295 = vmul.f32 %v1782, %v1980
  %v2296 = vmul.f32 %v1783, %v1980
  %v2297 = vmul.f32 %v1784, %v1981
  %v2298 = vmul.f32 %v1785, %v1981
  %v2299 = vmul.f32 %v1786, %v1982
  %v2300 = vmul.f32 %v1787, %v1982
  %v2301 = vmul.f32 %v1788, %v1983
  %v2302 = vmul.f32 %v1789, %v1983
  %v2303 = vmul.f32 %v1790, %v1984
  %v2304 = vmul.f32 %v1791, %v1984
  %v2305 = vmul.f32 %v1792, %v1985
  %v2306 = vmul.f32 %v1793, %v1985
  %v2308 = vlaneseq
  %v2309 = vshrl.u32 %v2308, 7
  %v2310 = vsub.s32 0, %v2309
  %v2311 = vrot.slane %v1601, %v2310
  %2313 = vmatprep.subr.mxu0 0.0
  %2314 = vmatpush1.msra.mxu0 %v2211
  %2315 = vmatprep.subr.mxu0 0.0
  %2316 = vmatpush1.msra.mxu0 %v2212
  %2317 = vmatprep.subr.mxu0 0.0
  %2318 = vmatpush1.msra.mxu0 %v2213
  %2319 = vmatprep.subr.mxu0 0.0
  %2320 = vmatpush1.msra.mxu0 %v2214
  %2321 = vmatprep.subr.mxu0 0.0
  %2322 = vmatpush1.msra.mxu0 %v2215
  %2323 = vmatprep.subr.mxu0 0.0
  %2324 = vmatpush1.msra.mxu0 %v2216
  %2325 = vmatprep.subr.mxu0 0.0
  %2326 = vmatpush1.msra.mxu0 %v2217
  %2327 = vmatprep.subr.mxu0 0.0
  %2328 = vmatpush1.msra.mxu0 %v2218
  %2329 = vmatprep.subr.mxu0 0.0
  %2330 = vmatpush1.msra.mxu0 %v2219
  %2331 = vmatprep.subr.mxu0 0.0
  %2332 = vmatpush1.msra.mxu0 %v2220
  %2333 = vmatprep.subr.mxu0 0.0
  %2334 = vmatpush1.msra.mxu0 %v2221
  %2335 = vmatprep.subr.mxu0 0.0
  %2336 = vmatpush1.msra.mxu0 %v2222
  %2337 = vmatprep.subr.mxu0 0.0
  %2338 = vmatpush1.msra.mxu0 %v2223
  %2339 = vmatprep.subr.mxu0 0.0
  %2340 = vmatpush1.msra.mxu0 %v2224
  %2341 = vmatprep.subr.mxu0 0.0
  %2342 = vmatpush1.msra.mxu0 %v2225
  %2343 = vmatprep.subr.mxu0 0.0
  %2344 = vmatpush1.msra.mxu0 %v2226
  %2345 = vmatprep.subr.mxu0 0.0
  %2346 = vmatpush1.msra.mxu0 %v2227
  %2347 = vmatprep.subr.mxu0 0.0
  %2348 = vmatpush1.msra.mxu0 %v2228
  %2349 = vmatprep.subr.mxu0 0.0
  %2350 = vmatpush1.msra.mxu0 %v2229
  %2351 = vmatprep.subr.mxu0 0.0
  %2352 = vmatpush1.msra.mxu0 %v2230
  %2353 = vmatprep.subr.mxu0 0.0
  %2354 = vmatpush1.msra.mxu0 %v2231
  %2355 = vmatprep.subr.mxu0 0.0
  %2356 = vmatpush1.msra.mxu0 %v2232
  %2357 = vmatprep.subr.mxu0 0.0
  %2358 = vmatpush1.msra.mxu0 %v2233
  %2359 = vmatprep.subr.mxu0 0.0
  %2360 = vmatpush1.msra.mxu0 %v2234
  %2361 = vmatprep.subr.mxu0 0.0
  %2362 = vmatpush1.msra.mxu0 %v2235
  %2363 = vmatprep.subr.mxu0 0.0
  %2364 = vmatpush1.msra.mxu0 %v2236
  %2365 = vmatprep.subr.mxu0 0.0
  %2366 = vmatpush1.msra.mxu0 %v2237
  %2367 = vmatprep.subr.mxu0 0.0
  %2368 = vmatpush1.msra.mxu0 %v2238
  %2369 = vmatprep.subr.mxu0 0.0
  %2370 = vmatpush1.msra.mxu0 %v2239
  %2371 = vmatprep.subr.mxu0 0.0
  %2372 = vmatpush1.msra.mxu0 %v2240
  %2373 = vmatprep.subr.mxu0 0.0
  %2374 = vmatpush1.msra.mxu0 %v2241
  %2375 = vmatprep.subr.mxu0 0.0
  %2376 = vmatpush1.msra.mxu0 %v2242
  %2377 = vmatprep.mubr.f32.mxu0 %v2244
  %2378 = vmatmul.mubr.f32.gmra.mrb[0].mxu0 %v2243
  %v2379 = vpop.f32.mrb[0].mxu0
  %v2380 = vadd.f32 %v2311, %v2379
  %v2381 = vpop.f32.mrb[0].mxu0
  %2382 = vmatprep.mubr.f32.mxu0 %v2246
  %2383 = vmatmul.mubr.f32.gmra.mrb[0].mxu0 %v2245
  %v2384 = vpop.f32.mrb[0].mxu0
  %v2385 = vadd.f32 %v2311, %v2384
  %v2386 = vpop.f32.mrb[0].mxu0
  %2387 = vmatprep.mubr.f32.mxu0 %v2248
  %2388 = vmatmul.mubr.f32.gmra.mrb[0].mxu0 %v2247
  %v2389 = vpop.f32.mrb[0].mxu0
  %v2390 = vadd.f32 %v2311, %v2389
  %v2391 = vpop.f32.mrb[0].mxu0
  %2392 = vmatprep.mubr.f32.mxu0 %v2250
  %2393 = vmatmul.mubr.f32.gmra.mrb[0].mxu0 %v2249
  %v2394 = vpop.f32.mrb[0].mxu0
  %v2395 = vadd.f32 %v2311, %v2394
  %v2396 = vpop.f32.mrb[0].mxu0
  %2397 = vmatprep.mubr.f32.mxu0 %v2252
  %2398 = vmatmul.mubr.f32.gmra.mrb[0].mxu0 %v2251
  %v2399 = vpop.f32.mrb[0].mxu0
  %v2400 = vadd.f32 %v2311, %v2399
  %v2401 = vpop.f32.mrb[0].mxu0
  %2402 = vmatprep.mubr.f32.mxu0 %v2254
  %2403 = vmatmul.mubr.f32.gmra.mrb[0].mxu0 %v2253
  %v2404 = vpop.f32.mrb[0].mxu0
  %v2405 = vadd.f32 %v2311, %v2404
  %v2406 = vpop.f32.mrb[0].mxu0
  %2407 = vmatprep.mubr.f32.mxu0 %v2256
  %2408 = vmatmul.mubr.f32.gmra.mrb[0].mxu0 %v2255
  %v2409 = vpop.f32.mrb[0].mxu0
  %v2410 = vadd.f32 %v2311, %v2409
  %v2411 = vpop.f32.mrb[0].mxu0
  %2412 = vmatprep.mubr.f32.mxu0 %v2258
  %2413 = vmatmul.mubr.f32.gmra.mrb[0].mxu0 %v2257
  %v2414 = vpop.f32.mrb[0].mxu0
  %v2415 = vadd.f32 %v2311, %v2414
  %v2416 = vpop.f32.mrb[0].mxu0
  %2417 = vmatprep.mubr.f32.mxu0 %v2260
  %2418 = vmatmul.mubr.f32.gmra.mrb[0].mxu0 %v2259
  %v2419 = vpop.f32.mrb[0].mxu0
  %v2420 = vadd.f32 %v2311, %v2419
  %v2421 = vpop.f32.mrb[0].mxu0
  %2422 = vmatprep.mubr.f32.mxu0 %v2262
  %2423 = vmatmul.mubr.f32.gmra.mrb[0].mxu0 %v2261
  %v2424 = vpop.f32.mrb[0].mxu0
  %v2425 = vadd.f32 %v2311, %v2424
  %v2426 = vpop.f32.mrb[0].mxu0
  %2427 = vmatprep.mubr.f32.mxu0 %v2264
  %2428 = vmatmul.mubr.f32.gmra.mrb[0].mxu0 %v2263
  %v2429 = vpop.f32.mrb[0].mxu0
  %v2430 = vadd.f32 %v2311, %v2429
  %v2431 = vpop.f32.mrb[0].mxu0
  %2432 = vmatprep.mubr.f32.mxu0 %v2266
  %2433 = vmatmul.mubr.f32.gmra.mrb[0].mxu0 %v2265
  %v2434 = vpop.f32.mrb[0].mxu0
  %v2435 = vadd.f32 %v2311, %v2434
  %v2436 = vpop.f32.mrb[0].mxu0
  %2437 = vmatprep.mubr.f32.mxu0 %v2268
  %2438 = vmatmul.mubr.f32.gmra.mrb[0].mxu0 %v2267
  %v2439 = vpop.f32.mrb[0].mxu0
  %v2440 = vadd.f32 %v2311, %v2439
  %v2441 = vpop.f32.mrb[0].mxu0
  %2442 = vmatprep.mubr.f32.mxu0 %v2270
  %2443 = vmatmul.mubr.f32.gmra.mrb[0].mxu0 %v2269
  %v2444 = vpop.f32.mrb[0].mxu0
  %v2445 = vadd.f32 %v2311, %v2444
  %v2446 = vpop.f32.mrb[0].mxu0
  %2447 = vmatprep.mubr.f32.mxu0 %v2272
  %2448 = vmatmul.mubr.f32.gmra.mrb[0].mxu0 %v2271
  %v2449 = vpop.f32.mrb[0].mxu0
  %v2450 = vadd.f32 %v2311, %v2449
  %v2451 = vpop.f32.mrb[0].mxu0
  %2452 = vmatprep.mubr.f32.mxu0 %v2274
  %2453 = vmatmul.mubr.f32.gmra.mrb[0].mxu0 %v2273
  %v2454 = vpop.f32.mrb[0].mxu0
  %v2455 = vadd.f32 %v2311, %v2454
  %v2456 = vpop.f32.mrb[0].mxu0
  %2457 = vmatprep.mubr.f32.mxu0 %v2276
  %2458 = vmatmul.mubr.f32.gmra.mrb[0].mxu0 %v2275
  %v2459 = vpop.f32.mrb[0].mxu0
  %v2460 = vadd.f32 %v2311, %v2459
  %v2461 = vpop.f32.mrb[0].mxu0
  %2462 = vmatprep.mubr.f32.mxu0 %v2278
  %2463 = vmatmul.mubr.f32.gmra.mrb[0].mxu0 %v2277
  %v2464 = vpop.f32.mrb[0].mxu0
  %v2465 = vadd.f32 %v2311, %v2464
  %v2466 = vpop.f32.mrb[0].mxu0
  %2467 = vmatprep.mubr.f32.mxu0 %v2280
  %2468 = vmatmul.mubr.f32.gmra.mrb[0].mxu0 %v2279
  %v2469 = vpop.f32.mrb[0].mxu0
  %v2470 = vadd.f32 %v2311, %v2469
  %v2471 = vpop.f32.mrb[0].mxu0
  %2472 = vmatprep.mubr.f32.mxu0 %v2282
  %2473 = vmatmul.mubr.f32.gmra.mrb[0].mxu0 %v2281
  %v2474 = vpop.f32.mrb[0].mxu0
  %v2475 = vadd.f32 %v2311, %v2474
  %v2476 = vpop.f32.mrb[0].mxu0
  %2477 = vmatprep.mubr.f32.mxu0 %v2284
  %2478 = vmatmul.mubr.f32.gmra.mrb[0].mxu0 %v2283
  %v2479 = vpop.f32.mrb[0].mxu0
  %v2480 = vadd.f32 %v2311, %v2479
  %v2481 = vpop.f32.mrb[0].mxu0
  %2482 = vmatprep.mubr.f32.mxu0 %v2286
  %2483 = vmatmul.mubr.f32.gmra.mrb[0].mxu0 %v2285
  %v2484 = vpop.f32.mrb[0].mxu0
  %v2485 = vadd.f32 %v2311, %v2484
  %v2486 = vpop.f32.mrb[0].mxu0
  %2487 = vmatprep.mubr.f32.mxu0 %v2288
  %2488 = vmatmul.mubr.f32.gmra.mrb[0].mxu0 %v2287
  %v2489 = vpop.f32.mrb[0].mxu0
  %v2490 = vadd.f32 %v2311, %v2489
  %v2491 = vpop.f32.mrb[0].mxu0
  %2492 = vmatprep.mubr.f32.mxu0 %v2290
  %2493 = vmatmul.mubr.f32.gmra.mrb[0].mxu0 %v2289
  %v2494 = vpop.f32.mrb[0].mxu0
  %v2495 = vadd.f32 %v2311, %v2494
  %v2496 = vpop.f32.mrb[0].mxu0
  %2497 = vmatprep.mubr.f32.mxu0 %v2292
  %2498 = vmatmul.mubr.f32.gmra.mrb[0].mxu0 %v2291
  %v2499 = vpop.f32.mrb[0].mxu0
  %v2500 = vadd.f32 %v2311, %v2499
  %v2501 = vpop.f32.mrb[0].mxu0
  %2502 = vmatprep.mubr.f32.mxu0 %v2294
  %2503 = vmatmul.mubr.f32.gmra.mrb[0].mxu0 %v2293
  %v2504 = vpop.f32.mrb[0].mxu0
  %v2505 = vadd.f32 %v2311, %v2504
  %v2506 = vpop.f32.mrb[0].mxu0
  %2507 = vmatprep.mubr.f32.mxu0 %v2296
  %2508 = vmatmul.mubr.f32.gmra.mrb[0].mxu0 %v2295
  %v2509 = vpop.f32.mrb[0].mxu0
  %v2510 = vadd.f32 %v2311, %v2509
  %v2511 = vpop.f32.mrb[0].mxu0
  %2512 = vmatprep.mubr.f32.mxu0 %v2298
  %2513 = vmatmul.mubr.f32.gmra.mrb[0].mxu0 %v2297
  %v2514 = vpop.f32.mrb[0].mxu0
  %v2515 = vadd.f32 %v2311, %v2514
  %v2516 = vpop.f32.mrb[0].mxu0
  %2517 = vmatprep.mubr.f32.mxu0 %v2300
  %2518 = vmatmul.mubr.f32.gmra.mrb[0].mxu0 %v2299
  %v2519 = vpop.f32.mrb[0].mxu0
  %v2520 = vadd.f32 %v2311, %v2519
  %v2521 = vpop.f32.mrb[0].mxu0
  %2522 = vmatprep.mubr.f32.mxu0 %v2302
  %2523 = vmatmul.mubr.f32.gmra.mrb[0].mxu0 %v2301
  %v2524 = vpop.f32.mrb[0].mxu0
  %v2525 = vadd.f32 %v2311, %v2524
  %v2526 = vpop.f32.mrb[0].mxu0
  %2527 = vmatprep.mubr.f32.mxu0 %v2304
  %2528 = vmatmul.mubr.f32.gmra.mrb[0].mxu0 %v2303
  %v2529 = vpop.f32.mrb[0].mxu0
  %v2530 = vadd.f32 %v2311, %v2529
  %v2531 = vpop.f32.mrb[0].mxu0
  %2532 = vmatprep.mubr.f32.mxu0 %v2306
  %2533 = vmatmul.mubr.f32.gmra.mrb[0].mxu0 %v2305
  %v2534 = vpop.f32.mrb[0].mxu0
  %v2535 = vadd.f32 %v2311, %v2534
  %v2536 = vpop.f32.mrb[0].mxu0
  %2537 = vdwg.mxu0
  %v2538 = vmax.f32 %v2380, 0.0
  %v2539 = vmax.f32 %v2385, 0.0
  %v2540 = vmax.f32 %v2390, 0.0
  %v2541 = vmax.f32 %v2395, 0.0
  %v2542 = vmax.f32 %v2400, 0.0
  %v2543 = vmax.f32 %v2405, 0.0
  %v2544 = vmax.f32 %v2410, 0.0
  %v2545 = vmax.f32 %v2415, 0.0
  %v2546 = vmax.f32 %v2420, 0.0
  %v2547 = vmax.f32 %v2425, 0.0
  %v2548 = vmax.f32 %v2430, 0.0
  %v2549 = vmax.f32 %v2435, 0.0
  %v2550 = vmax.f32 %v2440, 0.0
  %v2551 = vmax.f32 %v2445, 0.0
  %v2552 = vmax.f32 %v2450, 0.0
  %v2553 = vmax.f32 %v2455, 0.0
  %v2554 = vmax.f32 %v2460, 0.0
  %v2555 = vmax.f32 %v2465, 0.0
  %v2556 = vmax.f32 %v2470, 0.0
  %v2557 = vmax.f32 %v2475, 0.0
  %v2558 = vmax.f32 %v2480, 0.0
  %v2559 = vmax.f32 %v2485, 0.0
  %v2560 = vmax.f32 %v2490, 0.0
  %v2561 = vmax.f32 %v2495, 0.0
  %v2562 = vmax.f32 %v2500, 0.0
  %v2563 = vmax.f32 %v2505, 0.0
  %v2564 = vmax.f32 %v2510, 0.0
  %v2565 = vmax.f32 %v2515, 0.0
  %v2566 = vmax.f32 %v2520, 0.0
  %v2567 = vmax.f32 %v2525, 0.0
  %v2568 = vmax.f32 %v2530, 0.0
  %v2569 = vmax.f32 %v2535, 0.0
  %v2570 = vld [vmem:[%s9] sm:$0xff]
  %v2571 = vld [vmem:[%s9 + $0x8] sm:$0xff]
  %v2572 = vld [vmem:[%s9 + $0x10] sm:$0xff]
  %v2573 = vld [vmem:[%s9 + $0x18] sm:$0xff]
  %v2574 = vld [vmem:[%s9 + $0x20] sm:$0xff]
  %v2575 = vld [vmem:[%s9 + $0x28] sm:$0xff]
  %v2576 = vld [vmem:[%s9 + $0x30] sm:$0xff]
  %v2577 = vld [vmem:[%s9 + $0x38] sm:$0xff]
  %v2578 = vld [vmem:[%s9 + $0x40] sm:$0xff]
  %v2579 = vld [vmem:[%s9 + $0x48] sm:$0xff]
  %v2580 = vld [vmem:[%s9 + $0x50] sm:$0xff]
  %v2581 = vld [vmem:[%s9 + $0x58] sm:$0xff]
  %v2582 = vld [vmem:[%s9 + $0x60] sm:$0xff]
  %v2583 = vld [vmem:[%s9 + $0x68] sm:$0xff]
  %v2584 = vld [vmem:[%s9 + $0x70] sm:$0xff]
  %v2585 = vld [vmem:[%s9 + $0x78] sm:$0xff]
  %v2586 = vld [vmem:[%s9 + $0x80] sm:$0xff]
  %v2587 = vld [vmem:[%s9 + $0x88] sm:$0xff]
  %v2588 = vld [vmem:[%s9 + $0x90] sm:$0xff]
  %v2589 = vld [vmem:[%s9 + $0x98] sm:$0xff]
  %v2590 = vld [vmem:[%s9 + $0xa0] sm:$0xff]
  %v2591 = vld [vmem:[%s9 + $0xa8] sm:$0xff]
  %v2592 = vld [vmem:[%s9 + $0xb0] sm:$0xff]
  %v2593 = vld [vmem:[%s9 + $0xb8] sm:$0xff]
  %v2594 = vld [vmem:[%s9 + $0xc0] sm:$0xff]
  %v2595 = vld [vmem:[%s9 + $0xc8] sm:$0xff]
  %v2596 = vld [vmem:[%s9 + $0xd0] sm:$0xff]
  %v2597 = vld [vmem:[%s9 + $0xd8] sm:$0xff]
  %v2598 = vld [vmem:[%s9 + $0xe0] sm:$0xff]
  %v2599 = vld [vmem:[%s9 + $0xe8] sm:$0xff]
  %v2600 = vld [vmem:[%s9 + $0xf0] sm:$0xff]
  %v2601 = vld [vmem:[%s9 + $0xf8] sm:$0xff]
  %v2602 = vmul.f32 %v2538, %v2570
  %v2603 = vmul.f32 %v2539, %v2571
  %v2604 = vmul.f32 %v2540, %v2572
  %v2605 = vmul.f32 %v2541, %v2573
  %v2606 = vmul.f32 %v2542, %v2574
  %v2607 = vmul.f32 %v2543, %v2575
  %v2608 = vmul.f32 %v2544, %v2576
  %v2609 = vmul.f32 %v2545, %v2577
  %v2610 = vmul.f32 %v2546, %v2578
  %v2611 = vmul.f32 %v2547, %v2579
  %v2612 = vmul.f32 %v2548, %v2580
  %v2613 = vmul.f32 %v2549, %v2581
  %v2614 = vmul.f32 %v2550, %v2582
  %v2615 = vmul.f32 %v2551, %v2583
  %v2616 = vmul.f32 %v2552, %v2584
  %v2617 = vmul.f32 %v2553, %v2585
  %v2618 = vmul.f32 %v2554, %v2586
  %v2619 = vmul.f32 %v2555, %v2587
  %v2620 = vmul.f32 %v2556, %v2588
  %v2621 = vmul.f32 %v2557, %v2589
  %v2622 = vmul.f32 %v2558, %v2590
  %v2623 = vmul.f32 %v2559, %v2591
  %v2624 = vmul.f32 %v2560, %v2592
  %v2625 = vmul.f32 %v2561, %v2593
  %v2626 = vmul.f32 %v2562, %v2594
  %v2627 = vmul.f32 %v2563, %v2595
  %v2628 = vmul.f32 %v2564, %v2596
  %v2629 = vmul.f32 %v2565, %v2597
  %v2630 = vmul.f32 %v2566, %v2598
  %v2631 = vmul.f32 %v2567, %v2599
  %v2632 = vmul.f32 %v2568, %v2600
  %v2633 = vmul.f32 %v2569, %v2601
  %vm2634 = vcmask 523264
  %v2635 = vsel %vm2634, %v2602, 0.0
  %2636 = vadd.xlane.f32.xlu0 %v2635
  %v2637 = vpop.xlane.xlu0 %2636
  %v2638 = vsel %vm2634, %v2603, 0.0
  %2639 = vadd.xlane.f32.xlu0 %v2638
  %v2640 = vpop.xlane.xlu0 %2639
  %v2641 = vsel %vm2634, %v2604, 0.0
  %2642 = vadd.xlane.f32.xlu0 %v2641
  %v2643 = vpop.xlane.xlu0 %2642
  %v2644 = vsel %vm2634, %v2605, 0.0
  %2645 = vadd.xlane.f32.xlu0 %v2644
  %v2646 = vpop.xlane.xlu0 %2645
  %v2647 = vsel %vm2634, %v2606, 0.0
  %2648 = vadd.xlane.f32.xlu0 %v2647
  %v2649 = vpop.xlane.xlu0 %2648
  %v2650 = vsel %vm2634, %v2607, 0.0
  %2651 = vadd.xlane.f32.xlu0 %v2650
  %v2652 = vpop.xlane.xlu0 %2651
  %v2653 = vsel %vm2634, %v2608, 0.0
  %2654 = vadd.xlane.f32.xlu0 %v2653
  %v2655 = vpop.xlane.xlu0 %2654
  %v2656 = vsel %vm2634, %v2609, 0.0
  %2657 = vadd.xlane.f32.xlu0 %v2656
  %v2658 = vpop.xlane.xlu0 %2657
  %v2659 = vsel %vm2634, %v2610, 0.0
  %2660 = vadd.xlane.f32.xlu0 %v2659
  %v2661 = vpop.xlane.xlu0 %2660
  %v2662 = vsel %vm2634, %v2611, 0.0
  %2663 = vadd.xlane.f32.xlu0 %v2662
  %v2664 = vpop.xlane.xlu0 %2663
  %v2665 = vsel %vm2634, %v2612, 0.0
  %2666 = vadd.xlane.f32.xlu0 %v2665
  %v2667 = vpop.xlane.xlu0 %2666
  %v2668 = vsel %vm2634, %v2613, 0.0
  %2669 = vadd.xlane.f32.xlu0 %v2668
  %v2670 = vpop.xlane.xlu0 %2669
  %v2671 = vsel %vm2634, %v2614, 0.0
  %2672 = vadd.xlane.f32.xlu0 %v2671
  %v2673 = vpop.xlane.xlu0 %2672
  %v2674 = vsel %vm2634, %v2615, 0.0
  %2675 = vadd.xlane.f32.xlu0 %v2674
  %v2676 = vpop.xlane.xlu0 %2675
  %v2677 = vsel %vm2634, %v2616, 0.0
  %2678 = vadd.xlane.f32.xlu0 %v2677
  %v2679 = vpop.xlane.xlu0 %2678
  %v2680 = vsel %vm2634, %v2617, 0.0
  %2681 = vadd.xlane.f32.xlu0 %v2680
  %v2682 = vpop.xlane.xlu0 %2681
  %v2683 = vsel %vm2634, %v2618, 0.0
  %2684 = vadd.xlane.f32.xlu0 %v2683
  %v2685 = vpop.xlane.xlu0 %2684
  %v2686 = vsel %vm2634, %v2619, 0.0
  %2687 = vadd.xlane.f32.xlu0 %v2686
  %v2688 = vpop.xlane.xlu0 %2687
  %v2689 = vsel %vm2634, %v2620, 0.0
  %2690 = vadd.xlane.f32.xlu0 %v2689
  %v2691 = vpop.xlane.xlu0 %2690
  %v2692 = vsel %vm2634, %v2621, 0.0
  %2693 = vadd.xlane.f32.xlu0 %v2692
  %v2694 = vpop.xlane.xlu0 %2693
  %v2695 = vsel %vm2634, %v2622, 0.0
  %2696 = vadd.xlane.f32.xlu0 %v2695
  %v2697 = vpop.xlane.xlu0 %2696
  %v2698 = vsel %vm2634, %v2623, 0.0
  %2699 = vadd.xlane.f32.xlu0 %v2698
  %v2700 = vpop.xlane.xlu0 %2699
  %v2701 = vsel %vm2634, %v2624, 0.0
  %2702 = vadd.xlane.f32.xlu0 %v2701
  %v2703 = vpop.xlane.xlu0 %2702
  %v2704 = vsel %vm2634, %v2625, 0.0
  %2705 = vadd.xlane.f32.xlu0 %v2704
  %v2706 = vpop.xlane.xlu0 %2705
  %v2707 = vsel %vm2634, %v2626, 0.0
  %2708 = vadd.xlane.f32.xlu0 %v2707
  %v2709 = vpop.xlane.xlu0 %2708
  %v2710 = vsel %vm2634, %v2627, 0.0
  %2711 = vadd.xlane.f32.xlu0 %v2710
  %v2712 = vpop.xlane.xlu0 %2711
  %v2713 = vsel %vm2634, %v2628, 0.0
  %2714 = vadd.xlane.f32.xlu0 %v2713
  %v2715 = vpop.xlane.xlu0 %2714
  %v2716 = vsel %vm2634, %v2629, 0.0
  %2717 = vadd.xlane.f32.xlu0 %v2716
  %v2718 = vpop.xlane.xlu0 %2717
  %v2719 = vsel %vm2634, %v2630, 0.0
  %2720 = vadd.xlane.f32.xlu0 %v2719
  %v2721 = vpop.xlane.xlu0 %2720
  %v2722 = vsel %vm2634, %v2631, 0.0
  %2723 = vadd.xlane.f32.xlu0 %v2722
  %v2724 = vpop.xlane.xlu0 %2723
  %v2725 = vsel %vm2634, %v2632, 0.0
  %2726 = vadd.xlane.f32.xlu0 %v2725
  %v2727 = vpop.xlane.xlu0 %2726
  %v2728 = vsel %vm2634, %v2633, 0.0
  %2729 = vadd.xlane.f32.xlu0 %v2728
  %v2730 = vpop.xlane.xlu0 %2729
  %v2731 = vld [vmem:[%s12] sm:$0xff]
  %v2732 = vld [vmem:[%s12 + $0x8] sm:$0xff]
  %v2733 = vld [vmem:[%s12 + $0x10] sm:$0x3f]
  %v2734 = vld [vmem:[%s12 + $0x18] sm:$0x3f]
  %v2735 = vld [vmem:[%s11] sm:$0xff]
  %v2736 = vld [vmem:[%s11 + $0x8] sm:$0xff]
  %v2737 = vld [vmem:[%s11 + $0x10] sm:$0xff]
  %v2738 = vld [vmem:[%s11 + $0x18] sm:$0xff]
  %v2739 = vld [vmem:[%s11 + $0x20] sm:$0xff]
  %v2740 = vld [vmem:[%s11 + $0x28] sm:$0xff]
  %v2741 = vld [vmem:[%s11 + $0x30] sm:$0xff]
  %v2742 = vld [vmem:[%s11 + $0x38] sm:$0xff]
  %v2743 = vld [vmem:[%s11 + $0x40] sm:$0xff]
  %v2744 = vld [vmem:[%s11 + $0x48] sm:$0xff]
  %v2745 = vld [vmem:[%s11 + $0x50] sm:$0xff]
  %v2746 = vld [vmem:[%s11 + $0x58] sm:$0xff]
  %v2747 = vld [vmem:[%s11 + $0x60] sm:$0xff]
  %v2748 = vld [vmem:[%s11 + $0x68] sm:$0xff]
  %v2749 = vld [vmem:[%s11 + $0x70] sm:$0xff]
  %v2750 = vld [vmem:[%s11 + $0x78] sm:$0xff]
  %v2751 = vld [vmem:[%s11 + $0x80] sm:$0xff]
  %v2752 = vld [vmem:[%s11 + $0x88] sm:$0xff]
  %v2753 = vld [vmem:[%s11 + $0x90] sm:$0xff]
  %v2754 = vld [vmem:[%s11 + $0x98] sm:$0xff]
  %v2755 = vld [vmem:[%s11 + $0xa0] sm:$0xff]
  %v2756 = vld [vmem:[%s11 + $0xa8] sm:$0xff]
  %v2757 = vld [vmem:[%s11 + $0xb0] sm:$0xff]
  %v2758 = vld [vmem:[%s11 + $0xb8] sm:$0xff]
  %v2759 = vld [vmem:[%s11 + $0xc0] sm:$0xff]
  %v2760 = vld [vmem:[%s11 + $0xc8] sm:$0xff]
  %v2761 = vld [vmem:[%s11 + $0xd0] sm:$0xff]
  %v2762 = vld [vmem:[%s11 + $0xd8] sm:$0xff]
  %v2763 = vld [vmem:[%s11 + $0xe0] sm:$0xff]
  %v2764 = vld [vmem:[%s11 + $0xe8] sm:$0xff]
  %v2765 = vld [vmem:[%s11 + $0xf0] sm:$0xff]
  %v2766 = vld [vmem:[%s11 + $0xf8] sm:$0xff]
  %v2767 = vmul.f32 %v2735, %v2637
  %v2768 = vmul.f32 %v2736, %v2640
  %v2769 = vmul.f32 %v2737, %v2643
  %v2770 = vmul.f32 %v2738, %v2646
  %v2771 = vmul.f32 %v2739, %v2649
  %v2772 = vmul.f32 %v2740, %v2652
  %v2773 = vmul.f32 %v2741, %v2655
  %v2774 = vmul.f32 %v2742, %v2658
  %v2775 = vmul.f32 %v2743, %v2661
  %v2776 = vmul.f32 %v2744, %v2664
  %v2777 = vmul.f32 %v2745, %v2667
  %v2778 = vmul.f32 %v2746, %v2670
  %v2779 = vmul.f32 %v2747, %v2673
  %v2780 = vmul.f32 %v2748, %v2676
  %v2781 = vmul.f32 %v2749, %v2679
  %v2782 = vmul.f32 %v2750, %v2682
  %v2783 = vmul.f32 %v2751, %v2685
  %v2784 = vmul.f32 %v2752, %v2688
  %v2785 = vmul.f32 %v2753, %v2691
  %v2786 = vmul.f32 %v2754, %v2694
  %v2787 = vmul.f32 %v2755, %v2697
  %v2788 = vmul.f32 %v2756, %v2700
  %v2789 = vmul.f32 %v2757, %v2703
  %v2790 = vmul.f32 %v2758, %v2706
  %v2791 = vmul.f32 %v2759, %v2709
  %v2792 = vmul.f32 %v2760, %v2712
  %v2793 = vmul.f32 %v2761, %v2715
  %v2794 = vmul.f32 %v2762, %v2718
  %v2795 = vmul.f32 %v2763, %v2721
  %v2796 = vmul.f32 %v2764, %v2724
  %v2797 = vmul.f32 %v2765, %v2727
  %v2798 = vmul.f32 %v2766, %v2730
  %v2799 = vld [vmem:[%s10] sm:$0x1]
  %v2801 = vlaneseq
  %v2802 = vshrl.u32 %v2801, 7
  %v2803 = vsub.s32 0, %v2802
  %v2804 = vrot.slane %v2799, %v2803
  %2806 = vmatprep.subr.mxu0 0.0
  %2807 = vmatpush1.msra.mxu0 %v2767
  %2808 = vmatprep.subr.mxu0 0.0
  %2809 = vmatpush1.msra.mxu0 %v2768
  %2810 = vmatprep.subr.mxu0 0.0
  %2811 = vmatpush1.msra.mxu0 %v2769
  %2812 = vmatprep.subr.mxu0 0.0
  %2813 = vmatpush1.msra.mxu0 %v2770
  %2814 = vmatprep.subr.mxu0 0.0
  %2815 = vmatpush1.msra.mxu0 %v2771
  %2816 = vmatprep.subr.mxu0 0.0
  %2817 = vmatpush1.msra.mxu0 %v2772
  %2818 = vmatprep.subr.mxu0 0.0
  %2819 = vmatpush1.msra.mxu0 %v2773
  %2820 = vmatprep.subr.mxu0 0.0
  %2821 = vmatpush1.msra.mxu0 %v2774
  %2822 = vmatprep.subr.mxu0 0.0
  %2823 = vmatpush1.msra.mxu0 %v2775
  %2824 = vmatprep.subr.mxu0 0.0
  %2825 = vmatpush1.msra.mxu0 %v2776
  %2826 = vmatprep.subr.mxu0 0.0
  %2827 = vmatpush1.msra.mxu0 %v2777
  %2828 = vmatprep.subr.mxu0 0.0
  %2829 = vmatpush1.msra.mxu0 %v2778
  %2830 = vmatprep.subr.mxu0 0.0
  %2831 = vmatpush1.msra.mxu0 %v2779
  %2832 = vmatprep.subr.mxu0 0.0
  %2833 = vmatpush1.msra.mxu0 %v2780
  %2834 = vmatprep.subr.mxu0 0.0
  %2835 = vmatpush1.msra.mxu0 %v2781
  %2836 = vmatprep.subr.mxu0 0.0
  %2837 = vmatpush1.msra.mxu0 %v2782
  %2838 = vmatprep.subr.mxu0 0.0
  %2839 = vmatpush1.msra.mxu0 %v2783
  %2840 = vmatprep.subr.mxu0 0.0
  %2841 = vmatpush1.msra.mxu0 %v2784
  %2842 = vmatprep.subr.mxu0 0.0
  %2843 = vmatpush1.msra.mxu0 %v2785
  %2844 = vmatprep.subr.mxu0 0.0
  %2845 = vmatpush1.msra.mxu0 %v2786
  %2846 = vmatprep.subr.mxu0 0.0
  %2847 = vmatpush1.msra.mxu0 %v2787
  %2848 = vmatprep.subr.mxu0 0.0
  %2849 = vmatpush1.msra.mxu0 %v2788
  %2850 = vmatprep.subr.mxu0 0.0
  %2851 = vmatpush1.msra.mxu0 %v2789
  %2852 = vmatprep.subr.mxu0 0.0
  %2853 = vmatpush1.msra.mxu0 %v2790
  %2854 = vmatprep.subr.mxu0 0.0
  %2855 = vmatpush1.msra.mxu0 %v2791
  %2856 = vmatprep.subr.mxu0 0.0
  %2857 = vmatpush1.msra.mxu0 %v2792
  %2858 = vmatprep.subr.mxu0 0.0
  %2859 = vmatpush1.msra.mxu0 %v2793
  %2860 = vmatprep.subr.mxu0 0.0
  %2861 = vmatpush1.msra.mxu0 %v2794
  %2862 = vmatprep.subr.mxu0 0.0
  %2863 = vmatpush1.msra.mxu0 %v2795
  %2864 = vmatprep.subr.mxu0 0.0
  %2865 = vmatpush1.msra.mxu0 %v2796
  %2866 = vmatprep.subr.mxu0 0.0
  %2867 = vmatpush1.msra.mxu0 %v2797
  %2868 = vmatprep.subr.mxu0 0.0
  %2869 = vmatpush1.msra.mxu0 %v2798
  %2870 = vmatprep.mubr.f32.mxu0 %v2732
  %2871 = vmatmul.mubr.f32.gmra.mrb[0].mxu0 %v2731
  %v2872 = vpop.f32.mrb[0].mxu0
  %v2873 = vadd.f32 %v2804, %v2872
  %v2874 = vpop.f32.mrb[0].mxu0
  %2875 = vmatprep.mubr.f32.mxu0 %v2734
  %2876 = vmatmul.mubr.f32.gmra.mrb[0].mxu0 %v2733
  %v2877 = vpop.f32.mrb[0].mxu0
  %v2878 = vadd.f32 %v2804, %v2877
  %v2879 = vpop.f32.mrb[0].mxu0
  %2880 = vdwg.mxu0
  %vm2881 = vcmask 113664
  %2882 = vst.msk [vmem:[%s13] sm:$0xff] %vm2881, %v2873
  %vm2883 = vcmask 111616
  %2884 = vst.msk [vmem:[%s13 + $0x8] sm:$0x3f] %vm2883, %v2878
  // Predicated region
  $region54: #{gnn_sensors_and_conditions.1} parent=0 // pred_check
    _
  $region55: #{gnn_sensors_and_conditions.1} parent=0 // pred_check_branch
    %2886 = sbr.rel (0) target = $region57
  $region56: #{gnn_sensors_and_conditions.1} parent=0 // pred_region
    _
  $region57: #{gnn_sensors_and_conditions.1} parent=0 // pred_fallthru
    _
  // Predicated region
  $region58: #{gnn_sensors_and_conditions.1} parent=0 // pred_check
    _
  $region59: #{gnn_sensors_and_conditions.1} parent=0 // pred_check_branch
    %2888 = sbr.rel (0) target = $region61
  $region60: #{gnn_sensors_and_conditions.1} parent=0 // pred_region
    _
  $region61: #{gnn_sensors_and_conditions.1} parent=0 // pred_fallthru
    _

</llo_original>
